<compile_context>
chip_gen: v5e
topology: v5e:2x2
jax: 0.10.0
libtpu: 0.0.40
codegen_flags: <defaults>
</compile_context>

<pallas_src>
import functools
import math

import jax
import jax.numpy as jnp
import numpy as np
from jax.experimental import pallas as pl
from jax.experimental.pallas import tpu as pltpu


# ------------------------- host-side helpers -------------------------

def conv_out_len(seq_len, ker_size, stride, padding, dilation, stack):
    for _ in range(stack):
        seq_len = int((seq_len + 2 * padding - dilation * (ker_size - 1) - 1) / stride + 1)
    return seq_len


def _conv_out_len(L, K, stride, padding):
    return (L + 2 * padding - K) // stride + 1


def _noise_sigma(T):
    # ||linspace(1e-4, 0.02, T)||_2  : sum_t s_t * N(0,1)  ~  sigma * N(0,1)
    lo, hi = 1e-4, 0.02
    if T <= 1:
        return lo
    vals = [lo + (hi - lo) * t / (T - 1) for t in range(T)]
    return math.sqrt(sum(v * v for v in vals))


def _conv_gather(L_in, K, stride, padding):
    # G[k, l_out, j] = 1  iff  j == l_out*stride + k - padding  (valid input row)
    L_out = _conv_out_len(L_in, K, stride, padding)
    G = np.zeros((K, L_out, L_in), np.float32)
    for k in range(K):
        for l in range(L_out):
            j = l * stride + k - padding
            if 0 <= j < L_in:
                G[k, l, j] = 1.0
    return G, L_out


def _tconv_scatter(L_in, K, stride, padding, output_padding):
    # S[k, t, l] = 1  iff  t == l*stride + k - padding   (PyTorch ConvTranspose1d)
    L_out = (L_in - 1) * stride - 2 * padding + K + output_padding
    S = np.zeros((K, L_out, L_in), np.float32)
    for k in range(K):
        for l in range(L_in):
            t = l * stride + k - padding
            if 0 <= t < L_out:
                S[k, t, l] = 1.0
    return S, L_out


# ------------------------- parameters -------------------------

def init_params(key, cfg):
    # PyTorch-layout parameters (same structure / init as the previous version).
    input_size = cfg['input_size']
    nf = cfg['num_filters']
    emb = cfg['embedding_dim']
    K = cfg['kernel_size']
    seq_len = cfg['seq_len']
    stride = cfg['stride']
    padding = cfg['padding']

    keys = iter(jax.random.split(key, 32))

    def rnd(shape):
        return jax.random.normal(next(keys), shape, jnp.float32) * 0.1

    enc_blocks = []
    in_c = input_size
    for out_c in nf:
        enc_blocks.append((rnd((out_c, in_c, K)), rnd((out_c,))))
        in_c = out_c
    enc_conv1x1 = (rnd((emb, nf[-1], 1)), rnd((emb,)))

    rc = nf[::-1]
    num_blocks = len(rc)
    Lc = conv_out_len(seq_len, K, stride, padding, 1, num_blocks)
    if stride > 1:
        op = []
        s = seq_len
        for _ in range(num_blocks):
            op.append(s % 2)
            s = conv_out_len(s, K, stride, padding, 1, 1)
        if K % 2 == 1:
            op = [1 - v for v in op[::-1]]
        else:
            op = op[::-1]
    else:
        op = [0] * num_blocks

    dec_blocks = []
    in_c = emb
    for out_c in rc:
        dec_blocks.append((rnd((in_c, out_c, K)), rnd((out_c,))))
        in_c = out_c
    dec_upsample = (rnd((Lc, 1)), rnd((Lc,)))          # nn.Linear(1, Lc)
    dec_conv1x1 = (rnd((input_size, rc[-1], 1)), rnd((input_size,)))

    return dict(enc_blocks=enc_blocks, enc_conv1x1=enc_conv1x1,
                dec_blocks=dec_blocks, dec_output_padding=op,
                dec_upsample=dec_upsample, dec_conv1x1=dec_conv1x1,
                compressed_len=Lc)


def pack_params(params, cfg):
    # One-time host-side repack into the flat, kernel-friendly layout:
    #   per enc block : [G (K,Lout,Lin), Wk (K,Cin,Cout), b (1,Cout)]
    #   enc 1x1       : [W (Clast,emb), b (1,emb)]
    #   upsample      : [Wu (Lc,1), bu (Lc,1)]
    #   per dec block : [S (K,Lout,Lin), Wk (K,Cin,Cout), b (1,Cout)]
    #   dec 1x1       : [W (Clast,Cin0), b (1,Cin0)]
    K = cfg['kernel_size']
    stride = cfg['stride']
    padding = cfg['padding']
    L = cfg['seq_len']
    flat = []

    for (W, b) in params['enc_blocks']:
        C_out = W.shape[0]
        G, L = _conv_gather(L, K, stride, padding)
        flat += [jnp.asarray(G),
                 jnp.transpose(W, (2, 1, 0)),          # (K, C_in, C_out)
                 b.reshape(1, C_out)]

    Wc, bc = params['enc_conv1x1']
    flat += [Wc[:, :, 0].T, bc.reshape(1, -1)]

    Wu, bu = params['dec_upsample']                    # (Lc, 1), (Lc,)
    flat += [Wu, bu.reshape(-1, 1)]
    assert L == Wu.shape[0], (L, Wu.shape)

    Ld = Wu.shape[0]
    for (W, b), op in zip(params['dec_blocks'], params['dec_output_padding']):
        C_out = W.shape[1]
        S, Ld = _tconv_scatter(Ld, K, stride, padding, op)
        flat += [jnp.asarray(S),
                 jnp.transpose(W, (2, 0, 1)),          # (K, C_in, C_out)
                 b.reshape(1, C_out)]

    Wc2, bc2 = params['dec_conv1x1']
    flat += [Wc2[:, :, 0].T, bc2.reshape(1, -1)]
    assert Ld == cfg['seq_len'], (Ld, cfg['seq_len'])
    return flat


# ------------------------- the fused Pallas kernel -------------------------

def _fused_ae_kernel(*refs, n_enc, n_dec, sigma):
    idx = 0
    x_ref = refs[idx]; idx += 1
    eps_ref = refs[idx]; idx += 1
    enc = []
    for _ in range(n_enc):
        enc.append((refs[idx], refs[idx + 1], refs[idx + 2])); idx += 3
    w1x1_ref, b1x1_ref = refs[idx], refs[idx + 1]; idx += 2
    wu_ref, bu_ref = refs[idx], refs[idx + 1]; idx += 2
    dec = []
    for _ in range(n_dec):
        dec.append((refs[idx], refs[idx + 1], refs[idx + 2])); idx += 3
    wf_ref, bf_ref = refs[idx], refs[idx + 1]; idx += 2
    o_ref = refs[idx]

    # DiffusionEncoder noise loop, collapsed:  x + sum_t s_t*N(0,1) == x + sigma*N(0,1)
    h = x_ref[0].astype(jnp.float32) + sigma * eps_ref[0].astype(jnp.float32)

    def tap_block(h, g_ref, wk_ref, b_ref):
        # relu( sum_k G_k @ (h @ W_k) + b )   -- covers Conv1d and ConvTranspose1d
        acc = None
        for k in range(g_ref.shape[0]):
            t = jnp.dot(h, wk_ref[k], preferred_element_type=jnp.float32)
            t = jnp.dot(g_ref[k], t, preferred_element_type=jnp.float32)
            acc = t if acc is None else acc + t
        return jnp.maximum(acc + b_ref[...], 0.0)

    # ConvEncoder: stacked Conv1d + ReLU (dropout = identity at inference)
    for g_ref, wk_ref, b_ref in enc:
        h = tap_block(h, g_ref, wk_ref, b_ref)

    # global max-pool over length, then 1x1 conv -> embedding (1, emb)
    m = jnp.max(h, axis=0, keepdims=True)
    emb = jnp.dot(m, w1x1_ref[...], preferred_element_type=jnp.float32) + b1x1_ref[...]

    # ConvDecoder upsample: nn.Linear(1, Lc) on (emb, 1), laid out channels-last (Lc, emb)
    h = wu_ref[...] * emb + bu_ref[...]

    # stacked ConvTranspose1d + ReLU
    for s_ref, wk_ref, b_ref in dec:
        h = tap_block(h, s_ref, wk_ref, b_ref)

    # final 1x1 conv -> (seq_len, input_size), already channels-last
    out = jnp.dot(h, wf_ref[...], preferred_element_type=jnp.float32) + bf_ref[...]
    o_ref[0] = out.astype(o_ref.dtype)


def diffusion_ae_forward(flat_params, x, noise_key, cfg):
    B = x.shape[0]
    n_enc = len(cfg['num_filters'])
    n_dec = len(cfg['num_filters'])
    sigma = _noise_sigma(cfg['timesteps'])
    eps = jax.random.normal(noise_key, x.shape, dtype=x.dtype)

    def batched_spec(arr):
        nd = arr.ndim
        return pl.BlockSpec((1,) + tuple(arr.shape[1:]),
                            lambda b, _nd=nd: (b,) + (0,) * (_nd - 1))

    def const_spec(arr):
        nd = arr.ndim
        return pl.BlockSpec(tuple(arr.shape), lambda b, _nd=nd: (0,) * _nd)

    in_specs = [batched_spec(x), batched_spec(eps)]
    in_specs += [const_spec(w) for w in flat_params]

    out_shape = jax.ShapeDtypeStruct((B, cfg['seq_len'], cfg['input_size']), x.dtype)
    out_spec = pl.BlockSpec((1, cfg['seq_len'], cfg['input_size']), lambda b: (b, 0, 0))

    kern = functools.partial(_fused_ae_kernel, n_enc=n_enc, n_dec=n_dec, sigma=sigma)
    return pl.pallas_call(
        kern,
        grid=(B,),
        in_specs=in_specs,
        out_specs=out_spec,
        out_shape=out_shape,
        compiler_params=pltpu.CompilerParams(dimension_semantics=("parallel",)),
    )(x, eps, *flat_params)


# ------------------------- pure-JAX reference (for a self-check) -------------------------

def _ref_forward(params, x, noise_key, cfg):
    stride, padding, K = cfg['stride'], cfg['padding'], cfg['kernel_size']
    sigma = _noise_sigma(cfg['timesteps'])
    eps = jax.random.normal(noise_key, x.shape, dtype=x.dtype)
    h = x + sigma * eps
    for W, b in params['enc_blocks']:
        B, L, C_in = h.shape
        C_out = W.shape[0]
        if padding:
            h = jnp.pad(h, ((0, 0), (padding, padding), (0, 0)))
            L += 2 * padding
        L_out = (L - K) // stride + 1
        patches = jnp.stack([h[:, k:k + stride * L_out:stride, :] for k in range(K)], axis=2)
        patches = patches.reshape(B * L_out, K * C_in)
        W2 = jnp.transpose(W, (2, 1, 0)).reshape(K * C_in, C_out)
        h = jax.nn.relu(patches @ W2 + b).reshape(B, L_out, C_out)
    h = jnp.max(h, axis=1)
    Wc, bc = params['enc_conv1x1']
    h = h @ Wc[:, :, 0].T + bc
    Wu, bu = params['dec_upsample']
    h = h[:, None, :] * Wu[None, :, :] + bu.reshape(1, -1, 1)      # (B, Lc, emb)
    for (W, b), op in zip(params['dec_blocks'], params['dec_output_padding']):
        B, L_in, _ = h.shape
        C_out = W.shape[1]
        L_out = (L_in - 1) * stride - 2 * padding + K + op
        y = jnp.zeros((B, L_out, C_out), h.dtype)
        for k in range(K):
            Pk = h @ W[:, :, k]
            for l in range(L_in):
                t = l * stride + k - padding
                if 0 <= t < L_out:
                    y = y.at[:, t, :].add(Pk[:, l, :])
        h = jax.nn.relu(y + b)
    Wc2, bc2 = params['dec_conv1x1']
    return h @ Wc2[:, :, 0].T + bc2


# ------------------------- main -------------------------

if __name__ == "__main__":
    jax.config.update("jax_default_matmul_precision", "highest")

    cfg = dict(input_size=4, num_filters=[8, 16], embedding_dim=32,
               seq_len=16, kernel_size=3, stride=2, padding=0,
               dropout=0.0, timesteps=100)

    key = jax.random.PRNGKey(0)
    pkey, xkey, nkey = jax.random.split(key, 3)
    params = init_params(pkey, cfg)
    flat_params = pack_params(params, cfg)

    B = 2
    x = jax.random.normal(xkey, (B, cfg['seq_len'], cfg['input_size']), jnp.float32)

    fwd = jax.jit(lambda p, xx, k: diffusion_ae_forward(p, xx, k, cfg))
    out = fwd(flat_params, x, nkey)
    out = jax.block_until_ready(out)

    assert out.shape == (B, cfg['seq_len'], cfg['input_size']), out.shape
    assert bool(jnp.all(jnp.isfinite(out)))

    # Cross-check the fused kernel against a plain-JAX replica of the pipeline.
    ref = jax.block_until_ready(_ref_forward(params, x, nkey, cfg))
    assert bool(jnp.allclose(out, ref, atol=5e-3, rtol=5e-3)), float(jnp.max(jnp.abs(out - ref)))

    # TODO(synk): exact bitwise parity with torch's sequential T-step RNG noise loop is
    # not reproducible; the schedule is collapsed to a single N(0, ||schedule||_2) draw.
    print("KERNEL_OK")
</pallas_src>

<mosaic_0001>
module attributes {stable_mosaic.version = 11 : i64} {
  func.func @_fused_ae_kernel(%arg0: i32, %arg1: memref<1x16x4xf32, #tpu.memory_space<vmem>>, %arg2: memref<1x16x4xf32, #tpu.memory_space<vmem>>, %arg3: memref<3x7x16xf32, #tpu.memory_space<vmem>>, %arg4: memref<3x4x8xf32, #tpu.memory_space<vmem>>, %arg5: memref<1x8xf32, #tpu.memory_space<vmem>>, %arg6: memref<3x3x7xf32, #tpu.memory_space<vmem>>, %arg7: memref<3x8x16xf32, #tpu.memory_space<vmem>>, %arg8: memref<1x16xf32, #tpu.memory_space<vmem>>, %arg9: memref<16x32xf32, #tpu.memory_space<vmem>>, %arg10: memref<1x32xf32, #tpu.memory_space<vmem>>, %arg11: memref<3x1xf32, #tpu.memory_space<vmem>>, %arg12: memref<3x1xf32, #tpu.memory_space<vmem>>, %arg13: memref<3x7x3xf32, #tpu.memory_space<vmem>>, %arg14: memref<3x32x16xf32, #tpu.memory_space<vmem>>, %arg15: memref<1x16xf32, #tpu.memory_space<vmem>>, %arg16: memref<3x16x7xf32, #tpu.memory_space<vmem>>, %arg17: memref<3x16x8xf32, #tpu.memory_space<vmem>>, %arg18: memref<1x8xf32, #tpu.memory_space<vmem>>, %arg19: memref<8x4xf32, #tpu.memory_space<vmem>>, %arg20: memref<1x4xf32, #tpu.memory_space<vmem>>, %arg21: memref<1x16x4xf32, #tpu.memory_space<vmem>>) attributes {dimension_semantics = [#tpu.dimension_semantics<parallel>], iteration_bounds = array<i64: 2>, scalar_prefetch = 0 : i64, scratch_operands = 0 : i64, tpu.core_type = #tpu.core_type<tc>, window_params = [{transform_indices = @transform_0, window_bounds = array<i64: 1, 16, 4>}, {transform_indices = @transform_1, window_bounds = array<i64: 1, 16, 4>}, {pipeline_mode = #tpu.pipeline_mode<synchronous>, transform_indices = @transform_2, window_bounds = array<i64: 3, 7, 16>}, {pipeline_mode = #tpu.pipeline_mode<synchronous>, transform_indices = @transform_3, window_bounds = array<i64: 3, 4, 8>}, {pipeline_mode = #tpu.pipeline_mode<synchronous>, transform_indices = @transform_4, window_bounds = array<i64: 1, 8>}, {pipeline_mode = #tpu.pipeline_mode<synchronous>, transform_indices = @transform_5, window_bounds = array<i64: 3, 3, 7>}, {pipeline_mode = #tpu.pipeline_mode<synchronous>, transform_indices = @transform_6, window_bounds = array<i64: 3, 8, 16>}, {pipeline_mode = #tpu.pipeline_mode<synchronous>, transform_indices = @transform_7, window_bounds = array<i64: 1, 16>}, {pipeline_mode = #tpu.pipeline_mode<synchronous>, transform_indices = @transform_8, window_bounds = array<i64: 16, 32>}, {pipeline_mode = #tpu.pipeline_mode<synchronous>, transform_indices = @transform_9, window_bounds = array<i64: 1, 32>}, {pipeline_mode = #tpu.pipeline_mode<synchronous>, transform_indices = @transform_10, window_bounds = array<i64: 3, 1>}, {pipeline_mode = #tpu.pipeline_mode<synchronous>, transform_indices = @transform_11, window_bounds = array<i64: 3, 1>}, {pipeline_mode = #tpu.pipeline_mode<synchronous>, transform_indices = @transform_12, window_bounds = array<i64: 3, 7, 3>}, {pipeline_mode = #tpu.pipeline_mode<synchronous>, transform_indices = @transform_13, window_bounds = array<i64: 3, 32, 16>}, {pipeline_mode = #tpu.pipeline_mode<synchronous>, transform_indices = @transform_14, window_bounds = array<i64: 1, 16>}, {pipeline_mode = #tpu.pipeline_mode<synchronous>, transform_indices = @transform_15, window_bounds = array<i64: 3, 16, 7>}, {pipeline_mode = #tpu.pipeline_mode<synchronous>, transform_indices = @transform_16, window_bounds = array<i64: 3, 16, 8>}, {pipeline_mode = #tpu.pipeline_mode<synchronous>, transform_indices = @transform_17, window_bounds = array<i64: 1, 8>}, {pipeline_mode = #tpu.pipeline_mode<synchronous>, transform_indices = @transform_18, window_bounds = array<i64: 8, 4>}, {pipeline_mode = #tpu.pipeline_mode<synchronous>, transform_indices = @transform_19, window_bounds = array<i64: 1, 4>}, {transform_indices = @transform_20, window_bounds = array<i64: 1, 16, 4>}]} {
    %c0 = arith.constant 0 : index
    %c0_0 = arith.constant 0 : index
    %c0_1 = arith.constant 0 : index
    %0 = vector.load %arg1[%c0, %c0_0, %c0_1] : memref<1x16x4xf32, #tpu.memory_space<vmem>>, vector<1x16x4xf32>
    %1 = vector.shape_cast %0 : vector<1x16x4xf32> to vector<16x4xf32>
    %c0_2 = arith.constant 0 : index
    %c0_3 = arith.constant 0 : index
    %c0_4 = arith.constant 0 : index
    %2 = vector.load %arg2[%c0_2, %c0_3, %c0_4] : memref<1x16x4xf32, #tpu.memory_space<vmem>>, vector<1x16x4xf32>
    %3 = vector.shape_cast %2 : vector<1x16x4xf32> to vector<16x4xf32>
    %cst = arith.constant 0.116047412 : f32
    %4 = vector.broadcast %cst : f32 to vector<16x4xf32>
    %5 = arith.mulf %4, %3 : vector<16x4xf32>
    %6 = arith.addf %1, %5 : vector<16x4xf32>
    %c0_5 = arith.constant 0 : index
    %c0_6 = arith.constant 0 : index
    %c0_7 = arith.constant 0 : index
    %7 = vector.load %arg4[%c0_5, %c0_6, %c0_7] : memref<3x4x8xf32, #tpu.memory_space<vmem>>, vector<1x4x8xf32>
    %8 = vector.shape_cast %7 : vector<1x4x8xf32> to vector<4x8xf32>
    %cst_8 = arith.constant dense<0.000000e+00> : vector<16x8xf32>
    %9 = tpu.matmul %6, %8, %cst_8 {dimension_numbers = #tpu.dot_dimension_numbers<[1], [0], [0], [1], [0, 0, 1, 1], [], []>, precision = #tpu.contract_precision<fp32>} : vector<16x4xf32>, vector<4x8xf32>, vector<16x8xf32> -> vector<16x8xf32>
    %c0_9 = arith.constant 0 : index
    %c0_10 = arith.constant 0 : index
    %c0_11 = arith.constant 0 : index
    %10 = vector.load %arg3[%c0_9, %c0_10, %c0_11] : memref<3x7x16xf32, #tpu.memory_space<vmem>>, vector<1x7x16xf32>
    %11 = vector.shape_cast %10 : vector<1x7x16xf32> to vector<7x16xf32>
    %cst_12 = arith.constant dense<0.000000e+00> : vector<7x8xf32>
    %12 = tpu.matmul %11, %9, %cst_12 {dimension_numbers = #tpu.dot_dimension_numbers<[1], [0], [0], [1], [0, 0, 1, 1], [], []>, precision = #tpu.contract_precision<fp32>} : vector<7x16xf32>, vector<16x8xf32>, vector<7x8xf32> -> vector<7x8xf32>
    %c1 = arith.constant 1 : index
    %c0_13 = arith.constant 0 : index
    %c0_14 = arith.constant 0 : index
    %13 = vector.load %arg4[%c1, %c0_13, %c0_14] : memref<3x4x8xf32, #tpu.memory_space<vmem>>, vector<1x4x8xf32>
    %14 = vector.shape_cast %13 : vector<1x4x8xf32> to vector<4x8xf32>
    %cst_15 = arith.constant dense<0.000000e+00> : vector<16x8xf32>
    %15 = tpu.matmul %6, %14, %cst_15 {dimension_numbers = #tpu.dot_dimension_numbers<[1], [0], [0], [1], [0, 0, 1, 1], [], []>, precision = #tpu.contract_precision<fp32>} : vector<16x4xf32>, vector<4x8xf32>, vector<16x8xf32> -> vector<16x8xf32>
    %c1_16 = arith.constant 1 : index
    %c0_17 = arith.constant 0 : index
    %c0_18 = arith.constant 0 : index
    %16 = vector.load %arg3[%c1_16, %c0_17, %c0_18] : memref<3x7x16xf32, #tpu.memory_space<vmem>>, vector<1x7x16xf32>
    %17 = vector.shape_cast %16 : vector<1x7x16xf32> to vector<7x16xf32>
    %cst_19 = arith.constant dense<0.000000e+00> : vector<7x8xf32>
    %18 = tpu.matmul %17, %15, %cst_19 {dimension_numbers = #tpu.dot_dimension_numbers<[1], [0], [0], [1], [0, 0, 1, 1], [], []>, precision = #tpu.contract_precision<fp32>} : vector<7x16xf32>, vector<16x8xf32>, vector<7x8xf32> -> vector<7x8xf32>
    %19 = arith.addf %12, %18 : vector<7x8xf32>
    %c2 = arith.constant 2 : index
    %c0_20 = arith.constant 0 : index
    %c0_21 = arith.constant 0 : index
    %20 = vector.load %arg4[%c2, %c0_20, %c0_21] : memref<3x4x8xf32, #tpu.memory_space<vmem>>, vector<1x4x8xf32>
    %21 = vector.shape_cast %20 : vector<1x4x8xf32> to vector<4x8xf32>
    %cst_22 = arith.constant dense<0.000000e+00> : vector<16x8xf32>
    %22 = tpu.matmul %6, %21, %cst_22 {dimension_numbers = #tpu.dot_dimension_numbers<[1], [0], [0], [1], [0, 0, 1, 1], [], []>, precision = #tpu.contract_precision<fp32>} : vector<16x4xf32>, vector<4x8xf32>, vector<16x8xf32> -> vector<16x8xf32>
    %c2_23 = arith.constant 2 : index
    %c0_24 = arith.constant 0 : index
    %c0_25 = arith.constant 0 : index
    %23 = vector.load %arg3[%c2_23, %c0_24, %c0_25] : memref<3x7x16xf32, #tpu.memory_space<vmem>>, vector<1x7x16xf32>
    %24 = vector.shape_cast %23 : vector<1x7x16xf32> to vector<7x16xf32>
    %cst_26 = arith.constant dense<0.000000e+00> : vector<7x8xf32>
    %25 = tpu.matmul %24, %22, %cst_26 {dimension_numbers = #tpu.dot_dimension_numbers<[1], [0], [0], [1], [0, 0, 1, 1], [], []>, precision = #tpu.contract_precision<fp32>} : vector<7x16xf32>, vector<16x8xf32>, vector<7x8xf32> -> vector<7x8xf32>
    %26 = arith.addf %19, %25 : vector<7x8xf32>
    %c0_27 = arith.constant 0 : index
    %c0_28 = arith.constant 0 : index
    %27 = vector.load %arg5[%c0_27, %c0_28] : memref<1x8xf32, #tpu.memory_space<vmem>>, vector<1x8xf32>
    %28 = vector.broadcast %27 : vector<1x8xf32> to vector<7x8xf32>
    %29 = arith.addf %26, %28 : vector<7x8xf32>
    %cst_29 = arith.constant 0.000000e+00 : f32
    %30 = vector.broadcast %cst_29 : f32 to vector<7x8xf32>
    %31 = arith.maximumf %29, %30 : vector<7x8xf32>
    %c0_30 = arith.constant 0 : index
    %c0_31 = arith.constant 0 : index
    %c0_32 = arith.constant 0 : index
    %32 = vector.load %arg7[%c0_30, %c0_31, %c0_32] : memref<3x8x16xf32, #tpu.memory_space<vmem>>, vector<1x8x16xf32>
    %33 = vector.shape_cast %32 : vector<1x8x16xf32> to vector<8x16xf32>
    %cst_33 = arith.constant dense<0.000000e+00> : vector<7x16xf32>
    %34 = tpu.matmul %31, %33, %cst_33 {dimension_numbers = #tpu.dot_dimension_numbers<[1], [0], [0], [1], [0, 0, 1, 1], [], []>, precision = #tpu.contract_precision<fp32>} : vector<7x8xf32>, vector<8x16xf32>, vector<7x16xf32> -> vector<7x16xf32>
    %c0_34 = arith.constant 0 : index
    %c0_35 = arith.constant 0 : index
    %c0_36 = arith.constant 0 : index
    %35 = vector.load %arg6[%c0_34, %c0_35, %c0_36] : memref<3x3x7xf32, #tpu.memory_space<vmem>>, vector<1x3x7xf32>
    %36 = vector.shape_cast %35 : vector<1x3x7xf32> to vector<3x7xf32>
    %cst_37 = arith.constant dense<0.000000e+00> : vector<3x16xf32>
    %37 = tpu.matmul %36, %34, %cst_37 {dimension_numbers = #tpu.dot_dimension_numbers<[1], [0], [0], [1], [0, 0, 1, 1], [], []>, precision = #tpu.contract_precision<fp32>} : vector<3x7xf32>, vector<7x16xf32>, vector<3x16xf32> -> vector<3x16xf32>
    %c1_38 = arith.constant 1 : index
    %c0_39 = arith.constant 0 : index
    %c0_40 = arith.constant 0 : index
    %38 = vector.load %arg7[%c1_38, %c0_39, %c0_40] : memref<3x8x16xf32, #tpu.memory_space<vmem>>, vector<1x8x16xf32>
    %39 = vector.shape_cast %38 : vector<1x8x16xf32> to vector<8x16xf32>
    %cst_41 = arith.constant dense<0.000000e+00> : vector<7x16xf32>
    %40 = tpu.matmul %31, %39, %cst_41 {dimension_numbers = #tpu.dot_dimension_numbers<[1], [0], [0], [1], [0, 0, 1, 1], [], []>, precision = #tpu.contract_precision<fp32>} : vector<7x8xf32>, vector<8x16xf32>, vector<7x16xf32> -> vector<7x16xf32>
    %c1_42 = arith.constant 1 : index
    %c0_43 = arith.constant 0 : index
    %c0_44 = arith.constant 0 : index
    %41 = vector.load %arg6[%c1_42, %c0_43, %c0_44] : memref<3x3x7xf32, #tpu.memory_space<vmem>>, vector<1x3x7xf32>
    %42 = vector.shape_cast %41 : vector<1x3x7xf32> to vector<3x7xf32>
    %cst_45 = arith.constant dense<0.000000e+00> : vector<3x16xf32>
    %43 = tpu.matmul %42, %40, %cst_45 {dimension_numbers = #tpu.dot_dimension_numbers<[1], [0], [0], [1], [0, 0, 1, 1], [], []>, precision = #tpu.contract_precision<fp32>} : vector<3x7xf32>, vector<7x16xf32>, vector<3x16xf32> -> vector<3x16xf32>
    %44 = arith.addf %37, %43 : vector<3x16xf32>
    %c2_46 = arith.constant 2 : index
    %c0_47 = arith.constant 0 : index
    %c0_48 = arith.constant 0 : index
    %45 = vector.load %arg7[%c2_46, %c0_47, %c0_48] : memref<3x8x16xf32, #tpu.memory_space<vmem>>, vector<1x8x16xf32>
    %46 = vector.shape_cast %45 : vector<1x8x16xf32> to vector<8x16xf32>
    %cst_49 = arith.constant dense<0.000000e+00> : vector<7x16xf32>
    %47 = tpu.matmul %31, %46, %cst_49 {dimension_numbers = #tpu.dot_dimension_numbers<[1], [0], [0], [1], [0, 0, 1, 1], [], []>, precision = #tpu.contract_precision<fp32>} : vector<7x8xf32>, vector<8x16xf32>, vector<7x16xf32> -> vector<7x16xf32>
    %c2_50 = arith.constant 2 : index
    %c0_51 = arith.constant 0 : index
    %c0_52 = arith.constant 0 : index
    %48 = vector.load %arg6[%c2_50, %c0_51, %c0_52] : memref<3x3x7xf32, #tpu.memory_space<vmem>>, vector<1x3x7xf32>
    %49 = vector.shape_cast %48 : vector<1x3x7xf32> to vector<3x7xf32>
    %cst_53 = arith.constant dense<0.000000e+00> : vector<3x16xf32>
    %50 = tpu.matmul %49, %47, %cst_53 {dimension_numbers = #tpu.dot_dimension_numbers<[1], [0], [0], [1], [0, 0, 1, 1], [], []>, precision = #tpu.contract_precision<fp32>} : vector<3x7xf32>, vector<7x16xf32>, vector<3x16xf32> -> vector<3x16xf32>
    %51 = arith.addf %44, %50 : vector<3x16xf32>
    %c0_54 = arith.constant 0 : index
    %c0_55 = arith.constant 0 : index
    %52 = vector.load %arg8[%c0_54, %c0_55] : memref<1x16xf32, #tpu.memory_space<vmem>>, vector<1x16xf32>
    %53 = vector.broadcast %52 : vector<1x16xf32> to vector<3x16xf32>
    %54 = arith.addf %51, %53 : vector<3x16xf32>
    %cst_56 = arith.constant 0.000000e+00 : f32
    %55 = vector.broadcast %cst_56 : f32 to vector<3x16xf32>
    %56 = arith.maximumf %54, %55 : vector<3x16xf32>
    %cst_57 = arith.constant dense<0xFF800000> : vector<16xf32>
    %57 = vector.multi_reduction <maximumf>, %56, %cst_57 [0] : vector<3x16xf32> to vector<16xf32>
    %58 = vector.shape_cast %57 : vector<16xf32> to vector<1x16xf32>
    %c0_58 = arith.constant 0 : index
    %c0_59 = arith.constant 0 : index
    %59 = vector.load %arg9[%c0_58, %c0_59] : memref<16x32xf32, #tpu.memory_space<vmem>>, vector<16x32xf32>
    %cst_60 = arith.constant dense<0.000000e+00> : vector<1x32xf32>
    %60 = tpu.matmul %58, %59, %cst_60 {dimension_numbers = #tpu.dot_dimension_numbers<[1], [0], [0], [1], [0, 0, 1, 1], [], []>, precision = #tpu.contract_precision<fp32>} : vector<1x16xf32>, vector<16x32xf32>, vector<1x32xf32> -> vector<1x32xf32>
    %c0_61 = arith.constant 0 : index
    %c0_62 = arith.constant 0 : index
    %61 = vector.load %arg10[%c0_61, %c0_62] : memref<1x32xf32, #tpu.memory_space<vmem>>, vector<1x32xf32>
    %62 = arith.addf %60, %61 : vector<1x32xf32>
    %c0_63 = arith.constant 0 : index
    %c0_64 = arith.constant 0 : index
    %63 = vector.load %arg11[%c0_63, %c0_64] : memref<3x1xf32, #tpu.memory_space<vmem>>, vector<3x1xf32>
    %64 = vector.broadcast %63 : vector<3x1xf32> to vector<3x32xf32>
    %65 = vector.broadcast %62 : vector<1x32xf32> to vector<3x32xf32>
    %66 = arith.mulf %64, %65 : vector<3x32xf32>
    %c0_65 = arith.constant 0 : index
    %c0_66 = arith.constant 0 : index
    %67 = vector.load %arg12[%c0_65, %c0_66] : memref<3x1xf32, #tpu.memory_space<vmem>>, vector<3x1xf32>
    %68 = vector.broadcast %67 : vector<3x1xf32> to vector<3x32xf32>
    %69 = arith.addf %66, %68 : vector<3x32xf32>
    %c0_67 = arith.constant 0 : index
    %c0_68 = arith.constant 0 : index
    %c0_69 = arith.constant 0 : index
    %70 = vector.load %arg14[%c0_67, %c0_68, %c0_69] : memref<3x32x16xf32, #tpu.memory_space<vmem>>, vector<1x32x16xf32>
    %71 = vector.shape_cast %70 : vector<1x32x16xf32> to vector<32x16xf32>
    %cst_70 = arith.constant dense<0.000000e+00> : vector<3x16xf32>
    %72 = tpu.matmul %69, %71, %cst_70 {dimension_numbers = #tpu.dot_dimension_numbers<[1], [0], [0], [1], [0, 0, 1, 1], [], []>, precision = #tpu.contract_precision<fp32>} : vector<3x32xf32>, vector<32x16xf32>, vector<3x16xf32> -> vector<3x16xf32>
    %c0_71 = arith.constant 0 : index
    %c0_72 = arith.constant 0 : index
    %c0_73 = arith.constant 0 : index
    %73 = vector.load %arg13[%c0_71, %c0_72, %c0_73] : memref<3x7x3xf32, #tpu.memory_space<vmem>>, vector<1x7x3xf32>
    %74 = vector.shape_cast %73 : vector<1x7x3xf32> to vector<7x3xf32>
    %cst_74 = arith.constant dense<0.000000e+00> : vector<7x16xf32>
    %75 = tpu.matmul %74, %72, %cst_74 {dimension_numbers = #tpu.dot_dimension_numbers<[1], [0], [0], [1], [0, 0, 1, 1], [], []>, precision = #tpu.contract_precision<fp32>} : vector<7x3xf32>, vector<3x16xf32>, vector<7x16xf32> -> vector<7x16xf32>
    %c1_75 = arith.constant 1 : index
    %c0_76 = arith.constant 0 : index
    %c0_77 = arith.constant 0 : index
    %76 = vector.load %arg14[%c1_75, %c0_76, %c0_77] : memref<3x32x16xf32, #tpu.memory_space<vmem>>, vector<1x32x16xf32>
    %77 = vector.shape_cast %76 : vector<1x32x16xf32> to vector<32x16xf32>
    %cst_78 = arith.constant dense<0.000000e+00> : vector<3x16xf32>
    %78 = tpu.matmul %69, %77, %cst_78 {dimension_numbers = #tpu.dot_dimension_numbers<[1], [0], [0], [1], [0, 0, 1, 1], [], []>, precision = #tpu.contract_precision<fp32>} : vector<3x32xf32>, vector<32x16xf32>, vector<3x16xf32> -> vector<3x16xf32>
    %c1_79 = arith.constant 1 : index
    %c0_80 = arith.constant 0 : index
    %c0_81 = arith.constant 0 : index
    %79 = vector.load %arg13[%c1_79, %c0_80, %c0_81] : memref<3x7x3xf32, #tpu.memory_space<vmem>>, vector<1x7x3xf32>
    %80 = vector.shape_cast %79 : vector<1x7x3xf32> to vector<7x3xf32>
    %cst_82 = arith.constant dense<0.000000e+00> : vector<7x16xf32>
    %81 = tpu.matmul %80, %78, %cst_82 {dimension_numbers = #tpu.dot_dimension_numbers<[1], [0], [0], [1], [0, 0, 1, 1], [], []>, precision = #tpu.contract_precision<fp32>} : vector<7x3xf32>, vector<3x16xf32>, vector<7x16xf32> -> vector<7x16xf32>
    %82 = arith.addf %75, %81 : vector<7x16xf32>
    %c2_83 = arith.constant 2 : index
    %c0_84 = arith.constant 0 : index
    %c0_85 = arith.constant 0 : index
    %83 = vector.load %arg14[%c2_83, %c0_84, %c0_85] : memref<3x32x16xf32, #tpu.memory_space<vmem>>, vector<1x32x16xf32>
    %84 = vector.shape_cast %83 : vector<1x32x16xf32> to vector<32x16xf32>
    %cst_86 = arith.constant dense<0.000000e+00> : vector<3x16xf32>
    %85 = tpu.matmul %69, %84, %cst_86 {dimension_numbers = #tpu.dot_dimension_numbers<[1], [0], [0], [1], [0, 0, 1, 1], [], []>, precision = #tpu.contract_precision<fp32>} : vector<3x32xf32>, vector<32x16xf32>, vector<3x16xf32> -> vector<3x16xf32>
    %c2_87 = arith.constant 2 : index
    %c0_88 = arith.constant 0 : index
    %c0_89 = arith.constant 0 : index
    %86 = vector.load %arg13[%c2_87, %c0_88, %c0_89] : memref<3x7x3xf32, #tpu.memory_space<vmem>>, vector<1x7x3xf32>
    %87 = vector.shape_cast %86 : vector<1x7x3xf32> to vector<7x3xf32>
    %cst_90 = arith.constant dense<0.000000e+00> : vector<7x16xf32>
    %88 = tpu.matmul %87, %85, %cst_90 {dimension_numbers = #tpu.dot_dimension_numbers<[1], [0], [0], [1], [0, 0, 1, 1], [], []>, precision = #tpu.contract_precision<fp32>} : vector<7x3xf32>, vector<3x16xf32>, vector<7x16xf32> -> vector<7x16xf32>
    %89 = arith.addf %82, %88 : vector<7x16xf32>
    %c0_91 = arith.constant 0 : index
    %c0_92 = arith.constant 0 : index
    %90 = vector.load %arg15[%c0_91, %c0_92] : memref<1x16xf32, #tpu.memory_space<vmem>>, vector<1x16xf32>
    %91 = vector.broadcast %90 : vector<1x16xf32> to vector<7x16xf32>
    %92 = arith.addf %89, %91 : vector<7x16xf32>
    %cst_93 = arith.constant 0.000000e+00 : f32
    %93 = vector.broadcast %cst_93 : f32 to vector<7x16xf32>
    %94 = arith.maximumf %92, %93 : vector<7x16xf32>
    %c0_94 = arith.constant 0 : index
    %c0_95 = arith.constant 0 : index
    %c0_96 = arith.constant 0 : index
    %95 = vector.load %arg17[%c0_94, %c0_95, %c0_96] : memref<3x16x8xf32, #tpu.memory_space<vmem>>, vector<1x16x8xf32>
    %96 = vector.shape_cast %95 : vector<1x16x8xf32> to vector<16x8xf32>
    %cst_97 = arith.constant dense<0.000000e+00> : vector<7x8xf32>
    %97 = tpu.matmul %94, %96, %cst_97 {dimension_numbers = #tpu.dot_dimension_numbers<[1], [0], [0], [1], [0, 0, 1, 1], [], []>, precision = #tpu.contract_precision<fp32>} : vector<7x16xf32>, vector<16x8xf32>, vector<7x8xf32> -> vector<7x8xf32>
    %c0_98 = arith.constant 0 : index
    %c0_99 = arith.constant 0 : index
    %c0_100 = arith.constant 0 : index
    %98 = vector.load %arg16[%c0_98, %c0_99, %c0_100] : memref<3x16x7xf32, #tpu.memory_space<vmem>>, vector<1x16x7xf32>
    %99 = vector.shape_cast %98 : vector<1x16x7xf32> to vector<16x7xf32>
    %cst_101 = arith.constant dense<0.000000e+00> : vector<16x8xf32>
    %100 = tpu.matmul %99, %97, %cst_101 {dimension_numbers = #tpu.dot_dimension_numbers<[1], [0], [0], [1], [0, 0, 1, 1], [], []>, precision = #tpu.contract_precision<fp32>} : vector<16x7xf32>, vector<7x8xf32>, vector<16x8xf32> -> vector<16x8xf32>
    %c1_102 = arith.constant 1 : index
    %c0_103 = arith.constant 0 : index
    %c0_104 = arith.constant 0 : index
    %101 = vector.load %arg17[%c1_102, %c0_103, %c0_104] : memref<3x16x8xf32, #tpu.memory_space<vmem>>, vector<1x16x8xf32>
    %102 = vector.shape_cast %101 : vector<1x16x8xf32> to vector<16x8xf32>
    %cst_105 = arith.constant dense<0.000000e+00> : vector<7x8xf32>
    %103 = tpu.matmul %94, %102, %cst_105 {dimension_numbers = #tpu.dot_dimension_numbers<[1], [0], [0], [1], [0, 0, 1, 1], [], []>, precision = #tpu.contract_precision<fp32>} : vector<7x16xf32>, vector<16x8xf32>, vector<7x8xf32> -> vector<7x8xf32>
    %c1_106 = arith.constant 1 : index
    %c0_107 = arith.constant 0 : index
    %c0_108 = arith.constant 0 : index
    %104 = vector.load %arg16[%c1_106, %c0_107, %c0_108] : memref<3x16x7xf32, #tpu.memory_space<vmem>>, vector<1x16x7xf32>
    %105 = vector.shape_cast %104 : vector<1x16x7xf32> to vector<16x7xf32>
    %cst_109 = arith.constant dense<0.000000e+00> : vector<16x8xf32>
    %106 = tpu.matmul %105, %103, %cst_109 {dimension_numbers = #tpu.dot_dimension_numbers<[1], [0], [0], [1], [0, 0, 1, 1], [], []>, precision = #tpu.contract_precision<fp32>} : vector<16x7xf32>, vector<7x8xf32>, vector<16x8xf32> -> vector<16x8xf32>
    %107 = arith.addf %100, %106 : vector<16x8xf32>
    %c2_110 = arith.constant 2 : index
    %c0_111 = arith.constant 0 : index
    %c0_112 = arith.constant 0 : index
    %108 = vector.load %arg17[%c2_110, %c0_111, %c0_112] : memref<3x16x8xf32, #tpu.memory_space<vmem>>, vector<1x16x8xf32>
    %109 = vector.shape_cast %108 : vector<1x16x8xf32> to vector<16x8xf32>
    %cst_113 = arith.constant dense<0.000000e+00> : vector<7x8xf32>
    %110 = tpu.matmul %94, %109, %cst_113 {dimension_numbers = #tpu.dot_dimension_numbers<[1], [0], [0], [1], [0, 0, 1, 1], [], []>, precision = #tpu.contract_precision<fp32>} : vector<7x16xf32>, vector<16x8xf32>, vector<7x8xf32> -> vector<7x8xf32>
    %c2_114 = arith.constant 2 : index
    %c0_115 = arith.constant 0 : index
    %c0_116 = arith.constant 0 : index
    %111 = vector.load %arg16[%c2_114, %c0_115, %c0_116] : memref<3x16x7xf32, #tpu.memory_space<vmem>>, vector<1x16x7xf32>
    %112 = vector.shape_cast %111 : vector<1x16x7xf32> to vector<16x7xf32>
    %cst_117 = arith.constant dense<0.000000e+00> : vector<16x8xf32>
    %113 = tpu.matmul %112, %110, %cst_117 {dimension_numbers = #tpu.dot_dimension_numbers<[1], [0], [0], [1], [0, 0, 1, 1], [], []>, precision = #tpu.contract_precision<fp32>} : vector<16x7xf32>, vector<7x8xf32>, vector<16x8xf32> -> vector<16x8xf32>
    %114 = arith.addf %107, %113 : vector<16x8xf32>
    %c0_118 = arith.constant 0 : index
    %c0_119 = arith.constant 0 : index
    %115 = vector.load %arg18[%c0_118, %c0_119] : memref<1x8xf32, #tpu.memory_space<vmem>>, vector<1x8xf32>
    %116 = vector.broadcast %115 : vector<1x8xf32> to vector<16x8xf32>
    %117 = arith.addf %114, %116 : vector<16x8xf32>
    %cst_120 = arith.constant 0.000000e+00 : f32
    %118 = vector.broadcast %cst_120 : f32 to vector<16x8xf32>
    %119 = arith.maximumf %117, %118 : vector<16x8xf32>
    %c0_121 = arith.constant 0 : index
    %c0_122 = arith.constant 0 : index
    %120 = vector.load %arg19[%c0_121, %c0_122] : memref<8x4xf32, #tpu.memory_space<vmem>>, vector<8x4xf32>
    %cst_123 = arith.constant dense<0.000000e+00> : vector<16x4xf32>
    %121 = tpu.matmul %119, %120, %cst_123 {dimension_numbers = #tpu.dot_dimension_numbers<[1], [0], [0], [1], [0, 0, 1, 1], [], []>, precision = #tpu.contract_precision<fp32>} : vector<16x8xf32>, vector<8x4xf32>, vector<16x4xf32> -> vector<16x4xf32>
    %c0_124 = arith.constant 0 : index
    %c0_125 = arith.constant 0 : index
    %122 = vector.load %arg20[%c0_124, %c0_125] : memref<1x4xf32, #tpu.memory_space<vmem>>, vector<1x4xf32>
    %123 = vector.broadcast %122 : vector<1x4xf32> to vector<16x4xf32>
    %124 = arith.addf %121, %123 : vector<16x4xf32>
    %c0_126 = arith.constant 0 : index
    %c0_127 = arith.constant 0 : index
    %c0_128 = arith.constant 0 : index
    %125 = vector.load %arg21[%c0_126, %c0_127, %c0_128] : memref<1x16x4xf32, #tpu.memory_space<vmem>>, vector<1x16x4xf32>
    %126 = vector.shape_cast %125 : vector<1x16x4xf32> to vector<16x4xf32>
    %127 = vector.shape_cast %124 : vector<16x4xf32> to vector<1x16x4xf32>
    tpu.vector_store %arg21[%c0_126, %c0_127, %c0_128], %127 {strides = array<i32>} : memref<1x16x4xf32, #tpu.memory_space<vmem>>, vector<1x16x4xf32>,
    return
  }
  func.func @transform_0(%arg0: i32) -> (i32, i32, i32) {
    %c0_i32 = arith.constant 0 : i32
    %c0_i32_0 = arith.constant 0 : i32
    %c0_i32_1 = arith.constant 0 : i32
    return %arg0, %c0_i32, %c0_i32_0 : i32, i32, i32
  }
  func.func @transform_1(%arg0: i32) -> (i32, i32, i32) {
    %c0_i32 = arith.constant 0 : i32
    %c0_i32_0 = arith.constant 0 : i32
    %c0_i32_1 = arith.constant 0 : i32
    return %arg0, %c0_i32, %c0_i32_0 : i32, i32, i32
  }
  func.func @transform_2(%arg0: i32) -> (i32, i32, i32) {
    %c0_i32 = arith.constant 0 : i32
    %c0_i32_0 = arith.constant 0 : i32
    %c0_i32_1 = arith.constant 0 : i32
    %c0_i32_2 = arith.constant 0 : i32
    return %c0_i32, %c0_i32_0, %c0_i32_1 : i32, i32, i32
  }
  func.func @transform_3(%arg0: i32) -> (i32, i32, i32) {
    %c0_i32 = arith.constant 0 : i32
    %c0_i32_0 = arith.constant 0 : i32
    %c0_i32_1 = arith.constant 0 : i32
    %c0_i32_2 = arith.constant 0 : i32
    return %c0_i32, %c0_i32_0, %c0_i32_1 : i32, i32, i32
  }
  func.func @transform_4(%arg0: i32) -> (i32, i32) {
    %c0_i32 = arith.constant 0 : i32
    %c0_i32_0 = arith.constant 0 : i32
    %c0_i32_1 = arith.constant 0 : i32
    return %c0_i32, %c0_i32_0 : i32, i32
  }
  func.func @transform_5(%arg0: i32) -> (i32, i32, i32) {
    %c0_i32 = arith.constant 0 : i32
    %c0_i32_0 = arith.constant 0 : i32
    %c0_i32_1 = arith.constant 0 : i32
    %c0_i32_2 = arith.constant 0 : i32
    return %c0_i32, %c0_i32_0, %c0_i32_1 : i32, i32, i32
  }
  func.func @transform_6(%arg0: i32) -> (i32, i32, i32) {
    %c0_i32 = arith.constant 0 : i32
    %c0_i32_0 = arith.constant 0 : i32
    %c0_i32_1 = arith.constant 0 : i32
    %c0_i32_2 = arith.constant 0 : i32
    return %c0_i32, %c0_i32_0, %c0_i32_1 : i32, i32, i32
  }
  func.func @transform_7(%arg0: i32) -> (i32, i32) {
    %c0_i32 = arith.constant 0 : i32
    %c0_i32_0 = arith.constant 0 : i32
    %c0_i32_1 = arith.constant 0 : i32
    return %c0_i32, %c0_i32_0 : i32, i32
  }
  func.func @transform_8(%arg0: i32) -> (i32, i32) {
    %c0_i32 = arith.constant 0 : i32
    %c0_i32_0 = arith.constant 0 : i32
    %c0_i32_1 = arith.constant 0 : i32
    return %c0_i32, %c0_i32_0 : i32, i32
  }
  func.func @transform_9(%arg0: i32) -> (i32, i32) {
    %c0_i32 = arith.constant 0 : i32
    %c0_i32_0 = arith.constant 0 : i32
    %c0_i32_1 = arith.constant 0 : i32
    return %c0_i32, %c0_i32_0 : i32, i32
  }
  func.func @transform_10(%arg0: i32) -> (i32, i32) {
    %c0_i32 = arith.constant 0 : i32
    %c0_i32_0 = arith.constant 0 : i32
    %c0_i32_1 = arith.constant 0 : i32
    return %c0_i32, %c0_i32_0 : i32, i32
  }
  func.func @transform_11(%arg0: i32) -> (i32, i32) {
    %c0_i32 = arith.constant 0 : i32
    %c0_i32_0 = arith.constant 0 : i32
    %c0_i32_1 = arith.constant 0 : i32
    return %c0_i32, %c0_i32_0 : i32, i32
  }
  func.func @transform_12(%arg0: i32) -> (i32, i32, i32) {
    %c0_i32 = arith.constant 0 : i32
    %c0_i32_0 = arith.constant 0 : i32
    %c0_i32_1 = arith.constant 0 : i32
    %c0_i32_2 = arith.constant 0 : i32
    return %c0_i32, %c0_i32_0, %c0_i32_1 : i32, i32, i32
  }
  func.func @transform_13(%arg0: i32) -> (i32, i32, i32) {
    %c0_i32 = arith.constant 0 : i32
    %c0_i32_0 = arith.constant 0 : i32
    %c0_i32_1 = arith.constant 0 : i32
    %c0_i32_2 = arith.constant 0 : i32
    return %c0_i32, %c0_i32_0, %c0_i32_1 : i32, i32, i32
  }
  func.func @transform_14(%arg0: i32) -> (i32, i32) {
    %c0_i32 = arith.constant 0 : i32
    %c0_i32_0 = arith.constant 0 : i32
    %c0_i32_1 = arith.constant 0 : i32
    return %c0_i32, %c0_i32_0 : i32, i32
  }
  func.func @transform_15(%arg0: i32) -> (i32, i32, i32) {
    %c0_i32 = arith.constant 0 : i32
    %c0_i32_0 = arith.constant 0 : i32
    %c0_i32_1 = arith.constant 0 : i32
    %c0_i32_2 = arith.constant 0 : i32
    return %c0_i32, %c0_i32_0, %c0_i32_1 : i32, i32, i32
  }
  func.func @transform_16(%arg0: i32) -> (i32, i32, i32) {
    %c0_i32 = arith.constant 0 : i32
    %c0_i32_0 = arith.constant 0 : i32
    %c0_i32_1 = arith.constant 0 : i32
    %c0_i32_2 = arith.constant 0 : i32
    return %c0_i32, %c0_i32_0, %c0_i32_1 : i32, i32, i32
  }
  func.func @transform_17(%arg0: i32) -> (i32, i32) {
    %c0_i32 = arith.constant 0 : i32
    %c0_i32_0 = arith.constant 0 : i32
    %c0_i32_1 = arith.constant 0 : i32
    return %c0_i32, %c0_i32_0 : i32, i32
  }
  func.func @transform_18(%arg0: i32) -> (i32, i32) {
    %c0_i32 = arith.constant 0 : i32
    %c0_i32_0 = arith.constant 0 : i32
    %c0_i32_1 = arith.constant 0 : i32
    return %c0_i32, %c0_i32_0 : i32, i32
  }
  func.func @transform_19(%arg0: i32) -> (i32, i32) {
    %c0_i32 = arith.constant 0 : i32
    %c0_i32_0 = arith.constant 0 : i32
    %c0_i32_1 = arith.constant 0 : i32
    return %c0_i32, %c0_i32_0 : i32, i32
  }
  func.func @transform_20(%arg0: i32) -> (i32, i32, i32) {
    %c0_i32 = arith.constant 0 : i32
    %c0_i32_0 = arith.constant 0 : i32
    %c0_i32_1 = arith.constant 0 : i32
    return %arg0, %c0_i32, %c0_i32_0 : i32, i32, i32
  }
}

</mosaic_0001>

<llo_original>
// kernel: _lambda_.1
$region0: #{_lambda_.1}
  #allocation0 [shape = 'u32[]', space=smem, size = 0x4, offset = 0x4, fixed_abs, tag = 'smem constant byte address 0x4 - core index']
  #allocation1 [shape = 'u32[72,128]{1,0:T(1,128)}', space=vmem, size = 0x9000, scoped, tag = 'internal scratch']
  %s0 = inlined_call_operand.vmem [shape: f32[2,16,4], index: 0, kind: input, shape index: {}]
  %s1 = inlined_call_operand.vmem [shape: f32[2,16,4], index: 1, kind: input, shape index: {}]
  %s2 = inlined_call_operand.vmem [shape: f32[3,7,16], index: 2, kind: input, shape index: {}]
  %s3 = inlined_call_operand.vmem [shape: f32[3,4,8], index: 3, kind: input, shape index: {}]
  %s4 = inlined_call_operand.vmem [shape: f32[1,8], index: 4, kind: input, shape index: {}]
  %s5 = inlined_call_operand.vmem [shape: f32[3,3,7], index: 5, kind: input, shape index: {}]
  %s6 = inlined_call_operand.vmem [shape: f32[3,8,16], index: 6, kind: input, shape index: {}]
  %s7 = inlined_call_operand.vmem [shape: f32[1,16], index: 7, kind: input, shape index: {}]
  %s8 = inlined_call_operand.vmem [shape: f32[16,32], index: 8, kind: input, shape index: {}]
  %s9 = inlined_call_operand.vmem [shape: f32[1,32], index: 9, kind: input, shape index: {}]
  %s10 = inlined_call_operand.vmem [shape: f32[3,1], index: 10, kind: input, shape index: {}]
  %s11 = inlined_call_operand.vmem [shape: f32[3,1], index: 11, kind: input, shape index: {}]
  %s12 = inlined_call_operand.vmem [shape: f32[3,7,3], index: 12, kind: input, shape index: {}]
  %s13 = inlined_call_operand.vmem [shape: f32[3,32,16], index: 13, kind: input, shape index: {}]
  %s14 = inlined_call_operand.vmem [shape: f32[1,16], index: 14, kind: input, shape index: {}]
  %s15 = inlined_call_operand.vmem [shape: f32[3,16,7], index: 15, kind: input, shape index: {}]
  %s16 = inlined_call_operand.vmem [shape: f32[3,16,8], index: 16, kind: input, shape index: {}]
  %s17 = inlined_call_operand.vmem [shape: f32[1,8], index: 17, kind: input, shape index: {}]
  %s18 = inlined_call_operand.vmem [shape: f32[8,4], index: 18, kind: input, shape index: {}]
  %s19 = inlined_call_operand.vmem [shape: f32[1,4], index: 19, kind: input, shape index: {}]
  %s20 = inlined_call_operand.vmem [shape: f32[2,16,4], index: 20, kind: output, shape index: {}]
  %s21 = sld [smem:[#allocation0]]
  $region113: #{_lambda_.1} parent=0
    _
  %s23 = ssub.s32 1, %s21
  %s24 = scalar_select 0, %s23, %s21
  loop: start=0, step=1, limit=4
  $region2: #{_lambda_.1} parent=0 // loop_pre_header
    _
  $region3: #{_lambda_.1} parent=0 // loop_header
    %s26 = sphi 0, %s30
    %p27 = scmp.ge.s32.totalorder %s26, 4
    %s36 = sphi 0, %s38
    %s39 = sphi 0, %s36
    %s40 = sphi 0, %s39
    %s56 = sphi 0, %s40
    %s62 = sphi 0, %s64
    %s65 = sphi 0, %s62
    %s66 = sphi 0, %s65
    %s82 = sphi 0, %s66
    %s86 = sphi 0, %s86
    %s88 = sphi 0, %s86
    %s89 = sphi 0, %s88
    %s103 = sphi 0, %s89
    %s107 = sphi 0, %s107
    %s109 = sphi 0, %s107
    %s110 = sphi 0, %s109
    %s124 = sphi 0, %s110
    %s128 = sphi 0, %s128
    %s130 = sphi 0, %s128
    %s131 = sphi 0, %s130
    %s145 = sphi 0, %s131
    %s149 = sphi 0, %s149
    %s151 = sphi 0, %s149
    %s152 = sphi 0, %s151
    %s166 = sphi 0, %s152
    %s170 = sphi 0, %s170
    %s172 = sphi 0, %s170
    %s173 = sphi 0, %s172
    %s187 = sphi 0, %s173
    %s191 = sphi 0, %s191
    %s193 = sphi 0, %s191
    %s194 = sphi 0, %s193
    %s208 = sphi 0, %s194
    %s212 = sphi 0, %s212
    %s214 = sphi 0, %s212
    %s215 = sphi 0, %s214
    %s229 = sphi 0, %s215
    %s233 = sphi 0, %s233
    %s235 = sphi 0, %s233
    %s236 = sphi 0, %s235
    %s250 = sphi 0, %s236
    %s254 = sphi 0, %s254
    %s256 = sphi 0, %s254
    %s257 = sphi 0, %s256
    %s271 = sphi 0, %s257
    %s275 = sphi 0, %s275
    %s277 = sphi 0, %s275
    %s278 = sphi 0, %s277
    %s292 = sphi 0, %s278
    %s296 = sphi 0, %s296
    %s298 = sphi 0, %s296
    %s299 = sphi 0, %s298
    %s313 = sphi 0, %s299
    %s317 = sphi 0, %s317
    %s319 = sphi 0, %s317
    %s320 = sphi 0, %s319
    %s334 = sphi 0, %s320
    %s338 = sphi 0, %s338
    %s340 = sphi 0, %s338
    %s341 = sphi 0, %s340
    %s355 = sphi 0, %s341
    %s359 = sphi 0, %s359
    %s361 = sphi 0, %s359
    %s362 = sphi 0, %s361
    %s376 = sphi 0, %s362
    %s380 = sphi 0, %s380
    %s382 = sphi 0, %s380
    %s383 = sphi 0, %s382
    %s397 = sphi 0, %s383
    %s401 = sphi 0, %s401
    %s403 = sphi 0, %s401
    %s404 = sphi 0, %s403
    %s418 = sphi 0, %s404
    %s422 = sphi 0, %s422
    %s424 = sphi 0, %s422
    %s425 = sphi 0, %s424
    %s439 = sphi 0, %s425
    %s443 = sphi 0, %s443
    %s445 = sphi 0, %s443
    %s446 = sphi 0, %s445
    %s460 = sphi 0, %s446
    %s466 = sphi 0, %s468
    %s469 = sphi 0, %s466
    %s470 = sphi 0, %s469
    %s486 = sphi 0, %s470
  $region4: #{_lambda_.1} parent=0 // loop_header_branch
    %29 = sbr.rel (%p27) target = $region8
  $region5: #{_lambda_.1} parent=0 // loop_body
    %s31 = ssub.s32 %s26, 1
    %s32 = ssub.s32 %s26, 2
    %s33 = sadd.s32 %s26, 1
    %s34 = ssub.s32 %s26, %s33
    %p35 = scmp.eq.s32.totalorder %s34, 0
    %s37 = sadd.s32 %s36, 1
    %s38 = scalar_select %p35, %s36, %s37
    %p41 = pneg %p35
    %p42 = scmp.eq.s32.totalorder %s26, 1
    %p43 = por %p41, %p42
    %p44 = scmp.ne.s32.totalorder %s36, %s39
    %p45 = scmp.eq.s32.totalorder %s26, 0
    %p46 = por %p44, %p45
    %p47 = scmp.ne.s32.totalorder %s36, %s39
    %p48 = scmp.eq.s32.totalorder %s31, 1
    %p49 = por %p47, %p48
    %p50 = scmp.ne.s32.totalorder %s39, %s40
    %p51 = scmp.eq.s32.totalorder %s31, 0
    %p52 = por %p50, %p51
    %p53 = scmp.ne.s32.totalorder %s39, %s40
    %p54 = scmp.eq.s32.totalorder %s32, 1
    %p55 = por %p53, %p54
    %p57 = scmp.ne.s32.totalorder %s40, %s56
    %p58 = scmp.eq.s32.totalorder %s32, 0
    %p59 = por %p57, %p58
    %s60 = ssub.s32 %s26, %s33
    %p61 = scmp.eq.s32.totalorder %s60, 0
    %s63 = sadd.s32 %s62, 1
    %s64 = scalar_select %p61, %s62, %s63
    %p67 = pneg %p61
    %p68 = scmp.eq.s32.totalorder %s26, 1
    %p69 = por %p67, %p68
    %p70 = scmp.ne.s32.totalorder %s62, %s65
    %p71 = scmp.eq.s32.totalorder %s26, 0
    %p72 = por %p70, %p71
    %p73 = scmp.ne.s32.totalorder %s62, %s65
    %p74 = scmp.eq.s32.totalorder %s31, 1
    %p75 = por %p73, %p74
    %p76 = scmp.ne.s32.totalorder %s65, %s66
    %p77 = scmp.eq.s32.totalorder %s31, 0
    %p78 = por %p76, %p77
    %p79 = scmp.ne.s32.totalorder %s65, %s66
    %p80 = scmp.eq.s32.totalorder %s32, 1
    %p81 = por %p79, %p80
    %p83 = scmp.ne.s32.totalorder %s66, %s82
    %p84 = scmp.eq.s32.totalorder %s32, 0
    %p85 = por %p83, %p84
    %s87 = sadd.s32 %s86, 1
    %p90 = scmp.eq.s32.totalorder %s26, 1
    %p91 = scmp.ne.s32.totalorder %s86, %s88
    %p92 = scmp.eq.s32.totalorder %s26, 0
    %p93 = por %p91, %p92
    %p94 = scmp.ne.s32.totalorder %s86, %s88
    %p95 = scmp.eq.s32.totalorder %s31, 1
    %p96 = por %p94, %p95
    %p97 = scmp.ne.s32.totalorder %s88, %s89
    %p98 = scmp.eq.s32.totalorder %s31, 0
    %p99 = por %p97, %p98
    %p100 = scmp.ne.s32.totalorder %s88, %s89
    %p101 = scmp.eq.s32.totalorder %s32, 1
    %p102 = por %p100, %p101
    %p104 = scmp.ne.s32.totalorder %s89, %s103
    %p105 = scmp.eq.s32.totalorder %s32, 0
    %p106 = por %p104, %p105
    %s108 = sadd.s32 %s107, 1
    %p111 = scmp.eq.s32.totalorder %s26, 1
    %p112 = scmp.ne.s32.totalorder %s107, %s109
    %p113 = scmp.eq.s32.totalorder %s26, 0
    %p114 = por %p112, %p113
    %p115 = scmp.ne.s32.totalorder %s107, %s109
    %p116 = scmp.eq.s32.totalorder %s31, 1
    %p117 = por %p115, %p116
    %p118 = scmp.ne.s32.totalorder %s109, %s110
    %p119 = scmp.eq.s32.totalorder %s31, 0
    %p120 = por %p118, %p119
    %p121 = scmp.ne.s32.totalorder %s109, %s110
    %p122 = scmp.eq.s32.totalorder %s32, 1
    %p123 = por %p121, %p122
    %p125 = scmp.ne.s32.totalorder %s110, %s124
    %p126 = scmp.eq.s32.totalorder %s32, 0
    %p127 = por %p125, %p126
    %s129 = sadd.s32 %s128, 1
    %p132 = scmp.eq.s32.totalorder %s26, 1
    %p133 = scmp.ne.s32.totalorder %s128, %s130
    %p134 = scmp.eq.s32.totalorder %s26, 0
    %p135 = por %p133, %p134
    %p136 = scmp.ne.s32.totalorder %s128, %s130
    %p137 = scmp.eq.s32.totalorder %s31, 1
    %p138 = por %p136, %p137
    %p139 = scmp.ne.s32.totalorder %s130, %s131
    %p140 = scmp.eq.s32.totalorder %s31, 0
    %p141 = por %p139, %p140
    %p142 = scmp.ne.s32.totalorder %s130, %s131
    %p143 = scmp.eq.s32.totalorder %s32, 1
    %p144 = por %p142, %p143
    %p146 = scmp.ne.s32.totalorder %s131, %s145
    %p147 = scmp.eq.s32.totalorder %s32, 0
    %p148 = por %p146, %p147
    %s150 = sadd.s32 %s149, 1
    %p153 = scmp.eq.s32.totalorder %s26, 1
    %p154 = scmp.ne.s32.totalorder %s149, %s151
    %p155 = scmp.eq.s32.totalorder %s26, 0
    %p156 = por %p154, %p155
    %p157 = scmp.ne.s32.totalorder %s149, %s151
    %p158 = scmp.eq.s32.totalorder %s31, 1
    %p159 = por %p157, %p158
    %p160 = scmp.ne.s32.totalorder %s151, %s152
    %p161 = scmp.eq.s32.totalorder %s31, 0
    %p162 = por %p160, %p161
    %p163 = scmp.ne.s32.totalorder %s151, %s152
    %p164 = scmp.eq.s32.totalorder %s32, 1
    %p165 = por %p163, %p164
    %p167 = scmp.ne.s32.totalorder %s152, %s166
    %p168 = scmp.eq.s32.totalorder %s32, 0
    %p169 = por %p167, %p168
    %s171 = sadd.s32 %s170, 1
    %p174 = scmp.eq.s32.totalorder %s26, 1
    %p175 = scmp.ne.s32.totalorder %s170, %s172
    %p176 = scmp.eq.s32.totalorder %s26, 0
    %p177 = por %p175, %p176
    %p178 = scmp.ne.s32.totalorder %s170, %s172
    %p179 = scmp.eq.s32.totalorder %s31, 1
    %p180 = por %p178, %p179
    %p181 = scmp.ne.s32.totalorder %s172, %s173
    %p182 = scmp.eq.s32.totalorder %s31, 0
    %p183 = por %p181, %p182
    %p184 = scmp.ne.s32.totalorder %s172, %s173
    %p185 = scmp.eq.s32.totalorder %s32, 1
    %p186 = por %p184, %p185
    %p188 = scmp.ne.s32.totalorder %s173, %s187
    %p189 = scmp.eq.s32.totalorder %s32, 0
    %p190 = por %p188, %p189
    %s192 = sadd.s32 %s191, 1
    %p195 = scmp.eq.s32.totalorder %s26, 1
    %p196 = scmp.ne.s32.totalorder %s191, %s193
    %p197 = scmp.eq.s32.totalorder %s26, 0
    %p198 = por %p196, %p197
    %p199 = scmp.ne.s32.totalorder %s191, %s193
    %p200 = scmp.eq.s32.totalorder %s31, 1
    %p201 = por %p199, %p200
    %p202 = scmp.ne.s32.totalorder %s193, %s194
    %p203 = scmp.eq.s32.totalorder %s31, 0
    %p204 = por %p202, %p203
    %p205 = scmp.ne.s32.totalorder %s193, %s194
    %p206 = scmp.eq.s32.totalorder %s32, 1
    %p207 = por %p205, %p206
    %p209 = scmp.ne.s32.totalorder %s194, %s208
    %p210 = scmp.eq.s32.totalorder %s32, 0
    %p211 = por %p209, %p210
    %s213 = sadd.s32 %s212, 1
    %p216 = scmp.eq.s32.totalorder %s26, 1
    %p217 = scmp.ne.s32.totalorder %s212, %s214
    %p218 = scmp.eq.s32.totalorder %s26, 0
    %p219 = por %p217, %p218
    %p220 = scmp.ne.s32.totalorder %s212, %s214
    %p221 = scmp.eq.s32.totalorder %s31, 1
    %p222 = por %p220, %p221
    %p223 = scmp.ne.s32.totalorder %s214, %s215
    %p224 = scmp.eq.s32.totalorder %s31, 0
    %p225 = por %p223, %p224
    %p226 = scmp.ne.s32.totalorder %s214, %s215
    %p227 = scmp.eq.s32.totalorder %s32, 1
    %p228 = por %p226, %p227
    %p230 = scmp.ne.s32.totalorder %s215, %s229
    %p231 = scmp.eq.s32.totalorder %s32, 0
    %p232 = por %p230, %p231
    %s234 = sadd.s32 %s233, 1
    %p237 = scmp.eq.s32.totalorder %s26, 1
    %p238 = scmp.ne.s32.totalorder %s233, %s235
    %p239 = scmp.eq.s32.totalorder %s26, 0
    %p240 = por %p238, %p239
    %p241 = scmp.ne.s32.totalorder %s233, %s235
    %p242 = scmp.eq.s32.totalorder %s31, 1
    %p243 = por %p241, %p242
    %p244 = scmp.ne.s32.totalorder %s235, %s236
    %p245 = scmp.eq.s32.totalorder %s31, 0
    %p246 = por %p244, %p245
    %p247 = scmp.ne.s32.totalorder %s235, %s236
    %p248 = scmp.eq.s32.totalorder %s32, 1
    %p249 = por %p247, %p248
    %p251 = scmp.ne.s32.totalorder %s236, %s250
    %p252 = scmp.eq.s32.totalorder %s32, 0
    %p253 = por %p251, %p252
    %s255 = sadd.s32 %s254, 1
    %p258 = scmp.eq.s32.totalorder %s26, 1
    %p259 = scmp.ne.s32.totalorder %s254, %s256
    %p260 = scmp.eq.s32.totalorder %s26, 0
    %p261 = por %p259, %p260
    %p262 = scmp.ne.s32.totalorder %s254, %s256
    %p263 = scmp.eq.s32.totalorder %s31, 1
    %p264 = por %p262, %p263
    %p265 = scmp.ne.s32.totalorder %s256, %s257
    %p266 = scmp.eq.s32.totalorder %s31, 0
    %p267 = por %p265, %p266
    %p268 = scmp.ne.s32.totalorder %s256, %s257
    %p269 = scmp.eq.s32.totalorder %s32, 1
    %p270 = por %p268, %p269
    %p272 = scmp.ne.s32.totalorder %s257, %s271
    %p273 = scmp.eq.s32.totalorder %s32, 0
    %p274 = por %p272, %p273
    %s276 = sadd.s32 %s275, 1
    %p279 = scmp.eq.s32.totalorder %s26, 1
    %p280 = scmp.ne.s32.totalorder %s275, %s277
    %p281 = scmp.eq.s32.totalorder %s26, 0
    %p282 = por %p280, %p281
    %p283 = scmp.ne.s32.totalorder %s275, %s277
    %p284 = scmp.eq.s32.totalorder %s31, 1
    %p285 = por %p283, %p284
    %p286 = scmp.ne.s32.totalorder %s277, %s278
    %p287 = scmp.eq.s32.totalorder %s31, 0
    %p288 = por %p286, %p287
    %p289 = scmp.ne.s32.totalorder %s277, %s278
    %p290 = scmp.eq.s32.totalorder %s32, 1
    %p291 = por %p289, %p290
    %p293 = scmp.ne.s32.totalorder %s278, %s292
    %p294 = scmp.eq.s32.totalorder %s32, 0
    %p295 = por %p293, %p294
    %s297 = sadd.s32 %s296, 1
    %p300 = scmp.eq.s32.totalorder %s26, 1
    %p301 = scmp.ne.s32.totalorder %s296, %s298
    %p302 = scmp.eq.s32.totalorder %s26, 0
    %p303 = por %p301, %p302
    %p304 = scmp.ne.s32.totalorder %s296, %s298
    %p305 = scmp.eq.s32.totalorder %s31, 1
    %p306 = por %p304, %p305
    %p307 = scmp.ne.s32.totalorder %s298, %s299
    %p308 = scmp.eq.s32.totalorder %s31, 0
    %p309 = por %p307, %p308
    %p310 = scmp.ne.s32.totalorder %s298, %s299
    %p311 = scmp.eq.s32.totalorder %s32, 1
    %p312 = por %p310, %p311
    %p314 = scmp.ne.s32.totalorder %s299, %s313
    %p315 = scmp.eq.s32.totalorder %s32, 0
    %p316 = por %p314, %p315
    %s318 = sadd.s32 %s317, 1
    %p321 = scmp.eq.s32.totalorder %s26, 1
    %p322 = scmp.ne.s32.totalorder %s317, %s319
    %p323 = scmp.eq.s32.totalorder %s26, 0
    %p324 = por %p322, %p323
    %p325 = scmp.ne.s32.totalorder %s317, %s319
    %p326 = scmp.eq.s32.totalorder %s31, 1
    %p327 = por %p325, %p326
    %p328 = scmp.ne.s32.totalorder %s319, %s320
    %p329 = scmp.eq.s32.totalorder %s31, 0
    %p330 = por %p328, %p329
    %p331 = scmp.ne.s32.totalorder %s319, %s320
    %p332 = scmp.eq.s32.totalorder %s32, 1
    %p333 = por %p331, %p332
    %p335 = scmp.ne.s32.totalorder %s320, %s334
    %p336 = scmp.eq.s32.totalorder %s32, 0
    %p337 = por %p335, %p336
    %s339 = sadd.s32 %s338, 1
    %p342 = scmp.eq.s32.totalorder %s26, 1
    %p343 = scmp.ne.s32.totalorder %s338, %s340
    %p344 = scmp.eq.s32.totalorder %s26, 0
    %p345 = por %p343, %p344
    %p346 = scmp.ne.s32.totalorder %s338, %s340
    %p347 = scmp.eq.s32.totalorder %s31, 1
    %p348 = por %p346, %p347
    %p349 = scmp.ne.s32.totalorder %s340, %s341
    %p350 = scmp.eq.s32.totalorder %s31, 0
    %p351 = por %p349, %p350
    %p352 = scmp.ne.s32.totalorder %s340, %s341
    %p353 = scmp.eq.s32.totalorder %s32, 1
    %p354 = por %p352, %p353
    %p356 = scmp.ne.s32.totalorder %s341, %s355
    %p357 = scmp.eq.s32.totalorder %s32, 0
    %p358 = por %p356, %p357
    %s360 = sadd.s32 %s359, 1
    %p363 = scmp.eq.s32.totalorder %s26, 1
    %p364 = scmp.ne.s32.totalorder %s359, %s361
    %p365 = scmp.eq.s32.totalorder %s26, 0
    %p366 = por %p364, %p365
    %p367 = scmp.ne.s32.totalorder %s359, %s361
    %p368 = scmp.eq.s32.totalorder %s31, 1
    %p369 = por %p367, %p368
    %p370 = scmp.ne.s32.totalorder %s361, %s362
    %p371 = scmp.eq.s32.totalorder %s31, 0
    %p372 = por %p370, %p371
    %p373 = scmp.ne.s32.totalorder %s361, %s362
    %p374 = scmp.eq.s32.totalorder %s32, 1
    %p375 = por %p373, %p374
    %p377 = scmp.ne.s32.totalorder %s362, %s376
    %p378 = scmp.eq.s32.totalorder %s32, 0
    %p379 = por %p377, %p378
    %s381 = sadd.s32 %s380, 1
    %p384 = scmp.eq.s32.totalorder %s26, 1
    %p385 = scmp.ne.s32.totalorder %s380, %s382
    %p386 = scmp.eq.s32.totalorder %s26, 0
    %p387 = por %p385, %p386
    %p388 = scmp.ne.s32.totalorder %s380, %s382
    %p389 = scmp.eq.s32.totalorder %s31, 1
    %p390 = por %p388, %p389
    %p391 = scmp.ne.s32.totalorder %s382, %s383
    %p392 = scmp.eq.s32.totalorder %s31, 0
    %p393 = por %p391, %p392
    %p394 = scmp.ne.s32.totalorder %s382, %s383
    %p395 = scmp.eq.s32.totalorder %s32, 1
    %p396 = por %p394, %p395
    %p398 = scmp.ne.s32.totalorder %s383, %s397
    %p399 = scmp.eq.s32.totalorder %s32, 0
    %p400 = por %p398, %p399
    %s402 = sadd.s32 %s401, 1
    %p405 = scmp.eq.s32.totalorder %s26, 1
    %p406 = scmp.ne.s32.totalorder %s401, %s403
    %p407 = scmp.eq.s32.totalorder %s26, 0
    %p408 = por %p406, %p407
    %p409 = scmp.ne.s32.totalorder %s401, %s403
    %p410 = scmp.eq.s32.totalorder %s31, 1
    %p411 = por %p409, %p410
    %p412 = scmp.ne.s32.totalorder %s403, %s404
    %p413 = scmp.eq.s32.totalorder %s31, 0
    %p414 = por %p412, %p413
    %p415 = scmp.ne.s32.totalorder %s403, %s404
    %p416 = scmp.eq.s32.totalorder %s32, 1
    %p417 = por %p415, %p416
    %p419 = scmp.ne.s32.totalorder %s404, %s418
    %p420 = scmp.eq.s32.totalorder %s32, 0
    %p421 = por %p419, %p420
    %s423 = sadd.s32 %s422, 1
    %p426 = scmp.eq.s32.totalorder %s26, 1
    %p427 = scmp.ne.s32.totalorder %s422, %s424
    %p428 = scmp.eq.s32.totalorder %s26, 0
    %p429 = por %p427, %p428
    %p430 = scmp.ne.s32.totalorder %s422, %s424
    %p431 = scmp.eq.s32.totalorder %s31, 1
    %p432 = por %p430, %p431
    %p433 = scmp.ne.s32.totalorder %s424, %s425
    %p434 = scmp.eq.s32.totalorder %s31, 0
    %p435 = por %p433, %p434
    %p436 = scmp.ne.s32.totalorder %s424, %s425
    %p437 = scmp.eq.s32.totalorder %s32, 1
    %p438 = por %p436, %p437
    %p440 = scmp.ne.s32.totalorder %s425, %s439
    %p441 = scmp.eq.s32.totalorder %s32, 0
    %p442 = por %p440, %p441
    %s444 = sadd.s32 %s443, 1
    %p447 = scmp.eq.s32.totalorder %s26, 1
    %p448 = scmp.ne.s32.totalorder %s443, %s445
    %p449 = scmp.eq.s32.totalorder %s26, 0
    %p450 = por %p448, %p449
    %p451 = scmp.ne.s32.totalorder %s443, %s445
    %p452 = scmp.eq.s32.totalorder %s31, 1
    %p453 = por %p451, %p452
    %p454 = scmp.ne.s32.totalorder %s445, %s446
    %p455 = scmp.eq.s32.totalorder %s31, 0
    %p456 = por %p454, %p455
    %p457 = scmp.ne.s32.totalorder %s445, %s446
    %p458 = scmp.eq.s32.totalorder %s32, 1
    %p459 = por %p457, %p458
    %p461 = scmp.ne.s32.totalorder %s446, %s460
    %p462 = scmp.eq.s32.totalorder %s32, 0
    %p463 = por %p461, %p462
    %s464 = ssub.s32 %s26, %s33
    %p465 = scmp.eq.s32.totalorder %s464, 0
    %s467 = sadd.s32 %s466, 1
    %s468 = scalar_select %p465, %s466, %s467
    %p471 = pneg %p465
    %p472 = scmp.eq.s32.totalorder %s26, 1
    %p473 = por %p471, %p472
    %p474 = scmp.ne.s32.totalorder %s466, %s469
    %p475 = scmp.eq.s32.totalorder %s26, 0
    %p476 = por %p474, %p475
    %p477 = scmp.ne.s32.totalorder %s466, %s469
    %p478 = scmp.eq.s32.totalorder %s31, 1
    %p479 = por %p477, %p478
    %p480 = scmp.ne.s32.totalorder %s469, %s470
    %p481 = scmp.eq.s32.totalorder %s31, 0
    %p482 = por %p480, %p481
    %p483 = scmp.ne.s32.totalorder %s469, %s470
    %p484 = scmp.eq.s32.totalorder %s32, 1
    %p485 = por %p483, %p484
    %p487 = scmp.ne.s32.totalorder %s470, %s486
    %p488 = scmp.eq.s32.totalorder %s32, 0
    %p489 = por %p487, %p488
    %p490 = scmp.le.s32.totalorder 1, %s26
    %p491 = scmp.lt.s32.totalorder %s26, 3
    %p492 = pnand %p490, %p491
    %p493 = pneg %p492
    // Predicated region
    $region9: #{_lambda_.1} parent=5 // pred_check
      _
    $region10: #{_lambda_.1} parent=5 // pred_check_branch
      %495 = sbr.rel (%p492) target = $region12
    $region11: #{_lambda_.1} parent=5 // pred_region
      %s496 = ssub.s32 %s26, 1
      // Predicated region
      $region13: #{_lambda_.1} parent=11 // pred_check
        %p497 = pneg %p99
      $region14: #{_lambda_.1} parent=11 // pred_check_branch
        %499 = sbr.rel (%p497) target = $region16
      $region15: #{_lambda_.1} parent=11 // pred_region
        _
      $region16: #{_lambda_.1} parent=11 // pred_fallthru
        _
      // Predicated region
      $region17: #{_lambda_.1} parent=11 // pred_check
        %p500 = pneg %p120
      $region18: #{_lambda_.1} parent=11 // pred_check_branch
        %502 = sbr.rel (%p500) target = $region20
      $region19: #{_lambda_.1} parent=11 // pred_region
        _
      $region20: #{_lambda_.1} parent=11 // pred_fallthru
        _
      // Predicated region
      $region21: #{_lambda_.1} parent=11 // pred_check
        %p503 = pneg %p141
      $region22: #{_lambda_.1} parent=11 // pred_check_branch
        %505 = sbr.rel (%p503) target = $region24
      $region23: #{_lambda_.1} parent=11 // pred_region
        _
      $region24: #{_lambda_.1} parent=11 // pred_fallthru
        _
      // Predicated region
      $region25: #{_lambda_.1} parent=11 // pred_check
        %p506 = pneg %p162
      $region26: #{_lambda_.1} parent=11 // pred_check_branch
        %508 = sbr.rel (%p506) target = $region28
      $region27: #{_lambda_.1} parent=11 // pred_region
        _
      $region28: #{_lambda_.1} parent=11 // pred_fallthru
        _
      // Predicated region
      $region29: #{_lambda_.1} parent=11 // pred_check
        %p509 = pneg %p183
      $region30: #{_lambda_.1} parent=11 // pred_check_branch
        %511 = sbr.rel (%p509) target = $region32
      $region31: #{_lambda_.1} parent=11 // pred_region
        _
      $region32: #{_lambda_.1} parent=11 // pred_fallthru
        _
      // Predicated region
      $region33: #{_lambda_.1} parent=11 // pred_check
        %p512 = pneg %p204
      $region34: #{_lambda_.1} parent=11 // pred_check_branch
        %514 = sbr.rel (%p512) target = $region36
      $region35: #{_lambda_.1} parent=11 // pred_region
        _
      $region36: #{_lambda_.1} parent=11 // pred_fallthru
        _
      // Predicated region
      $region37: #{_lambda_.1} parent=11 // pred_check
        %p515 = pneg %p225
      $region38: #{_lambda_.1} parent=11 // pred_check_branch
        %517 = sbr.rel (%p515) target = $region40
      $region39: #{_lambda_.1} parent=11 // pred_region
        _
      $region40: #{_lambda_.1} parent=11 // pred_fallthru
        _
      // Predicated region
      $region41: #{_lambda_.1} parent=11 // pred_check
        %p518 = pneg %p246
      $region42: #{_lambda_.1} parent=11 // pred_check_branch
        %520 = sbr.rel (%p518) target = $region44
      $region43: #{_lambda_.1} parent=11 // pred_region
        _
      $region44: #{_lambda_.1} parent=11 // pred_fallthru
        _
      // Predicated region
      $region45: #{_lambda_.1} parent=11 // pred_check
        %p521 = pneg %p267
      $region46: #{_lambda_.1} parent=11 // pred_check_branch
        %523 = sbr.rel (%p521) target = $region48
      $region47: #{_lambda_.1} parent=11 // pred_region
        _
      $region48: #{_lambda_.1} parent=11 // pred_fallthru
        _
      // Predicated region
      $region49: #{_lambda_.1} parent=11 // pred_check
        %p524 = pneg %p288
      $region50: #{_lambda_.1} parent=11 // pred_check_branch
        %526 = sbr.rel (%p524) target = $region52
      $region51: #{_lambda_.1} parent=11 // pred_region
        _
      $region52: #{_lambda_.1} parent=11 // pred_fallthru
        _
      // Predicated region
      $region53: #{_lambda_.1} parent=11 // pred_check
        %p527 = pneg %p309
      $region54: #{_lambda_.1} parent=11 // pred_check_branch
        %529 = sbr.rel (%p527) target = $region56
      $region55: #{_lambda_.1} parent=11 // pred_region
        _
      $region56: #{_lambda_.1} parent=11 // pred_fallthru
        _
      // Predicated region
      $region57: #{_lambda_.1} parent=11 // pred_check
        %p530 = pneg %p330
      $region58: #{_lambda_.1} parent=11 // pred_check_branch
        %532 = sbr.rel (%p530) target = $region60
      $region59: #{_lambda_.1} parent=11 // pred_region
        _
      $region60: #{_lambda_.1} parent=11 // pred_fallthru
        _
      // Predicated region
      $region61: #{_lambda_.1} parent=11 // pred_check
        %p533 = pneg %p351
      $region62: #{_lambda_.1} parent=11 // pred_check_branch
        %535 = sbr.rel (%p533) target = $region64
      $region63: #{_lambda_.1} parent=11 // pred_region
        _
      $region64: #{_lambda_.1} parent=11 // pred_fallthru
        _
      // Predicated region
      $region65: #{_lambda_.1} parent=11 // pred_check
        %p536 = pneg %p372
      $region66: #{_lambda_.1} parent=11 // pred_check_branch
        %538 = sbr.rel (%p536) target = $region68
      $region67: #{_lambda_.1} parent=11 // pred_region
        _
      $region68: #{_lambda_.1} parent=11 // pred_fallthru
        _
      // Predicated region
      $region69: #{_lambda_.1} parent=11 // pred_check
        %p539 = pneg %p393
      $region70: #{_lambda_.1} parent=11 // pred_check_branch
        %541 = sbr.rel (%p539) target = $region72
      $region71: #{_lambda_.1} parent=11 // pred_region
        _
      $region72: #{_lambda_.1} parent=11 // pred_fallthru
        _
      // Predicated region
      $region73: #{_lambda_.1} parent=11 // pred_check
        %p542 = pneg %p414
      $region74: #{_lambda_.1} parent=11 // pred_check_branch
        %544 = sbr.rel (%p542) target = $region76
      $region75: #{_lambda_.1} parent=11 // pred_region
        _
      $region76: #{_lambda_.1} parent=11 // pred_fallthru
        _
      // Predicated region
      $region77: #{_lambda_.1} parent=11 // pred_check
        %p545 = pneg %p435
      $region78: #{_lambda_.1} parent=11 // pred_check_branch
        %547 = sbr.rel (%p545) target = $region80
      $region79: #{_lambda_.1} parent=11 // pred_region
        _
      $region80: #{_lambda_.1} parent=11 // pred_fallthru
        _
      // Predicated region
      $region81: #{_lambda_.1} parent=11 // pred_check
        %p548 = pneg %p456
      $region82: #{_lambda_.1} parent=11 // pred_check_branch
        %550 = sbr.rel (%p548) target = $region84
      $region83: #{_lambda_.1} parent=11 // pred_region
        _
      $region84: #{_lambda_.1} parent=11 // pred_fallthru
        _
    $region12: #{_lambda_.1} parent=5 // pred_fallthru
      _
    %p551 = scmp.lt.s32.totalorder %s26, 2
    // Predicated region
    $region85: #{_lambda_.1} parent=5 // pred_check
      %p552 = pneg %p551
    $region86: #{_lambda_.1} parent=5 // pred_check_branch
      %554 = sbr.rel (%p552) target = $region88
    $region87: #{_lambda_.1} parent=5 // pred_region
      // Predicated region
      $region89: #{_lambda_.1} parent=87 // pred_check
        %p555 = pneg %p46
      $region90: #{_lambda_.1} parent=87 // pred_check_branch
        %557 = sbr.rel (%p555) target = $region92
      $region91: #{_lambda_.1} parent=87 // pred_region
        %p558 = scmp.lt.s32.totalorder %s26, 1
        %s559 = scalar_select %p558, %s26, 1
        %s560 = smul.addr %s559, 2
        %s561 = smul.addr %s560, 8
        %s562 = scalar_lea.vmem %s0, %s561
      $region92: #{_lambda_.1} parent=87 // pred_fallthru
        _
      // Predicated region
      $region93: #{_lambda_.1} parent=87 // pred_check
        %p563 = pneg %p72
      $region94: #{_lambda_.1} parent=87 // pred_check_branch
        %565 = sbr.rel (%p563) target = $region96
      $region95: #{_lambda_.1} parent=87 // pred_region
        %p566 = scmp.lt.s32.totalorder %s26, 1
        %s567 = scalar_select %p566, %s26, 1
        %s568 = smul.addr %s567, 2
        %s569 = smul.addr %s568, 8
        %s570 = scalar_lea.vmem %s1, %s569
      $region96: #{_lambda_.1} parent=87 // pred_fallthru
        _
    $region88: #{_lambda_.1} parent=5 // pred_fallthru
      _
    %p571 = scmp.le.s32.totalorder 1, %s26
    %p572 = scmp.lt.s32.totalorder %s26, 3
    %p573 = pnand %p571, %p572
    %p574 = pneg %p573
    // Predicated region
    $region97: #{_lambda_.1} parent=5 // pred_check
      _
    $region98: #{_lambda_.1} parent=5 // pred_check_branch
      %576 = sbr.rel (%p573) target = $region100
    $region99: #{_lambda_.1} parent=5 // pred_region
      %s577 = ssub.s32 %s26, 1
      %p578 = scmp.lt.s32.totalorder %s31, 1
      %s579 = scalar_select %p578, %s31, 1
      %s580 = smul.addr %s579, 2
      %s581 = smul.addr %s580, 8
      %s582 = scalar_lea.vmem %s0, %s581
      %p583 = pneg %p52
      %p584 = pneg %p49
      %p585 = scmp.lt.s32.totalorder %s31, 1
      %s586 = scalar_select %p585, %s31, 1
      %s587 = smul.addr %s586, 2
      %s588 = smul.addr %s587, 8
      %s589 = scalar_lea.vmem %s1, %s588
      %p590 = pneg %p78
      %p591 = pneg %p75
      %p592 = pneg %p99
      %p593 = pneg %p96
      %p594 = pneg %p120
      %p595 = pneg %p117
      %p596 = pneg %p141
      %p597 = pneg %p138
      %p598 = pneg %p162
      %p599 = pneg %p159
      %p600 = pneg %p183
      %p601 = pneg %p180
      %p602 = pneg %p204
      %p603 = pneg %p201
      %p604 = pneg %p225
      %p605 = pneg %p222
      %p606 = pneg %p246
      %p607 = pneg %p243
      %p608 = pneg %p267
      %p609 = pneg %p264
      %p610 = pneg %p288
      %p611 = pneg %p285
      %p612 = pneg %p309
      %p613 = pneg %p306
      %p614 = pneg %p330
      %p615 = pneg %p327
      %p616 = pneg %p351
      %p617 = pneg %p348
      %p618 = pneg %p372
      %p619 = pneg %p369
      %p620 = pneg %p393
      %p621 = pneg %p390
      %p622 = pneg %p414
      %p623 = pneg %p411
      %p624 = pneg %p435
      %p625 = pneg %p432
      %p626 = pneg %p456
      %p627 = pneg %p453
      %p628 = pneg %p482
      %p629 = pneg %p479
      %p630 = scmp.lt.s32.totalorder %s31, 1
      %s631 = scalar_select %p630, %s31, 1
      %s632 = smul.addr %s631, 2
      %s633 = smul.addr %s632, 8
      %s634 = scalar_lea.vmem %s20, %s633
      %p635 = scmp.lt.s32.totalorder %s31, 1
      %s636 = scalar_select %p635, %s31, 1
      %s637 = smul.addr %s636, 2
      %s638 = smul.addr %s637, 8
      %s639 = scalar_lea.vmem %s0, %s638
      %p640 = scmp.lt.s32.totalorder %s31, 1
      %s641 = scalar_select %p640, %s31, 1
      %s642 = smul.addr %s641, 2
      %s643 = smul.addr %s642, 8
      %s644 = scalar_lea.vmem %s1, %s643
      %p645 = scmp.lt.s32.totalorder %s31, 1
      %s646 = scalar_select %p645, %s31, 1
      %s647 = smul.addr %s646, 2
      %s648 = smul.addr %s647, 8
      %s649 = scalar_lea.vmem %s20, %s648
      %v650 = vld [vmem:[%s639] sm:$0xff]
      %v651 = vld [vmem:[%s639 + $0x8] sm:$0xff]
      %v652 = vld [vmem:[%s644] sm:$0xff]
      %v653 = vld [vmem:[%s644 + $0x8] sm:$0xff]
      %v654 = vmul.f32 %v652, 0.11604741
      %v655 = vmul.f32 %v653, 0.11604741
      %v656 = vadd.f32 %v650, %v654
      %v657 = vadd.f32 %v651, %v655
      %v658 = vld [vmem:[%s3] sm:$0xf]
      %vm659 = vcmask 31744
      %v661 = vsel %vm659, %v656, 0
      %v664 = vsel %vm659, %v657, 0
      %vm666 = vcmask 1043456
      %v668 = vsel %vm666, %v658, 0
      %670 = vmatpush.msra.mxu0 0.0
      %671 = vmatpush.msra.mxu0 0.0
      %672 = vmatpush.msra.mxu0 0.0
      %673 = vmatpush.msra.mxu0 0.0
      %674 = vmatpush.msra.mxu0 0.0
      %675 = vmatpush.msra.mxu0 0.0
      %676 = vmatpush.msra.mxu0 0.0
      %677 = vmatpush.msra.mxu0 0.0
      %678 = vmatpush.msra.mxu0 0.0
      %679 = vmatpush.msra.mxu0 0.0
      %680 = vmatpush.msra.mxu0 0.0
      %681 = vmatpush.msra.mxu0 0.0
      %682 = vmatpush.msra.mxu0 0.0
      %683 = vmatpush.msra.mxu0 0.0
      %684 = vmatpush.msra.mxu0 0.0
      %v685 = vand.u32 %v668, 4294901760
      %686 = vmatpush.msra.mxu0 %v685
      %v687 = vand.u32 %v661, 4294901760
      %v688 = vsub.f32 %v661, %v687
      %v689 = vand.u32 %v688, 4294901760
      %v690 = vsub.f32 %v688, %v689
      %v691 = vand.u32 %v690, 4294901760
      %692 = vmatmul.f32.gmra.mxu0 %v691
      %v693 = vpop.f32.mrf.mxu0
      %v694 = vadd.f32 0.0, %v693
      %v695 = vand.u32 %v664, 4294901760
      %v696 = vsub.f32 %v664, %v695
      %v697 = vand.u32 %v696, 4294901760
      %v698 = vsub.f32 %v696, %v697
      %v699 = vand.u32 %v698, 4294901760
      %700 = vmatmul.f32.gmra.mxu0 %v699
      %v701 = vpop.f32.mrf.mxu0
      %v702 = vadd.f32 0.0, %v701
      %703 = vdwg.mxu0
      %704 = vmatpush.msra.mxu0 0.0
      %705 = vmatpush.msra.mxu0 0.0
      %706 = vmatpush.msra.mxu0 0.0
      %707 = vmatpush.msra.mxu0 0.0
      %708 = vmatpush.msra.mxu0 0.0
      %709 = vmatpush.msra.mxu0 0.0
      %710 = vmatpush.msra.mxu0 0.0
      %711 = vmatpush.msra.mxu0 0.0
      %712 = vmatpush.msra.mxu0 0.0
      %713 = vmatpush.msra.mxu0 0.0
      %714 = vmatpush.msra.mxu0 0.0
      %715 = vmatpush.msra.mxu0 0.0
      %716 = vmatpush.msra.mxu0 0.0
      %717 = vmatpush.msra.mxu0 0.0
      %718 = vmatpush.msra.mxu0 0.0
      %v719 = vand.u32 %v668, 4294901760
      %v720 = vsub.f32 %v668, %v719
      %v721 = vand.u32 %v720, 4294901760
      %v722 = vsub.f32 %v720, %v721
      %v723 = vand.u32 %v722, 4294901760
      %724 = vmatpush.msra.mxu0 %v723
      %v725 = vand.u32 %v661, 4294901760
      %726 = vmatmul.f32.gmra.mxu0 %v725
      %v727 = vpop.f32.mrf.mxu0
      %v728 = vadd.f32 %v694, %v727
      %v729 = vand.u32 %v664, 4294901760
      %730 = vmatmul.f32.gmra.mxu0 %v729
      %v731 = vpop.f32.mrf.mxu0
      %v732 = vadd.f32 %v702, %v731
      %733 = vdwg.mxu0
      %734 = vmatpush.msra.mxu0 0.0
      %735 = vmatpush.msra.mxu0 0.0
      %736 = vmatpush.msra.mxu0 0.0
      %737 = vmatpush.msra.mxu0 0.0
      %738 = vmatpush.msra.mxu0 0.0
      %739 = vmatpush.msra.mxu0 0.0
      %740 = vmatpush.msra.mxu0 0.0
      %741 = vmatpush.msra.mxu0 0.0
      %742 = vmatpush.msra.mxu0 0.0
      %743 = vmatpush.msra.mxu0 0.0
      %744 = vmatpush.msra.mxu0 0.0
      %745 = vmatpush.msra.mxu0 0.0
      %746 = vmatpush.msra.mxu0 0.0
      %747 = vmatpush.msra.mxu0 0.0
      %748 = vmatpush.msra.mxu0 0.0
      %v749 = vand.u32 %v668, 4294901760
      %v750 = vsub.f32 %v668, %v749
      %751 = vmatpush.msra.mxu0 %v750
      %v752 = vand.u32 %v661, 4294901760
      %v753 = vsub.f32 %v661, %v752
      %754 = vmatmul.f32.gmra.mxu0 %v753
      %v755 = vpop.f32.mrf.mxu0
      %v756 = vadd.f32 %v728, %v755
      %v757 = vand.u32 %v664, 4294901760
      %v758 = vsub.f32 %v664, %v757
      %759 = vmatmul.f32.gmra.mxu0 %v758
      %v760 = vpop.f32.mrf.mxu0
      %v761 = vadd.f32 %v732, %v760
      %762 = vdwg.mxu0
      %763 = vmatpush.msra.mxu0 0.0
      %764 = vmatpush.msra.mxu0 0.0
      %765 = vmatpush.msra.mxu0 0.0
      %766 = vmatpush.msra.mxu0 0.0
      %767 = vmatpush.msra.mxu0 0.0
      %768 = vmatpush.msra.mxu0 0.0
      %769 = vmatpush.msra.mxu0 0.0
      %770 = vmatpush.msra.mxu0 0.0
      %771 = vmatpush.msra.mxu0 0.0
      %772 = vmatpush.msra.mxu0 0.0
      %773 = vmatpush.msra.mxu0 0.0
      %774 = vmatpush.msra.mxu0 0.0
      %775 = vmatpush.msra.mxu0 0.0
      %776 = vmatpush.msra.mxu0 0.0
      %777 = vmatpush.msra.mxu0 0.0
      %v778 = vand.u32 %v668, 4294901760
      %779 = vmatpush.msra.mxu0 %v778
      %v780 = vand.u32 %v661, 4294901760
      %v781 = vsub.f32 %v661, %v780
      %v782 = vand.u32 %v781, 4294901760
      %783 = vmatmul.f32.gmra.mxu0 %v782
      %v784 = vpop.f32.mrf.mxu0
      %v785 = vadd.f32 %v756, %v784
      %v786 = vand.u32 %v664, 4294901760
      %v787 = vsub.f32 %v664, %v786
      %v788 = vand.u32 %v787, 4294901760
      %789 = vmatmul.f32.gmra.mxu0 %v788
      %v790 = vpop.f32.mrf.mxu0
      %v791 = vadd.f32 %v761, %v790
      %792 = vdwg.mxu0
      %793 = vmatpush.msra.mxu0 0.0
      %794 = vmatpush.msra.mxu0 0.0
      %795 = vmatpush.msra.mxu0 0.0
      %796 = vmatpush.msra.mxu0 0.0
      %797 = vmatpush.msra.mxu0 0.0
      %798 = vmatpush.msra.mxu0 0.0
      %799 = vmatpush.msra.mxu0 0.0
      %800 = vmatpush.msra.mxu0 0.0
      %801 = vmatpush.msra.mxu0 0.0
      %802 = vmatpush.msra.mxu0 0.0
      %803 = vmatpush.msra.mxu0 0.0
      %804 = vmatpush.msra.mxu0 0.0
      %805 = vmatpush.msra.mxu0 0.0
      %806 = vmatpush.msra.mxu0 0.0
      %807 = vmatpush.msra.mxu0 0.0
      %v808 = vand.u32 %v668, 4294901760
      %v809 = vsub.f32 %v668, %v808
      %v810 = vand.u32 %v809, 4294901760
      %811 = vmatpush.msra.mxu0 %v810
      %v812 = vand.u32 %v661, 4294901760
      %813 = vmatmul.f32.gmra.mxu0 %v812
      %v814 = vpop.f32.mrf.mxu0
      %v815 = vadd.f32 %v785, %v814
      %v816 = vand.u32 %v664, 4294901760
      %817 = vmatmul.f32.gmra.mxu0 %v816
      %v818 = vpop.f32.mrf.mxu0
      %v819 = vadd.f32 %v791, %v818
      %820 = vdwg.mxu0
      %821 = vmatpush.msra.mxu0 0.0
      %822 = vmatpush.msra.mxu0 0.0
      %823 = vmatpush.msra.mxu0 0.0
      %824 = vmatpush.msra.mxu0 0.0
      %825 = vmatpush.msra.mxu0 0.0
      %826 = vmatpush.msra.mxu0 0.0
      %827 = vmatpush.msra.mxu0 0.0
      %828 = vmatpush.msra.mxu0 0.0
      %829 = vmatpush.msra.mxu0 0.0
      %830 = vmatpush.msra.mxu0 0.0
      %831 = vmatpush.msra.mxu0 0.0
      %832 = vmatpush.msra.mxu0 0.0
      %833 = vmatpush.msra.mxu0 0.0
      %834 = vmatpush.msra.mxu0 0.0
      %835 = vmatpush.msra.mxu0 0.0
      %v836 = vand.u32 %v668, 4294901760
      %837 = vmatpush.msra.mxu0 %v836
      %v838 = vand.u32 %v661, 4294901760
      %839 = vmatmul.f32.gmra.mxu0 %v838
      %v840 = vpop.f32.mrf.mxu0
      %v841 = vadd.f32 %v815, %v840
      %v842 = vand.u32 %v664, 4294901760
      %843 = vmatmul.f32.gmra.mxu0 %v842
      %v844 = vpop.f32.mrf.mxu0
      %v845 = vadd.f32 %v819, %v844
      %846 = vdwg.mxu0
      %v847 = vld [vmem:[%s2] sm:$0x7f]
      %s848 = scalar_lea.vmem %s3, 4
      %v849 = vld [vmem:[%s848] sm:$0xf]
      %v851 = vsel %vm666, %v849, 0
      %853 = vmatpush.msra.mxu0 0.0
      %854 = vmatpush.msra.mxu0 0.0
      %855 = vmatpush.msra.mxu0 0.0
      %856 = vmatpush.msra.mxu0 0.0
      %857 = vmatpush.msra.mxu0 0.0
      %858 = vmatpush.msra.mxu0 0.0
      %859 = vmatpush.msra.mxu0 0.0
      %860 = vmatpush.msra.mxu0 0.0
      %861 = vmatpush.msra.mxu0 0.0
      %862 = vmatpush.msra.mxu0 0.0
      %863 = vmatpush.msra.mxu0 0.0
      %864 = vmatpush.msra.mxu0 0.0
      %865 = vmatpush.msra.mxu0 0.0
      %866 = vmatpush.msra.mxu0 0.0
      %867 = vmatpush.msra.mxu0 0.0
      %v868 = vand.u32 %v851, 4294901760
      %869 = vmatpush.msra.mxu0 %v868
      %v870 = vand.u32 %v661, 4294901760
      %v871 = vsub.f32 %v661, %v870
      %v872 = vand.u32 %v871, 4294901760
      %v873 = vsub.f32 %v871, %v872
      %v874 = vand.u32 %v873, 4294901760
      %875 = vmatmul.f32.gmra.mxu0 %v874
      %v876 = vpop.f32.mrf.mxu0
      %v877 = vadd.f32 0.0, %v876
      %v878 = vand.u32 %v664, 4294901760
      %v879 = vsub.f32 %v664, %v878
      %v880 = vand.u32 %v879, 4294901760
      %v881 = vsub.f32 %v879, %v880
      %v882 = vand.u32 %v881, 4294901760
      %883 = vmatmul.f32.gmra.mxu0 %v882
      %v884 = vpop.f32.mrf.mxu0
      %v885 = vadd.f32 0.0, %v884
      %886 = vdwg.mxu0
      %887 = vmatpush.msra.mxu0 0.0
      %888 = vmatpush.msra.mxu0 0.0
      %889 = vmatpush.msra.mxu0 0.0
      %890 = vmatpush.msra.mxu0 0.0
      %891 = vmatpush.msra.mxu0 0.0
      %892 = vmatpush.msra.mxu0 0.0
      %893 = vmatpush.msra.mxu0 0.0
      %894 = vmatpush.msra.mxu0 0.0
      %895 = vmatpush.msra.mxu0 0.0
      %896 = vmatpush.msra.mxu0 0.0
      %897 = vmatpush.msra.mxu0 0.0
      %898 = vmatpush.msra.mxu0 0.0
      %899 = vmatpush.msra.mxu0 0.0
      %900 = vmatpush.msra.mxu0 0.0
      %901 = vmatpush.msra.mxu0 0.0
      %v902 = vand.u32 %v851, 4294901760
      %v903 = vsub.f32 %v851, %v902
      %v904 = vand.u32 %v903, 4294901760
      %v905 = vsub.f32 %v903, %v904
      %v906 = vand.u32 %v905, 4294901760
      %907 = vmatpush.msra.mxu0 %v906
      %v908 = vand.u32 %v661, 4294901760
      %909 = vmatmul.f32.gmra.mxu0 %v908
      %v910 = vpop.f32.mrf.mxu0
      %v911 = vadd.f32 %v877, %v910
      %v912 = vand.u32 %v664, 4294901760
      %913 = vmatmul.f32.gmra.mxu0 %v912
      %v914 = vpop.f32.mrf.mxu0
      %v915 = vadd.f32 %v885, %v914
      %916 = vdwg.mxu0
      %917 = vmatpush.msra.mxu0 0.0
      %918 = vmatpush.msra.mxu0 0.0
      %919 = vmatpush.msra.mxu0 0.0
      %920 = vmatpush.msra.mxu0 0.0
      %921 = vmatpush.msra.mxu0 0.0
      %922 = vmatpush.msra.mxu0 0.0
      %923 = vmatpush.msra.mxu0 0.0
      %924 = vmatpush.msra.mxu0 0.0
      %925 = vmatpush.msra.mxu0 0.0
      %926 = vmatpush.msra.mxu0 0.0
      %927 = vmatpush.msra.mxu0 0.0
      %928 = vmatpush.msra.mxu0 0.0
      %929 = vmatpush.msra.mxu0 0.0
      %930 = vmatpush.msra.mxu0 0.0
      %931 = vmatpush.msra.mxu0 0.0
      %v932 = vand.u32 %v851, 4294901760
      %v933 = vsub.f32 %v851, %v932
      %934 = vmatpush.msra.mxu0 %v933
      %v935 = vand.u32 %v661, 4294901760
      %v936 = vsub.f32 %v661, %v935
      %937 = vmatmul.f32.gmra.mxu0 %v936
      %v938 = vpop.f32.mrf.mxu0
      %v939 = vadd.f32 %v911, %v938
      %v940 = vand.u32 %v664, 4294901760
      %v941 = vsub.f32 %v664, %v940
      %942 = vmatmul.f32.gmra.mxu0 %v941
      %v943 = vpop.f32.mrf.mxu0
      %v944 = vadd.f32 %v915, %v943
      %945 = vdwg.mxu0
      %946 = vmatpush.msra.mxu0 0.0
      %947 = vmatpush.msra.mxu0 0.0
      %948 = vmatpush.msra.mxu0 0.0
      %949 = vmatpush.msra.mxu0 0.0
      %950 = vmatpush.msra.mxu0 0.0
      %951 = vmatpush.msra.mxu0 0.0
      %952 = vmatpush.msra.mxu0 0.0
      %953 = vmatpush.msra.mxu0 0.0
      %954 = vmatpush.msra.mxu0 0.0
      %955 = vmatpush.msra.mxu0 0.0
      %956 = vmatpush.msra.mxu0 0.0
      %957 = vmatpush.msra.mxu0 0.0
      %958 = vmatpush.msra.mxu0 0.0
      %959 = vmatpush.msra.mxu0 0.0
      %960 = vmatpush.msra.mxu0 0.0
      %v961 = vand.u32 %v851, 4294901760
      %962 = vmatpush.msra.mxu0 %v961
      %v963 = vand.u32 %v661, 4294901760
      %v964 = vsub.f32 %v661, %v963
      %v965 = vand.u32 %v964, 4294901760
      %966 = vmatmul.f32.gmra.mxu0 %v965
      %v967 = vpop.f32.mrf.mxu0
      %v968 = vadd.f32 %v939, %v967
      %v969 = vand.u32 %v664, 4294901760
      %v970 = vsub.f32 %v664, %v969
      %v971 = vand.u32 %v970, 4294901760
      %972 = vmatmul.f32.gmra.mxu0 %v971
      %v973 = vpop.f32.mrf.mxu0
      %v974 = vadd.f32 %v944, %v973
      %975 = vdwg.mxu0
      %976 = vmatpush.msra.mxu0 0.0
      %977 = vmatpush.msra.mxu0 0.0
      %978 = vmatpush.msra.mxu0 0.0
      %979 = vmatpush.msra.mxu0 0.0
      %980 = vmatpush.msra.mxu0 0.0
      %981 = vmatpush.msra.mxu0 0.0
      %982 = vmatpush.msra.mxu0 0.0
      %983 = vmatpush.msra.mxu0 0.0
      %984 = vmatpush.msra.mxu0 0.0
      %985 = vmatpush.msra.mxu0 0.0
      %986 = vmatpush.msra.mxu0 0.0
      %987 = vmatpush.msra.mxu0 0.0
      %988 = vmatpush.msra.mxu0 0.0
      %989 = vmatpush.msra.mxu0 0.0
      %990 = vmatpush.msra.mxu0 0.0
      %v991 = vand.u32 %v851, 4294901760
      %v992 = vsub.f32 %v851, %v991
      %v993 = vand.u32 %v992, 4294901760
      %994 = vmatpush.msra.mxu0 %v993
      %v995 = vand.u32 %v661, 4294901760
      %996 = vmatmul.f32.gmra.mxu0 %v995
      %v997 = vpop.f32.mrf.mxu0
      %v998 = vadd.f32 %v968, %v997
      %v999 = vand.u32 %v664, 4294901760
      %1000 = vmatmul.f32.gmra.mxu0 %v999
      %v1001 = vpop.f32.mrf.mxu0
      %v1002 = vadd.f32 %v974, %v1001
      %1003 = vdwg.mxu0
      %1004 = vmatpush.msra.mxu0 0.0
      %1005 = vmatpush.msra.mxu0 0.0
      %1006 = vmatpush.msra.mxu0 0.0
      %1007 = vmatpush.msra.mxu0 0.0
      %1008 = vmatpush.msra.mxu0 0.0
      %1009 = vmatpush.msra.mxu0 0.0
      %1010 = vmatpush.msra.mxu0 0.0
      %1011 = vmatpush.msra.mxu0 0.0
      %1012 = vmatpush.msra.mxu0 0.0
      %1013 = vmatpush.msra.mxu0 0.0
      %1014 = vmatpush.msra.mxu0 0.0
      %1015 = vmatpush.msra.mxu0 0.0
      %1016 = vmatpush.msra.mxu0 0.0
      %1017 = vmatpush.msra.mxu0 0.0
      %1018 = vmatpush.msra.mxu0 0.0
      %v1019 = vand.u32 %v851, 4294901760
      %1020 = vmatpush.msra.mxu0 %v1019
      %v1021 = vand.u32 %v661, 4294901760
      %1022 = vmatmul.f32.gmra.mxu0 %v1021
      %v1023 = vpop.f32.mrf.mxu0
      %v1024 = vadd.f32 %v998, %v1023
      %v1025 = vand.u32 %v664, 4294901760
      %1026 = vmatmul.f32.gmra.mxu0 %v1025
      %v1027 = vpop.f32.mrf.mxu0
      %v1028 = vadd.f32 %v1002, %v1027
      %1029 = vdwg.mxu0
      %s1030 = scalar_lea.vmem %s2, 8
      %v1031 = vld [vmem:[%s1030] sm:$0x7f]
      %vm1032 = vcmask 130048
      %v1034 = vsel %vm1032, %v1031, 0
      %1036 = vmatpush.msra.mxu0 0.0
      %1037 = vmatpush.msra.mxu0 0.0
      %1038 = vmatpush.msra.mxu0 0.0
      %1039 = vmatpush.msra.mxu0 0.0
      %1040 = vmatpush.msra.mxu0 0.0
      %1041 = vmatpush.msra.mxu0 0.0
      %1042 = vmatpush.msra.mxu0 0.0
      %1043 = vmatpush.msra.mxu0 0.0
      %1044 = vmatpush.msra.mxu0 0.0
      %1045 = vmatpush.msra.mxu0 0.0
      %1046 = vmatpush.msra.mxu0 0.0
      %1047 = vmatpush.msra.mxu0 0.0
      %1048 = vmatpush.msra.mxu0 0.0
      %1049 = vmatpush.msra.mxu0 0.0
      %v1050 = vand.u32 %v1028, 4294901760
      %1051 = vmatpush.msra.mxu0 %v1050
      %v1052 = vand.u32 %v1024, 4294901760
      %1053 = vmatpush.msra.mxu0 %v1052
      %v1054 = vand.u32 %v1034, 4294901760
      %v1055 = vsub.f32 %v1034, %v1054
      %v1056 = vand.u32 %v1055, 4294901760
      %v1057 = vsub.f32 %v1055, %v1056
      %v1058 = vand.u32 %v1057, 4294901760
      %1059 = vmatmul.f32.gmra.mxu0 %v1058
      %v1060 = vpop.f32.mrf.mxu0
      %v1061 = vadd.f32 0.0, %v1060
      %1062 = vdwg.mxu0
      %1063 = vmatpush.msra.mxu0 0.0
      %1064 = vmatpush.msra.mxu0 0.0
      %1065 = vmatpush.msra.mxu0 0.0
      %1066 = vmatpush.msra.mxu0 0.0
      %1067 = vmatpush.msra.mxu0 0.0
      %1068 = vmatpush.msra.mxu0 0.0
      %1069 = vmatpush.msra.mxu0 0.0
      %1070 = vmatpush.msra.mxu0 0.0
      %1071 = vmatpush.msra.mxu0 0.0
      %1072 = vmatpush.msra.mxu0 0.0
      %1073 = vmatpush.msra.mxu0 0.0
      %1074 = vmatpush.msra.mxu0 0.0
      %1075 = vmatpush.msra.mxu0 0.0
      %1076 = vmatpush.msra.mxu0 0.0
      %v1077 = vand.u32 %v1028, 4294901760
      %v1078 = vsub.f32 %v1028, %v1077
      %v1079 = vand.u32 %v1078, 4294901760
      %v1080 = vsub.f32 %v1078, %v1079
      %v1081 = vand.u32 %v1080, 4294901760
      %1082 = vmatpush.msra.mxu0 %v1081
      %v1083 = vand.u32 %v1024, 4294901760
      %v1084 = vsub.f32 %v1024, %v1083
      %v1085 = vand.u32 %v1084, 4294901760
      %v1086 = vsub.f32 %v1084, %v1085
      %v1087 = vand.u32 %v1086, 4294901760
      %1088 = vmatpush.msra.mxu0 %v1087
      %v1089 = vand.u32 %v1034, 4294901760
      %1090 = vmatmul.f32.gmra.mxu0 %v1089
      %v1091 = vpop.f32.mrf.mxu0
      %v1092 = vadd.f32 %v1061, %v1091
      %1093 = vdwg.mxu0
      %1094 = vmatpush.msra.mxu0 0.0
      %1095 = vmatpush.msra.mxu0 0.0
      %1096 = vmatpush.msra.mxu0 0.0
      %1097 = vmatpush.msra.mxu0 0.0
      %1098 = vmatpush.msra.mxu0 0.0
      %1099 = vmatpush.msra.mxu0 0.0
      %1100 = vmatpush.msra.mxu0 0.0
      %1101 = vmatpush.msra.mxu0 0.0
      %1102 = vmatpush.msra.mxu0 0.0
      %1103 = vmatpush.msra.mxu0 0.0
      %1104 = vmatpush.msra.mxu0 0.0
      %1105 = vmatpush.msra.mxu0 0.0
      %1106 = vmatpush.msra.mxu0 0.0
      %1107 = vmatpush.msra.mxu0 0.0
      %v1108 = vand.u32 %v1028, 4294901760
      %v1109 = vsub.f32 %v1028, %v1108
      %1110 = vmatpush.msra.mxu0 %v1109
      %v1111 = vand.u32 %v1024, 4294901760
      %v1112 = vsub.f32 %v1024, %v1111
      %1113 = vmatpush.msra.mxu0 %v1112
      %v1114 = vand.u32 %v1034, 4294901760
      %v1115 = vsub.f32 %v1034, %v1114
      %1116 = vmatmul.f32.gmra.mxu0 %v1115
      %v1117 = vpop.f32.mrf.mxu0
      %v1118 = vadd.f32 %v1092, %v1117
      %1119 = vdwg.mxu0
      %1120 = vmatpush.msra.mxu0 0.0
      %1121 = vmatpush.msra.mxu0 0.0
      %1122 = vmatpush.msra.mxu0 0.0
      %1123 = vmatpush.msra.mxu0 0.0
      %1124 = vmatpush.msra.mxu0 0.0
      %1125 = vmatpush.msra.mxu0 0.0
      %1126 = vmatpush.msra.mxu0 0.0
      %1127 = vmatpush.msra.mxu0 0.0
      %1128 = vmatpush.msra.mxu0 0.0
      %1129 = vmatpush.msra.mxu0 0.0
      %1130 = vmatpush.msra.mxu0 0.0
      %1131 = vmatpush.msra.mxu0 0.0
      %1132 = vmatpush.msra.mxu0 0.0
      %1133 = vmatpush.msra.mxu0 0.0
      %v1134 = vand.u32 %v1028, 4294901760
      %1135 = vmatpush.msra.mxu0 %v1134
      %v1136 = vand.u32 %v1024, 4294901760
      %1137 = vmatpush.msra.mxu0 %v1136
      %v1138 = vand.u32 %v1034, 4294901760
      %v1139 = vsub.f32 %v1034, %v1138
      %v1140 = vand.u32 %v1139, 4294901760
      %1141 = vmatmul.f32.gmra.mxu0 %v1140
      %v1142 = vpop.f32.mrf.mxu0
      %v1143 = vadd.f32 %v1118, %v1142
      %1144 = vdwg.mxu0
      %1145 = vmatpush.msra.mxu0 0.0
      %1146 = vmatpush.msra.mxu0 0.0
      %1147 = vmatpush.msra.mxu0 0.0
      %1148 = vmatpush.msra.mxu0 0.0
      %1149 = vmatpush.msra.mxu0 0.0
      %1150 = vmatpush.msra.mxu0 0.0
      %1151 = vmatpush.msra.mxu0 0.0
      %1152 = vmatpush.msra.mxu0 0.0
      %1153 = vmatpush.msra.mxu0 0.0
      %1154 = vmatpush.msra.mxu0 0.0
      %1155 = vmatpush.msra.mxu0 0.0
      %1156 = vmatpush.msra.mxu0 0.0
      %1157 = vmatpush.msra.mxu0 0.0
      %1158 = vmatpush.msra.mxu0 0.0
      %v1159 = vand.u32 %v1028, 4294901760
      %v1160 = vsub.f32 %v1028, %v1159
      %v1161 = vand.u32 %v1160, 4294901760
      %1162 = vmatpush.msra.mxu0 %v1161
      %v1163 = vand.u32 %v1024, 4294901760
      %v1164 = vsub.f32 %v1024, %v1163
      %v1165 = vand.u32 %v1164, 4294901760
      %1166 = vmatpush.msra.mxu0 %v1165
      %v1167 = vand.u32 %v1034, 4294901760
      %1168 = vmatmul.f32.gmra.mxu0 %v1167
      %v1169 = vpop.f32.mrf.mxu0
      %v1170 = vadd.f32 %v1143, %v1169
      %1171 = vdwg.mxu0
      %1172 = vmatpush.msra.mxu0 0.0
      %1173 = vmatpush.msra.mxu0 0.0
      %1174 = vmatpush.msra.mxu0 0.0
      %1175 = vmatpush.msra.mxu0 0.0
      %1176 = vmatpush.msra.mxu0 0.0
      %1177 = vmatpush.msra.mxu0 0.0
      %1178 = vmatpush.msra.mxu0 0.0
      %1179 = vmatpush.msra.mxu0 0.0
      %1180 = vmatpush.msra.mxu0 0.0
      %1181 = vmatpush.msra.mxu0 0.0
      %1182 = vmatpush.msra.mxu0 0.0
      %1183 = vmatpush.msra.mxu0 0.0
      %1184 = vmatpush.msra.mxu0 0.0
      %1185 = vmatpush.msra.mxu0 0.0
      %v1186 = vand.u32 %v1028, 4294901760
      %1187 = vmatpush.msra.mxu0 %v1186
      %v1188 = vand.u32 %v1024, 4294901760
      %1189 = vmatpush.msra.mxu0 %v1188
      %v1190 = vand.u32 %v1034, 4294901760
      %1191 = vmatmul.f32.gmra.mxu0 %v1190
      %v1192 = vpop.f32.mrf.mxu0
      %v1193 = vadd.f32 %v1170, %v1192
      %1194 = vdwg.mxu0
      %v1196 = vsel %vm1032, %v847, 0
      %1198 = vmatpush.msra.mxu0 0.0
      %1199 = vmatpush.msra.mxu0 0.0
      %1200 = vmatpush.msra.mxu0 0.0
      %1201 = vmatpush.msra.mxu0 0.0
      %1202 = vmatpush.msra.mxu0 0.0
      %1203 = vmatpush.msra.mxu0 0.0
      %1204 = vmatpush.msra.mxu0 0.0
      %1205 = vmatpush.msra.mxu0 0.0
      %1206 = vmatpush.msra.mxu0 0.0
      %1207 = vmatpush.msra.mxu0 0.0
      %1208 = vmatpush.msra.mxu0 0.0
      %1209 = vmatpush.msra.mxu0 0.0
      %1210 = vmatpush.msra.mxu0 0.0
      %1211 = vmatpush.msra.mxu0 0.0
      %v1212 = vand.u32 %v845, 4294901760
      %1213 = vmatpush.msra.mxu0 %v1212
      %v1214 = vand.u32 %v841, 4294901760
      %1215 = vmatpush.msra.mxu0 %v1214
      %v1216 = vand.u32 %v1196, 4294901760
      %v1217 = vsub.f32 %v1196, %v1216
      %v1218 = vand.u32 %v1217, 4294901760
      %v1219 = vsub.f32 %v1217, %v1218
      %v1220 = vand.u32 %v1219, 4294901760
      %1221 = vmatmul.f32.gmra.mxu0 %v1220
      %v1222 = vpop.f32.mrf.mxu0
      %v1223 = vadd.f32 %v1193, %v1222
      %1224 = vdwg.mxu0
      %1225 = vmatpush.msra.mxu0 0.0
      %1226 = vmatpush.msra.mxu0 0.0
      %1227 = vmatpush.msra.mxu0 0.0
      %1228 = vmatpush.msra.mxu0 0.0
      %1229 = vmatpush.msra.mxu0 0.0
      %1230 = vmatpush.msra.mxu0 0.0
      %1231 = vmatpush.msra.mxu0 0.0
      %1232 = vmatpush.msra.mxu0 0.0
      %1233 = vmatpush.msra.mxu0 0.0
      %1234 = vmatpush.msra.mxu0 0.0
      %1235 = vmatpush.msra.mxu0 0.0
      %1236 = vmatpush.msra.mxu0 0.0
      %1237 = vmatpush.msra.mxu0 0.0
      %1238 = vmatpush.msra.mxu0 0.0
      %v1239 = vand.u32 %v845, 4294901760
      %v1240 = vsub.f32 %v845, %v1239
      %v1241 = vand.u32 %v1240, 4294901760
      %v1242 = vsub.f32 %v1240, %v1241
      %v1243 = vand.u32 %v1242, 4294901760
      %1244 = vmatpush.msra.mxu0 %v1243
      %v1245 = vand.u32 %v841, 4294901760
      %v1246 = vsub.f32 %v841, %v1245
      %v1247 = vand.u32 %v1246, 4294901760
      %v1248 = vsub.f32 %v1246, %v1247
      %v1249 = vand.u32 %v1248, 4294901760
      %1250 = vmatpush.msra.mxu0 %v1249
      %v1251 = vand.u32 %v1196, 4294901760
      %1252 = vmatmul.f32.gmra.mxu0 %v1251
      %v1253 = vpop.f32.mrf.mxu0
      %v1254 = vadd.f32 %v1223, %v1253
      %1255 = vdwg.mxu0
      %1256 = vmatpush.msra.mxu0 0.0
      %1257 = vmatpush.msra.mxu0 0.0
      %1258 = vmatpush.msra.mxu0 0.0
      %1259 = vmatpush.msra.mxu0 0.0
      %1260 = vmatpush.msra.mxu0 0.0
      %1261 = vmatpush.msra.mxu0 0.0
      %1262 = vmatpush.msra.mxu0 0.0
      %1263 = vmatpush.msra.mxu0 0.0
      %1264 = vmatpush.msra.mxu0 0.0
      %1265 = vmatpush.msra.mxu0 0.0
      %1266 = vmatpush.msra.mxu0 0.0
      %1267 = vmatpush.msra.mxu0 0.0
      %1268 = vmatpush.msra.mxu0 0.0
      %1269 = vmatpush.msra.mxu0 0.0
      %v1270 = vand.u32 %v845, 4294901760
      %v1271 = vsub.f32 %v845, %v1270
      %1272 = vmatpush.msra.mxu0 %v1271
      %v1273 = vand.u32 %v841, 4294901760
      %v1274 = vsub.f32 %v841, %v1273
      %1275 = vmatpush.msra.mxu0 %v1274
      %v1276 = vand.u32 %v1196, 4294901760
      %v1277 = vsub.f32 %v1196, %v1276
      %1278 = vmatmul.f32.gmra.mxu0 %v1277
      %v1279 = vpop.f32.mrf.mxu0
      %v1280 = vadd.f32 %v1254, %v1279
      %1281 = vdwg.mxu0
      %1282 = vmatpush.msra.mxu0 0.0
      %1283 = vmatpush.msra.mxu0 0.0
      %1284 = vmatpush.msra.mxu0 0.0
      %1285 = vmatpush.msra.mxu0 0.0
      %1286 = vmatpush.msra.mxu0 0.0
      %1287 = vmatpush.msra.mxu0 0.0
      %1288 = vmatpush.msra.mxu0 0.0
      %1289 = vmatpush.msra.mxu0 0.0
      %1290 = vmatpush.msra.mxu0 0.0
      %1291 = vmatpush.msra.mxu0 0.0
      %1292 = vmatpush.msra.mxu0 0.0
      %1293 = vmatpush.msra.mxu0 0.0
      %1294 = vmatpush.msra.mxu0 0.0
      %1295 = vmatpush.msra.mxu0 0.0
      %v1296 = vand.u32 %v845, 4294901760
      %1297 = vmatpush.msra.mxu0 %v1296
      %v1298 = vand.u32 %v841, 4294901760
      %1299 = vmatpush.msra.mxu0 %v1298
      %v1300 = vand.u32 %v1196, 4294901760
      %v1301 = vsub.f32 %v1196, %v1300
      %v1302 = vand.u32 %v1301, 4294901760
      %1303 = vmatmul.f32.gmra.mxu0 %v1302
      %v1304 = vpop.f32.mrf.mxu0
      %v1305 = vadd.f32 %v1280, %v1304
      %1306 = vdwg.mxu0
      %1307 = vmatpush.msra.mxu0 0.0
      %1308 = vmatpush.msra.mxu0 0.0
      %1309 = vmatpush.msra.mxu0 0.0
      %1310 = vmatpush.msra.mxu0 0.0
      %1311 = vmatpush.msra.mxu0 0.0
      %1312 = vmatpush.msra.mxu0 0.0
      %1313 = vmatpush.msra.mxu0 0.0
      %1314 = vmatpush.msra.mxu0 0.0
      %1315 = vmatpush.msra.mxu0 0.0
      %1316 = vmatpush.msra.mxu0 0.0
      %1317 = vmatpush.msra.mxu0 0.0
      %1318 = vmatpush.msra.mxu0 0.0
      %1319 = vmatpush.msra.mxu0 0.0
      %1320 = vmatpush.msra.mxu0 0.0
      %v1321 = vand.u32 %v845, 4294901760
      %v1322 = vsub.f32 %v845, %v1321
      %v1323 = vand.u32 %v1322, 4294901760
      %1324 = vmatpush.msra.mxu0 %v1323
      %v1325 = vand.u32 %v841, 4294901760
      %v1326 = vsub.f32 %v841, %v1325
      %v1327 = vand.u32 %v1326, 4294901760
      %1328 = vmatpush.msra.mxu0 %v1327
      %v1329 = vand.u32 %v1196, 4294901760
      %1330 = vmatmul.f32.gmra.mxu0 %v1329
      %v1331 = vpop.f32.mrf.mxu0
      %v1332 = vadd.f32 %v1305, %v1331
      %1333 = vdwg.mxu0
      %1334 = vmatpush.msra.mxu0 0.0
      %1335 = vmatpush.msra.mxu0 0.0
      %1336 = vmatpush.msra.mxu0 0.0
      %1337 = vmatpush.msra.mxu0 0.0
      %1338 = vmatpush.msra.mxu0 0.0
      %1339 = vmatpush.msra.mxu0 0.0
      %1340 = vmatpush.msra.mxu0 0.0
      %1341 = vmatpush.msra.mxu0 0.0
      %1342 = vmatpush.msra.mxu0 0.0
      %1343 = vmatpush.msra.mxu0 0.0
      %1344 = vmatpush.msra.mxu0 0.0
      %1345 = vmatpush.msra.mxu0 0.0
      %1346 = vmatpush.msra.mxu0 0.0
      %1347 = vmatpush.msra.mxu0 0.0
      %v1348 = vand.u32 %v845, 4294901760
      %1349 = vmatpush.msra.mxu0 %v1348
      %v1350 = vand.u32 %v841, 4294901760
      %1351 = vmatpush.msra.mxu0 %v1350
      %v1352 = vand.u32 %v1196, 4294901760
      %1353 = vmatmul.f32.gmra.mxu0 %v1352
      %v1354 = vpop.f32.mrf.mxu0
      %v1355 = vadd.f32 %v1332, %v1354
      %1356 = vdwg.mxu0
      %s1357 = scalar_lea.vmem %s3, 8
      %v1358 = vld [vmem:[%s1357] sm:$0xf]
      %v1360 = vsel %vm666, %v1358, 0
      %1362 = vmatpush.msra.mxu0 0.0
      %1363 = vmatpush.msra.mxu0 0.0
      %1364 = vmatpush.msra.mxu0 0.0
      %1365 = vmatpush.msra.mxu0 0.0
      %1366 = vmatpush.msra.mxu0 0.0
      %1367 = vmatpush.msra.mxu0 0.0
      %1368 = vmatpush.msra.mxu0 0.0
      %1369 = vmatpush.msra.mxu0 0.0
      %1370 = vmatpush.msra.mxu0 0.0
      %1371 = vmatpush.msra.mxu0 0.0
      %1372 = vmatpush.msra.mxu0 0.0
      %1373 = vmatpush.msra.mxu0 0.0
      %1374 = vmatpush.msra.mxu0 0.0
      %1375 = vmatpush.msra.mxu0 0.0
      %1376 = vmatpush.msra.mxu0 0.0
      %v1377 = vand.u32 %v1360, 4294901760
      %1378 = vmatpush.msra.mxu0 %v1377
      %v1379 = vand.u32 %v661, 4294901760
      %v1380 = vsub.f32 %v661, %v1379
      %v1381 = vand.u32 %v1380, 4294901760
      %v1382 = vsub.f32 %v1380, %v1381
      %v1383 = vand.u32 %v1382, 4294901760
      %1384 = vmatmul.f32.gmra.mxu0 %v1383
      %v1385 = vpop.f32.mrf.mxu0
      %v1386 = vadd.f32 0.0, %v1385
      %v1387 = vand.u32 %v664, 4294901760
      %v1388 = vsub.f32 %v664, %v1387
      %v1389 = vand.u32 %v1388, 4294901760
      %v1390 = vsub.f32 %v1388, %v1389
      %v1391 = vand.u32 %v1390, 4294901760
      %1392 = vmatmul.f32.gmra.mxu0 %v1391
      %v1393 = vpop.f32.mrf.mxu0
      %v1394 = vadd.f32 0.0, %v1393
      %1395 = vdwg.mxu0
      %1396 = vmatpush.msra.mxu0 0.0
      %1397 = vmatpush.msra.mxu0 0.0
      %1398 = vmatpush.msra.mxu0 0.0
      %1399 = vmatpush.msra.mxu0 0.0
      %1400 = vmatpush.msra.mxu0 0.0
      %1401 = vmatpush.msra.mxu0 0.0
      %1402 = vmatpush.msra.mxu0 0.0
      %1403 = vmatpush.msra.mxu0 0.0
      %1404 = vmatpush.msra.mxu0 0.0
      %1405 = vmatpush.msra.mxu0 0.0
      %1406 = vmatpush.msra.mxu0 0.0
      %1407 = vmatpush.msra.mxu0 0.0
      %1408 = vmatpush.msra.mxu0 0.0
      %1409 = vmatpush.msra.mxu0 0.0
      %1410 = vmatpush.msra.mxu0 0.0
      %v1411 = vand.u32 %v1360, 4294901760
      %v1412 = vsub.f32 %v1360, %v1411
      %v1413 = vand.u32 %v1412, 4294901760
      %v1414 = vsub.f32 %v1412, %v1413
      %v1415 = vand.u32 %v1414, 4294901760
      %1416 = vmatpush.msra.mxu0 %v1415
      %v1417 = vand.u32 %v661, 4294901760
      %1418 = vmatmul.f32.gmra.mxu0 %v1417
      %v1419 = vpop.f32.mrf.mxu0
      %v1420 = vadd.f32 %v1386, %v1419
      %v1421 = vand.u32 %v664, 4294901760
      %1422 = vmatmul.f32.gmra.mxu0 %v1421
      %v1423 = vpop.f32.mrf.mxu0
      %v1424 = vadd.f32 %v1394, %v1423
      %1425 = vdwg.mxu0
      %1426 = vmatpush.msra.mxu0 0.0
      %1427 = vmatpush.msra.mxu0 0.0
      %1428 = vmatpush.msra.mxu0 0.0
      %1429 = vmatpush.msra.mxu0 0.0
      %1430 = vmatpush.msra.mxu0 0.0
      %1431 = vmatpush.msra.mxu0 0.0
      %1432 = vmatpush.msra.mxu0 0.0
      %1433 = vmatpush.msra.mxu0 0.0
      %1434 = vmatpush.msra.mxu0 0.0
      %1435 = vmatpush.msra.mxu0 0.0
      %1436 = vmatpush.msra.mxu0 0.0
      %1437 = vmatpush.msra.mxu0 0.0
      %1438 = vmatpush.msra.mxu0 0.0
      %1439 = vmatpush.msra.mxu0 0.0
      %1440 = vmatpush.msra.mxu0 0.0
      %v1441 = vand.u32 %v1360, 4294901760
      %v1442 = vsub.f32 %v1360, %v1441
      %1443 = vmatpush.msra.mxu0 %v1442
      %v1444 = vand.u32 %v661, 4294901760
      %v1445 = vsub.f32 %v661, %v1444
      %1446 = vmatmul.f32.gmra.mxu0 %v1445
      %v1447 = vpop.f32.mrf.mxu0
      %v1448 = vadd.f32 %v1420, %v1447
      %v1449 = vand.u32 %v664, 4294901760
      %v1450 = vsub.f32 %v664, %v1449
      %1451 = vmatmul.f32.gmra.mxu0 %v1450
      %v1452 = vpop.f32.mrf.mxu0
      %v1453 = vadd.f32 %v1424, %v1452
      %1454 = vdwg.mxu0
      %1455 = vmatpush.msra.mxu0 0.0
      %1456 = vmatpush.msra.mxu0 0.0
      %1457 = vmatpush.msra.mxu0 0.0
      %1458 = vmatpush.msra.mxu0 0.0
      %1459 = vmatpush.msra.mxu0 0.0
      %1460 = vmatpush.msra.mxu0 0.0
      %1461 = vmatpush.msra.mxu0 0.0
      %1462 = vmatpush.msra.mxu0 0.0
      %1463 = vmatpush.msra.mxu0 0.0
      %1464 = vmatpush.msra.mxu0 0.0
      %1465 = vmatpush.msra.mxu0 0.0
      %1466 = vmatpush.msra.mxu0 0.0
      %1467 = vmatpush.msra.mxu0 0.0
      %1468 = vmatpush.msra.mxu0 0.0
      %1469 = vmatpush.msra.mxu0 0.0
      %v1470 = vand.u32 %v1360, 4294901760
      %1471 = vmatpush.msra.mxu0 %v1470
      %v1472 = vand.u32 %v661, 4294901760
      %v1473 = vsub.f32 %v661, %v1472
      %v1474 = vand.u32 %v1473, 4294901760
      %1475 = vmatmul.f32.gmra.mxu0 %v1474
      %v1476 = vpop.f32.mrf.mxu0
      %v1477 = vadd.f32 %v1448, %v1476
      %v1478 = vand.u32 %v664, 4294901760
      %v1479 = vsub.f32 %v664, %v1478
      %v1480 = vand.u32 %v1479, 4294901760
      %1481 = vmatmul.f32.gmra.mxu0 %v1480
      %v1482 = vpop.f32.mrf.mxu0
      %v1483 = vadd.f32 %v1453, %v1482
      %1484 = vdwg.mxu0
      %1485 = vmatpush.msra.mxu0 0.0
      %1486 = vmatpush.msra.mxu0 0.0
      %1487 = vmatpush.msra.mxu0 0.0
      %1488 = vmatpush.msra.mxu0 0.0
      %1489 = vmatpush.msra.mxu0 0.0
      %1490 = vmatpush.msra.mxu0 0.0
      %1491 = vmatpush.msra.mxu0 0.0
      %1492 = vmatpush.msra.mxu0 0.0
      %1493 = vmatpush.msra.mxu0 0.0
      %1494 = vmatpush.msra.mxu0 0.0
      %1495 = vmatpush.msra.mxu0 0.0
      %1496 = vmatpush.msra.mxu0 0.0
      %1497 = vmatpush.msra.mxu0 0.0
      %1498 = vmatpush.msra.mxu0 0.0
      %1499 = vmatpush.msra.mxu0 0.0
      %v1500 = vand.u32 %v1360, 4294901760
      %v1501 = vsub.f32 %v1360, %v1500
      %v1502 = vand.u32 %v1501, 4294901760
      %1503 = vmatpush.msra.mxu0 %v1502
      %v1504 = vand.u32 %v661, 4294901760
      %1505 = vmatmul.f32.gmra.mxu0 %v1504
      %v1506 = vpop.f32.mrf.mxu0
      %v1507 = vadd.f32 %v1477, %v1506
      %v1508 = vand.u32 %v664, 4294901760
      %1509 = vmatmul.f32.gmra.mxu0 %v1508
      %v1510 = vpop.f32.mrf.mxu0
      %v1511 = vadd.f32 %v1483, %v1510
      %1512 = vdwg.mxu0
      %1513 = vmatpush.msra.mxu0 0.0
      %1514 = vmatpush.msra.mxu0 0.0
      %1515 = vmatpush.msra.mxu0 0.0
      %1516 = vmatpush.msra.mxu0 0.0
      %1517 = vmatpush.msra.mxu0 0.0
      %1518 = vmatpush.msra.mxu0 0.0
      %1519 = vmatpush.msra.mxu0 0.0
      %1520 = vmatpush.msra.mxu0 0.0
      %1521 = vmatpush.msra.mxu0 0.0
      %1522 = vmatpush.msra.mxu0 0.0
      %1523 = vmatpush.msra.mxu0 0.0
      %1524 = vmatpush.msra.mxu0 0.0
      %1525 = vmatpush.msra.mxu0 0.0
      %1526 = vmatpush.msra.mxu0 0.0
      %1527 = vmatpush.msra.mxu0 0.0
      %v1528 = vand.u32 %v1360, 4294901760
      %1529 = vmatpush.msra.mxu0 %v1528
      %v1530 = vand.u32 %v661, 4294901760
      %1531 = vmatmul.f32.gmra.mxu0 %v1530
      %v1532 = vpop.f32.mrf.mxu0
      %v1533 = vadd.f32 %v1507, %v1532
      %v1534 = vand.u32 %v664, 4294901760
      %1535 = vmatmul.f32.gmra.mxu0 %v1534
      %v1536 = vpop.f32.mrf.mxu0
      %v1537 = vadd.f32 %v1511, %v1536
      %1538 = vdwg.mxu0
      %s1539 = scalar_lea.vmem %s2, 16
      %v1540 = vld [vmem:[%s1539] sm:$0x7f]
      %v1542 = vsel %vm1032, %v1540, 0
      %1544 = vmatpush.msra.mxu0 0.0
      %1545 = vmatpush.msra.mxu0 0.0
      %1546 = vmatpush.msra.mxu0 0.0
      %1547 = vmatpush.msra.mxu0 0.0
      %1548 = vmatpush.msra.mxu0 0.0
      %1549 = vmatpush.msra.mxu0 0.0
      %1550 = vmatpush.msra.mxu0 0.0
      %1551 = vmatpush.msra.mxu0 0.0
      %1552 = vmatpush.msra.mxu0 0.0
      %1553 = vmatpush.msra.mxu0 0.0
      %1554 = vmatpush.msra.mxu0 0.0
      %1555 = vmatpush.msra.mxu0 0.0
      %1556 = vmatpush.msra.mxu0 0.0
      %1557 = vmatpush.msra.mxu0 0.0
      %v1558 = vand.u32 %v1537, 4294901760
      %1559 = vmatpush.msra.mxu0 %v1558
      %v1560 = vand.u32 %v1533, 4294901760
      %1561 = vmatpush.msra.mxu0 %v1560
      %v1562 = vand.u32 %v1542, 4294901760
      %v1563 = vsub.f32 %v1542, %v1562
      %v1564 = vand.u32 %v1563, 4294901760
      %v1565 = vsub.f32 %v1563, %v1564
      %v1566 = vand.u32 %v1565, 4294901760
      %1567 = vmatmul.f32.gmra.mxu0 %v1566
      %v1568 = vpop.f32.mrf.mxu0
      %v1569 = vadd.f32 0.0, %v1568
      %1570 = vdwg.mxu0
      %1571 = vmatpush.msra.mxu0 0.0
      %1572 = vmatpush.msra.mxu0 0.0
      %1573 = vmatpush.msra.mxu0 0.0
      %1574 = vmatpush.msra.mxu0 0.0
      %1575 = vmatpush.msra.mxu0 0.0
      %1576 = vmatpush.msra.mxu0 0.0
      %1577 = vmatpush.msra.mxu0 0.0
      %1578 = vmatpush.msra.mxu0 0.0
      %1579 = vmatpush.msra.mxu0 0.0
      %1580 = vmatpush.msra.mxu0 0.0
      %1581 = vmatpush.msra.mxu0 0.0
      %1582 = vmatpush.msra.mxu0 0.0
      %1583 = vmatpush.msra.mxu0 0.0
      %1584 = vmatpush.msra.mxu0 0.0
      %v1585 = vand.u32 %v1537, 4294901760
      %v1586 = vsub.f32 %v1537, %v1585
      %v1587 = vand.u32 %v1586, 4294901760
      %v1588 = vsub.f32 %v1586, %v1587
      %v1589 = vand.u32 %v1588, 4294901760
      %1590 = vmatpush.msra.mxu0 %v1589
      %v1591 = vand.u32 %v1533, 4294901760
      %v1592 = vsub.f32 %v1533, %v1591
      %v1593 = vand.u32 %v1592, 4294901760
      %v1594 = vsub.f32 %v1592, %v1593
      %v1595 = vand.u32 %v1594, 4294901760
      %1596 = vmatpush.msra.mxu0 %v1595
      %v1597 = vand.u32 %v1542, 4294901760
      %1598 = vmatmul.f32.gmra.mxu0 %v1597
      %v1599 = vpop.f32.mrf.mxu0
      %v1600 = vadd.f32 %v1569, %v1599
      %1601 = vdwg.mxu0
      %1602 = vmatpush.msra.mxu0 0.0
      %1603 = vmatpush.msra.mxu0 0.0
      %1604 = vmatpush.msra.mxu0 0.0
      %1605 = vmatpush.msra.mxu0 0.0
      %1606 = vmatpush.msra.mxu0 0.0
      %1607 = vmatpush.msra.mxu0 0.0
      %1608 = vmatpush.msra.mxu0 0.0
      %1609 = vmatpush.msra.mxu0 0.0
      %1610 = vmatpush.msra.mxu0 0.0
      %1611 = vmatpush.msra.mxu0 0.0
      %1612 = vmatpush.msra.mxu0 0.0
      %1613 = vmatpush.msra.mxu0 0.0
      %1614 = vmatpush.msra.mxu0 0.0
      %1615 = vmatpush.msra.mxu0 0.0
      %v1616 = vand.u32 %v1537, 4294901760
      %v1617 = vsub.f32 %v1537, %v1616
      %1618 = vmatpush.msra.mxu0 %v1617
      %v1619 = vand.u32 %v1533, 4294901760
      %v1620 = vsub.f32 %v1533, %v1619
      %1621 = vmatpush.msra.mxu0 %v1620
      %v1622 = vand.u32 %v1542, 4294901760
      %v1623 = vsub.f32 %v1542, %v1622
      %1624 = vmatmul.f32.gmra.mxu0 %v1623
      %v1625 = vpop.f32.mrf.mxu0
      %v1626 = vadd.f32 %v1600, %v1625
      %1627 = vdwg.mxu0
      %1628 = vmatpush.msra.mxu0 0.0
      %1629 = vmatpush.msra.mxu0 0.0
      %1630 = vmatpush.msra.mxu0 0.0
      %1631 = vmatpush.msra.mxu0 0.0
      %1632 = vmatpush.msra.mxu0 0.0
      %1633 = vmatpush.msra.mxu0 0.0
      %1634 = vmatpush.msra.mxu0 0.0
      %1635 = vmatpush.msra.mxu0 0.0
      %1636 = vmatpush.msra.mxu0 0.0
      %1637 = vmatpush.msra.mxu0 0.0
      %1638 = vmatpush.msra.mxu0 0.0
      %1639 = vmatpush.msra.mxu0 0.0
      %1640 = vmatpush.msra.mxu0 0.0
      %1641 = vmatpush.msra.mxu0 0.0
      %v1642 = vand.u32 %v1537, 4294901760
      %1643 = vmatpush.msra.mxu0 %v1642
      %v1644 = vand.u32 %v1533, 4294901760
      %1645 = vmatpush.msra.mxu0 %v1644
      %v1646 = vand.u32 %v1542, 4294901760
      %v1647 = vsub.f32 %v1542, %v1646
      %v1648 = vand.u32 %v1647, 4294901760
      %1649 = vmatmul.f32.gmra.mxu0 %v1648
      %v1650 = vpop.f32.mrf.mxu0
      %v1651 = vadd.f32 %v1626, %v1650
      %1652 = vdwg.mxu0
      %1653 = vmatpush.msra.mxu0 0.0
      %1654 = vmatpush.msra.mxu0 0.0
      %1655 = vmatpush.msra.mxu0 0.0
      %1656 = vmatpush.msra.mxu0 0.0
      %1657 = vmatpush.msra.mxu0 0.0
      %1658 = vmatpush.msra.mxu0 0.0
      %1659 = vmatpush.msra.mxu0 0.0
      %1660 = vmatpush.msra.mxu0 0.0
      %1661 = vmatpush.msra.mxu0 0.0
      %1662 = vmatpush.msra.mxu0 0.0
      %1663 = vmatpush.msra.mxu0 0.0
      %1664 = vmatpush.msra.mxu0 0.0
      %1665 = vmatpush.msra.mxu0 0.0
      %1666 = vmatpush.msra.mxu0 0.0
      %v1667 = vand.u32 %v1537, 4294901760
      %v1668 = vsub.f32 %v1537, %v1667
      %v1669 = vand.u32 %v1668, 4294901760
      %1670 = vmatpush.msra.mxu0 %v1669
      %v1671 = vand.u32 %v1533, 4294901760
      %v1672 = vsub.f32 %v1533, %v1671
      %v1673 = vand.u32 %v1672, 4294901760
      %1674 = vmatpush.msra.mxu0 %v1673
      %v1675 = vand.u32 %v1542, 4294901760
      %1676 = vmatmul.f32.gmra.mxu0 %v1675
      %v1677 = vpop.f32.mrf.mxu0
      %v1678 = vadd.f32 %v1651, %v1677
      %1679 = vdwg.mxu0
      %1680 = vmatpush.msra.mxu0 0.0
      %1681 = vmatpush.msra.mxu0 0.0
      %1682 = vmatpush.msra.mxu0 0.0
      %1683 = vmatpush.msra.mxu0 0.0
      %1684 = vmatpush.msra.mxu0 0.0
      %1685 = vmatpush.msra.mxu0 0.0
      %1686 = vmatpush.msra.mxu0 0.0
      %1687 = vmatpush.msra.mxu0 0.0
      %1688 = vmatpush.msra.mxu0 0.0
      %1689 = vmatpush.msra.mxu0 0.0
      %1690 = vmatpush.msra.mxu0 0.0
      %1691 = vmatpush.msra.mxu0 0.0
      %1692 = vmatpush.msra.mxu0 0.0
      %1693 = vmatpush.msra.mxu0 0.0
      %v1694 = vand.u32 %v1537, 4294901760
      %1695 = vmatpush.msra.mxu0 %v1694
      %v1696 = vand.u32 %v1533, 4294901760
      %1697 = vmatpush.msra.mxu0 %v1696
      %v1698 = vand.u32 %v1542, 4294901760
      %1699 = vmatmul.f32.gmra.mxu0 %v1698
      %v1700 = vpop.f32.mrf.mxu0
      %v1701 = vadd.f32 %v1678, %v1700
      %1702 = vdwg.mxu0
      %v1703 = vadd.f32 %v1355, %v1701
      %v1704 = vld [vmem:[%s4] sm:$0x1]
      %v1706 = vperm.slane %v1704, 0
      %v1708 = vadd.f32 %v1703, %v1706
      %v1709 = vmax.f32 %v1708, 0.0
      %v1710 = vld [vmem:[%s6] sm:$0xff]
      %vm1711 = vcmask 64512
      %v1713 = vsel %vm1711, %v1709, 0
      %1715 = vmatpush.msra.mxu0 0.0
      %1716 = vmatpush.msra.mxu0 0.0
      %1717 = vmatpush.msra.mxu0 0.0
      %1718 = vmatpush.msra.mxu0 0.0
      %1719 = vmatpush.msra.mxu0 0.0
      %1720 = vmatpush.msra.mxu0 0.0
      %1721 = vmatpush.msra.mxu0 0.0
      %1722 = vmatpush.msra.mxu0 0.0
      %1723 = vmatpush.msra.mxu0 0.0
      %1724 = vmatpush.msra.mxu0 0.0
      %1725 = vmatpush.msra.mxu0 0.0
      %1726 = vmatpush.msra.mxu0 0.0
      %1727 = vmatpush.msra.mxu0 0.0
      %1728 = vmatpush.msra.mxu0 0.0
      %1729 = vmatpush.msra.mxu0 0.0
      %v1730 = vand.u32 %v1710, 4294901760
      %1731 = vmatpush.msra.mxu0 %v1730
      %v1732 = vand.u32 %v1713, 4294901760
      %v1733 = vsub.f32 %v1713, %v1732
      %v1734 = vand.u32 %v1733, 4294901760
      %v1735 = vsub.f32 %v1733, %v1734
      %v1736 = vand.u32 %v1735, 4294901760
      %1737 = vmatmul.f32.gmra.mxu0 %v1736
      %v1738 = vpop.f32.mrf.mxu0
      %v1739 = vadd.f32 0.0, %v1738
      %1740 = vdwg.mxu0
      %1741 = vmatpush.msra.mxu0 0.0
      %1742 = vmatpush.msra.mxu0 0.0
      %1743 = vmatpush.msra.mxu0 0.0
      %1744 = vmatpush.msra.mxu0 0.0
      %1745 = vmatpush.msra.mxu0 0.0
      %1746 = vmatpush.msra.mxu0 0.0
      %1747 = vmatpush.msra.mxu0 0.0
      %1748 = vmatpush.msra.mxu0 0.0
      %1749 = vmatpush.msra.mxu0 0.0
      %1750 = vmatpush.msra.mxu0 0.0
      %1751 = vmatpush.msra.mxu0 0.0
      %1752 = vmatpush.msra.mxu0 0.0
      %1753 = vmatpush.msra.mxu0 0.0
      %1754 = vmatpush.msra.mxu0 0.0
      %1755 = vmatpush.msra.mxu0 0.0
      %v1756 = vand.u32 %v1710, 4294901760
      %v1757 = vsub.f32 %v1710, %v1756
      %v1758 = vand.u32 %v1757, 4294901760
      %v1759 = vsub.f32 %v1757, %v1758
      %v1760 = vand.u32 %v1759, 4294901760
      %1761 = vmatpush.msra.mxu0 %v1760
      %v1762 = vand.u32 %v1713, 4294901760
      %1763 = vmatmul.f32.gmra.mxu0 %v1762
      %v1764 = vpop.f32.mrf.mxu0
      %v1765 = vadd.f32 %v1739, %v1764
      %1766 = vdwg.mxu0
      %1767 = vmatpush.msra.mxu0 0.0
      %1768 = vmatpush.msra.mxu0 0.0
      %1769 = vmatpush.msra.mxu0 0.0
      %1770 = vmatpush.msra.mxu0 0.0
      %1771 = vmatpush.msra.mxu0 0.0
      %1772 = vmatpush.msra.mxu0 0.0
      %1773 = vmatpush.msra.mxu0 0.0
      %1774 = vmatpush.msra.mxu0 0.0
      %1775 = vmatpush.msra.mxu0 0.0
      %1776 = vmatpush.msra.mxu0 0.0
      %1777 = vmatpush.msra.mxu0 0.0
      %1778 = vmatpush.msra.mxu0 0.0
      %1779 = vmatpush.msra.mxu0 0.0
      %1780 = vmatpush.msra.mxu0 0.0
      %1781 = vmatpush.msra.mxu0 0.0
      %v1782 = vand.u32 %v1710, 4294901760
      %v1783 = vsub.f32 %v1710, %v1782
      %1784 = vmatpush.msra.mxu0 %v1783
      %v1785 = vand.u32 %v1713, 4294901760
      %v1786 = vsub.f32 %v1713, %v1785
      %1787 = vmatmul.f32.gmra.mxu0 %v1786
      %v1788 = vpop.f32.mrf.mxu0
      %v1789 = vadd.f32 %v1765, %v1788
      %1790 = vdwg.mxu0
      %1791 = vmatpush.msra.mxu0 0.0
      %1792 = vmatpush.msra.mxu0 0.0
      %1793 = vmatpush.msra.mxu0 0.0
      %1794 = vmatpush.msra.mxu0 0.0
      %1795 = vmatpush.msra.mxu0 0.0
      %1796 = vmatpush.msra.mxu0 0.0
      %1797 = vmatpush.msra.mxu0 0.0
      %1798 = vmatpush.msra.mxu0 0.0
      %1799 = vmatpush.msra.mxu0 0.0
      %1800 = vmatpush.msra.mxu0 0.0
      %1801 = vmatpush.msra.mxu0 0.0
      %1802 = vmatpush.msra.mxu0 0.0
      %1803 = vmatpush.msra.mxu0 0.0
      %1804 = vmatpush.msra.mxu0 0.0
      %1805 = vmatpush.msra.mxu0 0.0
      %v1806 = vand.u32 %v1710, 4294901760
      %1807 = vmatpush.msra.mxu0 %v1806
      %v1808 = vand.u32 %v1713, 4294901760
      %v1809 = vsub.f32 %v1713, %v1808
      %v1810 = vand.u32 %v1809, 4294901760
      %1811 = vmatmul.f32.gmra.mxu0 %v1810
      %v1812 = vpop.f32.mrf.mxu0
      %v1813 = vadd.f32 %v1789, %v1812
      %1814 = vdwg.mxu0
      %1815 = vmatpush.msra.mxu0 0.0
      %1816 = vmatpush.msra.mxu0 0.0
      %1817 = vmatpush.msra.mxu0 0.0
      %1818 = vmatpush.msra.mxu0 0.0
      %1819 = vmatpush.msra.mxu0 0.0
      %1820 = vmatpush.msra.mxu0 0.0
      %1821 = vmatpush.msra.mxu0 0.0
      %1822 = vmatpush.msra.mxu0 0.0
      %1823 = vmatpush.msra.mxu0 0.0
      %1824 = vmatpush.msra.mxu0 0.0
      %1825 = vmatpush.msra.mxu0 0.0
      %1826 = vmatpush.msra.mxu0 0.0
      %1827 = vmatpush.msra.mxu0 0.0
      %1828 = vmatpush.msra.mxu0 0.0
      %1829 = vmatpush.msra.mxu0 0.0
      %v1830 = vand.u32 %v1710, 4294901760
      %v1831 = vsub.f32 %v1710, %v1830
      %v1832 = vand.u32 %v1831, 4294901760
      %1833 = vmatpush.msra.mxu0 %v1832
      %v1834 = vand.u32 %v1713, 4294901760
      %1835 = vmatmul.f32.gmra.mxu0 %v1834
      %v1836 = vpop.f32.mrf.mxu0
      %v1837 = vadd.f32 %v1813, %v1836
      %1838 = vdwg.mxu0
      %1839 = vmatpush.msra.mxu0 0.0
      %1840 = vmatpush.msra.mxu0 0.0
      %1841 = vmatpush.msra.mxu0 0.0
      %1842 = vmatpush.msra.mxu0 0.0
      %1843 = vmatpush.msra.mxu0 0.0
      %1844 = vmatpush.msra.mxu0 0.0
      %1845 = vmatpush.msra.mxu0 0.0
      %1846 = vmatpush.msra.mxu0 0.0
      %1847 = vmatpush.msra.mxu0 0.0
      %1848 = vmatpush.msra.mxu0 0.0
      %1849 = vmatpush.msra.mxu0 0.0
      %1850 = vmatpush.msra.mxu0 0.0
      %1851 = vmatpush.msra.mxu0 0.0
      %1852 = vmatpush.msra.mxu0 0.0
      %1853 = vmatpush.msra.mxu0 0.0
      %v1854 = vand.u32 %v1710, 4294901760
      %1855 = vmatpush.msra.mxu0 %v1854
      %v1856 = vand.u32 %v1713, 4294901760
      %1857 = vmatmul.f32.gmra.mxu0 %v1856
      %v1858 = vpop.f32.mrf.mxu0
      %v1859 = vadd.f32 %v1837, %v1858
      %1860 = vdwg.mxu0
      %v1861 = vld [vmem:[%s5] sm:$0x7]
      %s1862 = scalar_lea.vmem %s6, 8
      %v1863 = vld [vmem:[%s1862] sm:$0xff]
      %1864 = vmatpush.msra.mxu0 0.0
      %1865 = vmatpush.msra.mxu0 0.0
      %1866 = vmatpush.msra.mxu0 0.0
      %1867 = vmatpush.msra.mxu0 0.0
      %1868 = vmatpush.msra.mxu0 0.0
      %1869 = vmatpush.msra.mxu0 0.0
      %1870 = vmatpush.msra.mxu0 0.0
      %1871 = vmatpush.msra.mxu0 0.0
      %1872 = vmatpush.msra.mxu0 0.0
      %1873 = vmatpush.msra.mxu0 0.0
      %1874 = vmatpush.msra.mxu0 0.0
      %1875 = vmatpush.msra.mxu0 0.0
      %1876 = vmatpush.msra.mxu0 0.0
      %1877 = vmatpush.msra.mxu0 0.0
      %1878 = vmatpush.msra.mxu0 0.0
      %v1879 = vand.u32 %v1863, 4294901760
      %1880 = vmatpush.msra.mxu0 %v1879
      %v1881 = vand.u32 %v1713, 4294901760
      %v1882 = vsub.f32 %v1713, %v1881
      %v1883 = vand.u32 %v1882, 4294901760
      %v1884 = vsub.f32 %v1882, %v1883
      %v1885 = vand.u32 %v1884, 4294901760
      %1886 = vmatmul.f32.gmra.mxu0 %v1885
      %v1887 = vpop.f32.mrf.mxu0
      %v1888 = vadd.f32 0.0, %v1887
      %1889 = vdwg.mxu0
      %1890 = vmatpush.msra.mxu0 0.0
      %1891 = vmatpush.msra.mxu0 0.0
      %1892 = vmatpush.msra.mxu0 0.0
      %1893 = vmatpush.msra.mxu0 0.0
      %1894 = vmatpush.msra.mxu0 0.0
      %1895 = vmatpush.msra.mxu0 0.0
      %1896 = vmatpush.msra.mxu0 0.0
      %1897 = vmatpush.msra.mxu0 0.0
      %1898 = vmatpush.msra.mxu0 0.0
      %1899 = vmatpush.msra.mxu0 0.0
      %1900 = vmatpush.msra.mxu0 0.0
      %1901 = vmatpush.msra.mxu0 0.0
      %1902 = vmatpush.msra.mxu0 0.0
      %1903 = vmatpush.msra.mxu0 0.0
      %1904 = vmatpush.msra.mxu0 0.0
      %v1905 = vand.u32 %v1863, 4294901760
      %v1906 = vsub.f32 %v1863, %v1905
      %v1907 = vand.u32 %v1906, 4294901760
      %v1908 = vsub.f32 %v1906, %v1907
      %v1909 = vand.u32 %v1908, 4294901760
      %1910 = vmatpush.msra.mxu0 %v1909
      %v1911 = vand.u32 %v1713, 4294901760
      %1912 = vmatmul.f32.gmra.mxu0 %v1911
      %v1913 = vpop.f32.mrf.mxu0
      %v1914 = vadd.f32 %v1888, %v1913
      %1915 = vdwg.mxu0
      %1916 = vmatpush.msra.mxu0 0.0
      %1917 = vmatpush.msra.mxu0 0.0
      %1918 = vmatpush.msra.mxu0 0.0
      %1919 = vmatpush.msra.mxu0 0.0
      %1920 = vmatpush.msra.mxu0 0.0
      %1921 = vmatpush.msra.mxu0 0.0
      %1922 = vmatpush.msra.mxu0 0.0
      %1923 = vmatpush.msra.mxu0 0.0
      %1924 = vmatpush.msra.mxu0 0.0
      %1925 = vmatpush.msra.mxu0 0.0
      %1926 = vmatpush.msra.mxu0 0.0
      %1927 = vmatpush.msra.mxu0 0.0
      %1928 = vmatpush.msra.mxu0 0.0
      %1929 = vmatpush.msra.mxu0 0.0
      %1930 = vmatpush.msra.mxu0 0.0
      %v1931 = vand.u32 %v1863, 4294901760
      %v1932 = vsub.f32 %v1863, %v1931
      %1933 = vmatpush.msra.mxu0 %v1932
      %v1934 = vand.u32 %v1713, 4294901760
      %v1935 = vsub.f32 %v1713, %v1934
      %1936 = vmatmul.f32.gmra.mxu0 %v1935
      %v1937 = vpop.f32.mrf.mxu0
      %v1938 = vadd.f32 %v1914, %v1937
      %1939 = vdwg.mxu0
      %1940 = vmatpush.msra.mxu0 0.0
      %1941 = vmatpush.msra.mxu0 0.0
      %1942 = vmatpush.msra.mxu0 0.0
      %1943 = vmatpush.msra.mxu0 0.0
      %1944 = vmatpush.msra.mxu0 0.0
      %1945 = vmatpush.msra.mxu0 0.0
      %1946 = vmatpush.msra.mxu0 0.0
      %1947 = vmatpush.msra.mxu0 0.0
      %1948 = vmatpush.msra.mxu0 0.0
      %1949 = vmatpush.msra.mxu0 0.0
      %1950 = vmatpush.msra.mxu0 0.0
      %1951 = vmatpush.msra.mxu0 0.0
      %1952 = vmatpush.msra.mxu0 0.0
      %1953 = vmatpush.msra.mxu0 0.0
      %1954 = vmatpush.msra.mxu0 0.0
      %v1955 = vand.u32 %v1863, 4294901760
      %1956 = vmatpush.msra.mxu0 %v1955
      %v1957 = vand.u32 %v1713, 4294901760
      %v1958 = vsub.f32 %v1713, %v1957
      %v1959 = vand.u32 %v1958, 4294901760
      %1960 = vmatmul.f32.gmra.mxu0 %v1959
      %v1961 = vpop.f32.mrf.mxu0
      %v1962 = vadd.f32 %v1938, %v1961
      %1963 = vdwg.mxu0
      %1964 = vmatpush.msra.mxu0 0.0
      %1965 = vmatpush.msra.mxu0 0.0
      %1966 = vmatpush.msra.mxu0 0.0
      %1967 = vmatpush.msra.mxu0 0.0
      %1968 = vmatpush.msra.mxu0 0.0
      %1969 = vmatpush.msra.mxu0 0.0
      %1970 = vmatpush.msra.mxu0 0.0
      %1971 = vmatpush.msra.mxu0 0.0
      %1972 = vmatpush.msra.mxu0 0.0
      %1973 = vmatpush.msra.mxu0 0.0
      %1974 = vmatpush.msra.mxu0 0.0
      %1975 = vmatpush.msra.mxu0 0.0
      %1976 = vmatpush.msra.mxu0 0.0
      %1977 = vmatpush.msra.mxu0 0.0
      %1978 = vmatpush.msra.mxu0 0.0
      %v1979 = vand.u32 %v1863, 4294901760
      %v1980 = vsub.f32 %v1863, %v1979
      %v1981 = vand.u32 %v1980, 4294901760
      %1982 = vmatpush.msra.mxu0 %v1981
      %v1983 = vand.u32 %v1713, 4294901760
      %1984 = vmatmul.f32.gmra.mxu0 %v1983
      %v1985 = vpop.f32.mrf.mxu0
      %v1986 = vadd.f32 %v1962, %v1985
      %1987 = vdwg.mxu0
      %1988 = vmatpush.msra.mxu0 0.0
      %1989 = vmatpush.msra.mxu0 0.0
      %1990 = vmatpush.msra.mxu0 0.0
      %1991 = vmatpush.msra.mxu0 0.0
      %1992 = vmatpush.msra.mxu0 0.0
      %1993 = vmatpush.msra.mxu0 0.0
      %1994 = vmatpush.msra.mxu0 0.0
      %1995 = vmatpush.msra.mxu0 0.0
      %1996 = vmatpush.msra.mxu0 0.0
      %1997 = vmatpush.msra.mxu0 0.0
      %1998 = vmatpush.msra.mxu0 0.0
      %1999 = vmatpush.msra.mxu0 0.0
      %2000 = vmatpush.msra.mxu0 0.0
      %2001 = vmatpush.msra.mxu0 0.0
      %2002 = vmatpush.msra.mxu0 0.0
      %v2003 = vand.u32 %v1863, 4294901760
      %2004 = vmatpush.msra.mxu0 %v2003
      %v2005 = vand.u32 %v1713, 4294901760
      %2006 = vmatmul.f32.gmra.mxu0 %v2005
      %v2007 = vpop.f32.mrf.mxu0
      %v2008 = vadd.f32 %v1986, %v2007
      %2009 = vdwg.mxu0
      %s2010 = scalar_lea.vmem %s5, 4
      %v2011 = vld [vmem:[%s2010] sm:$0x7]
      %vm2012 = vcmask 56320
      %v2014 = vsel %vm2012, %v2011, 0
      %vm2016 = vcmask 1046528
      %v2018 = vsel %vm2016, %v2008, 0
      %2020 = vmatpush.msra.mxu0 0.0
      %2021 = vmatpush.msra.mxu0 0.0
      %2022 = vmatpush.msra.mxu0 0.0
      %2023 = vmatpush.msra.mxu0 0.0
      %2024 = vmatpush.msra.mxu0 0.0
      %2025 = vmatpush.msra.mxu0 0.0
      %2026 = vmatpush.msra.mxu0 0.0
      %2027 = vmatpush.msra.mxu0 0.0
      %2028 = vmatpush.msra.mxu0 0.0
      %2029 = vmatpush.msra.mxu0 0.0
      %2030 = vmatpush.msra.mxu0 0.0
      %2031 = vmatpush.msra.mxu0 0.0
      %2032 = vmatpush.msra.mxu0 0.0
      %2033 = vmatpush.msra.mxu0 0.0
      %2034 = vmatpush.msra.mxu0 0.0
      %v2035 = vand.u32 %v2018, 4294901760
      %2036 = vmatpush.msra.mxu0 %v2035
      %v2037 = vand.u32 %v2014, 4294901760
      %v2038 = vsub.f32 %v2014, %v2037
      %v2039 = vand.u32 %v2038, 4294901760
      %v2040 = vsub.f32 %v2038, %v2039
      %v2041 = vand.u32 %v2040, 4294901760
      %2042 = vmatmul.f32.gmra.mxu0 %v2041
      %v2043 = vpop.f32.mrf.mxu0
      %v2044 = vadd.f32 0.0, %v2043
      %2045 = vdwg.mxu0
      %2046 = vmatpush.msra.mxu0 0.0
      %2047 = vmatpush.msra.mxu0 0.0
      %2048 = vmatpush.msra.mxu0 0.0
      %2049 = vmatpush.msra.mxu0 0.0
      %2050 = vmatpush.msra.mxu0 0.0
      %2051 = vmatpush.msra.mxu0 0.0
      %2052 = vmatpush.msra.mxu0 0.0
      %2053 = vmatpush.msra.mxu0 0.0
      %2054 = vmatpush.msra.mxu0 0.0
      %2055 = vmatpush.msra.mxu0 0.0
      %2056 = vmatpush.msra.mxu0 0.0
      %2057 = vmatpush.msra.mxu0 0.0
      %2058 = vmatpush.msra.mxu0 0.0
      %2059 = vmatpush.msra.mxu0 0.0
      %2060 = vmatpush.msra.mxu0 0.0
      %v2061 = vand.u32 %v2018, 4294901760
      %v2062 = vsub.f32 %v2018, %v2061
      %v2063 = vand.u32 %v2062, 4294901760
      %v2064 = vsub.f32 %v2062, %v2063
      %v2065 = vand.u32 %v2064, 4294901760
      %2066 = vmatpush.msra.mxu0 %v2065
      %v2067 = vand.u32 %v2014, 4294901760
      %2068 = vmatmul.f32.gmra.mxu0 %v2067
      %v2069 = vpop.f32.mrf.mxu0
      %v2070 = vadd.f32 %v2044, %v2069
      %2071 = vdwg.mxu0
      %2072 = vmatpush.msra.mxu0 0.0
      %2073 = vmatpush.msra.mxu0 0.0
      %2074 = vmatpush.msra.mxu0 0.0
      %2075 = vmatpush.msra.mxu0 0.0
      %2076 = vmatpush.msra.mxu0 0.0
      %2077 = vmatpush.msra.mxu0 0.0
      %2078 = vmatpush.msra.mxu0 0.0
      %2079 = vmatpush.msra.mxu0 0.0
      %2080 = vmatpush.msra.mxu0 0.0
      %2081 = vmatpush.msra.mxu0 0.0
      %2082 = vmatpush.msra.mxu0 0.0
      %2083 = vmatpush.msra.mxu0 0.0
      %2084 = vmatpush.msra.mxu0 0.0
      %2085 = vmatpush.msra.mxu0 0.0
      %2086 = vmatpush.msra.mxu0 0.0
      %v2087 = vand.u32 %v2018, 4294901760
      %v2088 = vsub.f32 %v2018, %v2087
      %2089 = vmatpush.msra.mxu0 %v2088
      %v2090 = vand.u32 %v2014, 4294901760
      %v2091 = vsub.f32 %v2014, %v2090
      %2092 = vmatmul.f32.gmra.mxu0 %v2091
      %v2093 = vpop.f32.mrf.mxu0
      %v2094 = vadd.f32 %v2070, %v2093
      %2095 = vdwg.mxu0
      %2096 = vmatpush.msra.mxu0 0.0
      %2097 = vmatpush.msra.mxu0 0.0
      %2098 = vmatpush.msra.mxu0 0.0
      %2099 = vmatpush.msra.mxu0 0.0
      %2100 = vmatpush.msra.mxu0 0.0
      %2101 = vmatpush.msra.mxu0 0.0
      %2102 = vmatpush.msra.mxu0 0.0
      %2103 = vmatpush.msra.mxu0 0.0
      %2104 = vmatpush.msra.mxu0 0.0
      %2105 = vmatpush.msra.mxu0 0.0
      %2106 = vmatpush.msra.mxu0 0.0
      %2107 = vmatpush.msra.mxu0 0.0
      %2108 = vmatpush.msra.mxu0 0.0
      %2109 = vmatpush.msra.mxu0 0.0
      %2110 = vmatpush.msra.mxu0 0.0
      %v2111 = vand.u32 %v2018, 4294901760
      %2112 = vmatpush.msra.mxu0 %v2111
      %v2113 = vand.u32 %v2014, 4294901760
      %v2114 = vsub.f32 %v2014, %v2113
      %v2115 = vand.u32 %v2114, 4294901760
      %2116 = vmatmul.f32.gmra.mxu0 %v2115
      %v2117 = vpop.f32.mrf.mxu0
      %v2118 = vadd.f32 %v2094, %v2117
      %2119 = vdwg.mxu0
      %2120 = vmatpush.msra.mxu0 0.0
      %2121 = vmatpush.msra.mxu0 0.0
      %2122 = vmatpush.msra.mxu0 0.0
      %2123 = vmatpush.msra.mxu0 0.0
      %2124 = vmatpush.msra.mxu0 0.0
      %2125 = vmatpush.msra.mxu0 0.0
      %2126 = vmatpush.msra.mxu0 0.0
      %2127 = vmatpush.msra.mxu0 0.0
      %2128 = vmatpush.msra.mxu0 0.0
      %2129 = vmatpush.msra.mxu0 0.0
      %2130 = vmatpush.msra.mxu0 0.0
      %2131 = vmatpush.msra.mxu0 0.0
      %2132 = vmatpush.msra.mxu0 0.0
      %2133 = vmatpush.msra.mxu0 0.0
      %2134 = vmatpush.msra.mxu0 0.0
      %v2135 = vand.u32 %v2018, 4294901760
      %v2136 = vsub.f32 %v2018, %v2135
      %v2137 = vand.u32 %v2136, 4294901760
      %2138 = vmatpush.msra.mxu0 %v2137
      %v2139 = vand.u32 %v2014, 4294901760
      %2140 = vmatmul.f32.gmra.mxu0 %v2139
      %v2141 = vpop.f32.mrf.mxu0
      %v2142 = vadd.f32 %v2118, %v2141
      %2143 = vdwg.mxu0
      %2144 = vmatpush.msra.mxu0 0.0
      %2145 = vmatpush.msra.mxu0 0.0
      %2146 = vmatpush.msra.mxu0 0.0
      %2147 = vmatpush.msra.mxu0 0.0
      %2148 = vmatpush.msra.mxu0 0.0
      %2149 = vmatpush.msra.mxu0 0.0
      %2150 = vmatpush.msra.mxu0 0.0
      %2151 = vmatpush.msra.mxu0 0.0
      %2152 = vmatpush.msra.mxu0 0.0
      %2153 = vmatpush.msra.mxu0 0.0
      %2154 = vmatpush.msra.mxu0 0.0
      %2155 = vmatpush.msra.mxu0 0.0
      %2156 = vmatpush.msra.mxu0 0.0
      %2157 = vmatpush.msra.mxu0 0.0
      %2158 = vmatpush.msra.mxu0 0.0
      %v2159 = vand.u32 %v2018, 4294901760
      %2160 = vmatpush.msra.mxu0 %v2159
      %v2161 = vand.u32 %v2014, 4294901760
      %2162 = vmatmul.f32.gmra.mxu0 %v2161
      %v2163 = vpop.f32.mrf.mxu0
      %v2164 = vadd.f32 %v2142, %v2163
      %2165 = vdwg.mxu0
      %v2167 = vsel %vm2012, %v1861, 0
      %v2170 = vsel %vm2016, %v1859, 0
      %2172 = vmatpush.msra.mxu0 0.0
      %2173 = vmatpush.msra.mxu0 0.0
      %2174 = vmatpush.msra.mxu0 0.0
      %2175 = vmatpush.msra.mxu0 0.0
      %2176 = vmatpush.msra.mxu0 0.0
      %2177 = vmatpush.msra.mxu0 0.0
      %2178 = vmatpush.msra.mxu0 0.0
      %2179 = vmatpush.msra.mxu0 0.0
      %2180 = vmatpush.msra.mxu0 0.0
      %2181 = vmatpush.msra.mxu0 0.0
      %2182 = vmatpush.msra.mxu0 0.0
      %2183 = vmatpush.msra.mxu0 0.0
      %2184 = vmatpush.msra.mxu0 0.0
      %2185 = vmatpush.msra.mxu0 0.0
      %2186 = vmatpush.msra.mxu0 0.0
      %v2187 = vand.u32 %v2170, 4294901760
      %2188 = vmatpush.msra.mxu0 %v2187
      %v2189 = vand.u32 %v2167, 4294901760
      %v2190 = vsub.f32 %v2167, %v2189
      %v2191 = vand.u32 %v2190, 4294901760
      %v2192 = vsub.f32 %v2190, %v2191
      %v2193 = vand.u32 %v2192, 4294901760
      %2194 = vmatmul.f32.gmra.mxu0 %v2193
      %v2195 = vpop.f32.mrf.mxu0
      %v2196 = vadd.f32 %v2164, %v2195
      %2197 = vdwg.mxu0
      %2198 = vmatpush.msra.mxu0 0.0
      %2199 = vmatpush.msra.mxu0 0.0
      %2200 = vmatpush.msra.mxu0 0.0
      %2201 = vmatpush.msra.mxu0 0.0
      %2202 = vmatpush.msra.mxu0 0.0
      %2203 = vmatpush.msra.mxu0 0.0
      %2204 = vmatpush.msra.mxu0 0.0
      %2205 = vmatpush.msra.mxu0 0.0
      %2206 = vmatpush.msra.mxu0 0.0
      %2207 = vmatpush.msra.mxu0 0.0
      %2208 = vmatpush.msra.mxu0 0.0
      %2209 = vmatpush.msra.mxu0 0.0
      %2210 = vmatpush.msra.mxu0 0.0
      %2211 = vmatpush.msra.mxu0 0.0
      %2212 = vmatpush.msra.mxu0 0.0
      %v2213 = vand.u32 %v2170, 4294901760
      %v2214 = vsub.f32 %v2170, %v2213
      %v2215 = vand.u32 %v2214, 4294901760
      %v2216 = vsub.f32 %v2214, %v2215
      %v2217 = vand.u32 %v2216, 4294901760
      %2218 = vmatpush.msra.mxu0 %v2217
      %v2219 = vand.u32 %v2167, 4294901760
      %2220 = vmatmul.f32.gmra.mxu0 %v2219
      %v2221 = vpop.f32.mrf.mxu0
      %v2222 = vadd.f32 %v2196, %v2221
      %2223 = vdwg.mxu0
      %2224 = vmatpush.msra.mxu0 0.0
      %2225 = vmatpush.msra.mxu0 0.0
      %2226 = vmatpush.msra.mxu0 0.0
      %2227 = vmatpush.msra.mxu0 0.0
      %2228 = vmatpush.msra.mxu0 0.0
      %2229 = vmatpush.msra.mxu0 0.0
      %2230 = vmatpush.msra.mxu0 0.0
      %2231 = vmatpush.msra.mxu0 0.0
      %2232 = vmatpush.msra.mxu0 0.0
      %2233 = vmatpush.msra.mxu0 0.0
      %2234 = vmatpush.msra.mxu0 0.0
      %2235 = vmatpush.msra.mxu0 0.0
      %2236 = vmatpush.msra.mxu0 0.0
      %2237 = vmatpush.msra.mxu0 0.0
      %2238 = vmatpush.msra.mxu0 0.0
      %v2239 = vand.u32 %v2170, 4294901760
      %v2240 = vsub.f32 %v2170, %v2239
      %2241 = vmatpush.msra.mxu0 %v2240
      %v2242 = vand.u32 %v2167, 4294901760
      %v2243 = vsub.f32 %v2167, %v2242
      %2244 = vmatmul.f32.gmra.mxu0 %v2243
      %v2245 = vpop.f32.mrf.mxu0
      %v2246 = vadd.f32 %v2222, %v2245
      %2247 = vdwg.mxu0
      %2248 = vmatpush.msra.mxu0 0.0
      %2249 = vmatpush.msra.mxu0 0.0
      %2250 = vmatpush.msra.mxu0 0.0
      %2251 = vmatpush.msra.mxu0 0.0
      %2252 = vmatpush.msra.mxu0 0.0
      %2253 = vmatpush.msra.mxu0 0.0
      %2254 = vmatpush.msra.mxu0 0.0
      %2255 = vmatpush.msra.mxu0 0.0
      %2256 = vmatpush.msra.mxu0 0.0
      %2257 = vmatpush.msra.mxu0 0.0
      %2258 = vmatpush.msra.mxu0 0.0
      %2259 = vmatpush.msra.mxu0 0.0
      %2260 = vmatpush.msra.mxu0 0.0
      %2261 = vmatpush.msra.mxu0 0.0
      %2262 = vmatpush.msra.mxu0 0.0
      %v2263 = vand.u32 %v2170, 4294901760
      %2264 = vmatpush.msra.mxu0 %v2263
      %v2265 = vand.u32 %v2167, 4294901760
      %v2266 = vsub.f32 %v2167, %v2265
      %v2267 = vand.u32 %v2266, 4294901760
      %2268 = vmatmul.f32.gmra.mxu0 %v2267
      %v2269 = vpop.f32.mrf.mxu0
      %v2270 = vadd.f32 %v2246, %v2269
      %2271 = vdwg.mxu0
      %2272 = vmatpush.msra.mxu0 0.0
      %2273 = vmatpush.msra.mxu0 0.0
      %2274 = vmatpush.msra.mxu0 0.0
      %2275 = vmatpush.msra.mxu0 0.0
      %2276 = vmatpush.msra.mxu0 0.0
      %2277 = vmatpush.msra.mxu0 0.0
      %2278 = vmatpush.msra.mxu0 0.0
      %2279 = vmatpush.msra.mxu0 0.0
      %2280 = vmatpush.msra.mxu0 0.0
      %2281 = vmatpush.msra.mxu0 0.0
      %2282 = vmatpush.msra.mxu0 0.0
      %2283 = vmatpush.msra.mxu0 0.0
      %2284 = vmatpush.msra.mxu0 0.0
      %2285 = vmatpush.msra.mxu0 0.0
      %2286 = vmatpush.msra.mxu0 0.0
      %v2287 = vand.u32 %v2170, 4294901760
      %v2288 = vsub.f32 %v2170, %v2287
      %v2289 = vand.u32 %v2288, 4294901760
      %2290 = vmatpush.msra.mxu0 %v2289
      %v2291 = vand.u32 %v2167, 4294901760
      %2292 = vmatmul.f32.gmra.mxu0 %v2291
      %v2293 = vpop.f32.mrf.mxu0
      %v2294 = vadd.f32 %v2270, %v2293
      %2295 = vdwg.mxu0
      %2296 = vmatpush.msra.mxu0 0.0
      %2297 = vmatpush.msra.mxu0 0.0
      %2298 = vmatpush.msra.mxu0 0.0
      %2299 = vmatpush.msra.mxu0 0.0
      %2300 = vmatpush.msra.mxu0 0.0
      %2301 = vmatpush.msra.mxu0 0.0
      %2302 = vmatpush.msra.mxu0 0.0
      %2303 = vmatpush.msra.mxu0 0.0
      %2304 = vmatpush.msra.mxu0 0.0
      %2305 = vmatpush.msra.mxu0 0.0
      %2306 = vmatpush.msra.mxu0 0.0
      %2307 = vmatpush.msra.mxu0 0.0
      %2308 = vmatpush.msra.mxu0 0.0
      %2309 = vmatpush.msra.mxu0 0.0
      %2310 = vmatpush.msra.mxu0 0.0
      %v2311 = vand.u32 %v2170, 4294901760
      %2312 = vmatpush.msra.mxu0 %v2311
      %v2313 = vand.u32 %v2167, 4294901760
      %2314 = vmatmul.f32.gmra.mxu0 %v2313
      %v2315 = vpop.f32.mrf.mxu0
      %v2316 = vadd.f32 %v2294, %v2315
      %2317 = vdwg.mxu0
      %s2318 = scalar_lea.vmem %s6, 16
      %v2319 = vld [vmem:[%s2318] sm:$0xff]
      %2320 = vmatpush.msra.mxu0 0.0
      %2321 = vmatpush.msra.mxu0 0.0
      %2322 = vmatpush.msra.mxu0 0.0
      %2323 = vmatpush.msra.mxu0 0.0
      %2324 = vmatpush.msra.mxu0 0.0
      %2325 = vmatpush.msra.mxu0 0.0
      %2326 = vmatpush.msra.mxu0 0.0
      %2327 = vmatpush.msra.mxu0 0.0
      %2328 = vmatpush.msra.mxu0 0.0
      %2329 = vmatpush.msra.mxu0 0.0
      %2330 = vmatpush.msra.mxu0 0.0
      %2331 = vmatpush.msra.mxu0 0.0
      %2332 = vmatpush.msra.mxu0 0.0
      %2333 = vmatpush.msra.mxu0 0.0
      %2334 = vmatpush.msra.mxu0 0.0
      %v2335 = vand.u32 %v2319, 4294901760
      %2336 = vmatpush.msra.mxu0 %v2335
      %v2337 = vand.u32 %v1713, 4294901760
      %v2338 = vsub.f32 %v1713, %v2337
      %v2339 = vand.u32 %v2338, 4294901760
      %v2340 = vsub.f32 %v2338, %v2339
      %v2341 = vand.u32 %v2340, 4294901760
      %2342 = vmatmul.f32.gmra.mxu0 %v2341
      %v2343 = vpop.f32.mrf.mxu0
      %v2344 = vadd.f32 0.0, %v2343
      %2345 = vdwg.mxu0
      %2346 = vmatpush.msra.mxu0 0.0
      %2347 = vmatpush.msra.mxu0 0.0
      %2348 = vmatpush.msra.mxu0 0.0
      %2349 = vmatpush.msra.mxu0 0.0
      %2350 = vmatpush.msra.mxu0 0.0
      %2351 = vmatpush.msra.mxu0 0.0
      %2352 = vmatpush.msra.mxu0 0.0
      %2353 = vmatpush.msra.mxu0 0.0
      %2354 = vmatpush.msra.mxu0 0.0
      %2355 = vmatpush.msra.mxu0 0.0
      %2356 = vmatpush.msra.mxu0 0.0
      %2357 = vmatpush.msra.mxu0 0.0
      %2358 = vmatpush.msra.mxu0 0.0
      %2359 = vmatpush.msra.mxu0 0.0
      %2360 = vmatpush.msra.mxu0 0.0
      %v2361 = vand.u32 %v2319, 4294901760
      %v2362 = vsub.f32 %v2319, %v2361
      %v2363 = vand.u32 %v2362, 4294901760
      %v2364 = vsub.f32 %v2362, %v2363
      %v2365 = vand.u32 %v2364, 4294901760
      %2366 = vmatpush.msra.mxu0 %v2365
      %v2367 = vand.u32 %v1713, 4294901760
      %2368 = vmatmul.f32.gmra.mxu0 %v2367
      %v2369 = vpop.f32.mrf.mxu0
      %v2370 = vadd.f32 %v2344, %v2369
      %2371 = vdwg.mxu0
      %2372 = vmatpush.msra.mxu0 0.0
      %2373 = vmatpush.msra.mxu0 0.0
      %2374 = vmatpush.msra.mxu0 0.0
      %2375 = vmatpush.msra.mxu0 0.0
      %2376 = vmatpush.msra.mxu0 0.0
      %2377 = vmatpush.msra.mxu0 0.0
      %2378 = vmatpush.msra.mxu0 0.0
      %2379 = vmatpush.msra.mxu0 0.0
      %2380 = vmatpush.msra.mxu0 0.0
      %2381 = vmatpush.msra.mxu0 0.0
      %2382 = vmatpush.msra.mxu0 0.0
      %2383 = vmatpush.msra.mxu0 0.0
      %2384 = vmatpush.msra.mxu0 0.0
      %2385 = vmatpush.msra.mxu0 0.0
      %2386 = vmatpush.msra.mxu0 0.0
      %v2387 = vand.u32 %v2319, 4294901760
      %v2388 = vsub.f32 %v2319, %v2387
      %2389 = vmatpush.msra.mxu0 %v2388
      %v2390 = vand.u32 %v1713, 4294901760
      %v2391 = vsub.f32 %v1713, %v2390
      %2392 = vmatmul.f32.gmra.mxu0 %v2391
      %v2393 = vpop.f32.mrf.mxu0
      %v2394 = vadd.f32 %v2370, %v2393
      %2395 = vdwg.mxu0
      %2396 = vmatpush.msra.mxu0 0.0
      %2397 = vmatpush.msra.mxu0 0.0
      %2398 = vmatpush.msra.mxu0 0.0
      %2399 = vmatpush.msra.mxu0 0.0
      %2400 = vmatpush.msra.mxu0 0.0
      %2401 = vmatpush.msra.mxu0 0.0
      %2402 = vmatpush.msra.mxu0 0.0
      %2403 = vmatpush.msra.mxu0 0.0
      %2404 = vmatpush.msra.mxu0 0.0
      %2405 = vmatpush.msra.mxu0 0.0
      %2406 = vmatpush.msra.mxu0 0.0
      %2407 = vmatpush.msra.mxu0 0.0
      %2408 = vmatpush.msra.mxu0 0.0
      %2409 = vmatpush.msra.mxu0 0.0
      %2410 = vmatpush.msra.mxu0 0.0
      %v2411 = vand.u32 %v2319, 4294901760
      %2412 = vmatpush.msra.mxu0 %v2411
      %v2413 = vand.u32 %v1713, 4294901760
      %v2414 = vsub.f32 %v1713, %v2413
      %v2415 = vand.u32 %v2414, 4294901760
      %2416 = vmatmul.f32.gmra.mxu0 %v2415
      %v2417 = vpop.f32.mrf.mxu0
      %v2418 = vadd.f32 %v2394, %v2417
      %2419 = vdwg.mxu0
      %2420 = vmatpush.msra.mxu0 0.0
      %2421 = vmatpush.msra.mxu0 0.0
      %2422 = vmatpush.msra.mxu0 0.0
      %2423 = vmatpush.msra.mxu0 0.0
      %2424 = vmatpush.msra.mxu0 0.0
      %2425 = vmatpush.msra.mxu0 0.0
      %2426 = vmatpush.msra.mxu0 0.0
      %2427 = vmatpush.msra.mxu0 0.0
      %2428 = vmatpush.msra.mxu0 0.0
      %2429 = vmatpush.msra.mxu0 0.0
      %2430 = vmatpush.msra.mxu0 0.0
      %2431 = vmatpush.msra.mxu0 0.0
      %2432 = vmatpush.msra.mxu0 0.0
      %2433 = vmatpush.msra.mxu0 0.0
      %2434 = vmatpush.msra.mxu0 0.0
      %v2435 = vand.u32 %v2319, 4294901760
      %v2436 = vsub.f32 %v2319, %v2435
      %v2437 = vand.u32 %v2436, 4294901760
      %2438 = vmatpush.msra.mxu0 %v2437
      %v2439 = vand.u32 %v1713, 4294901760
      %2440 = vmatmul.f32.gmra.mxu0 %v2439
      %v2441 = vpop.f32.mrf.mxu0
      %v2442 = vadd.f32 %v2418, %v2441
      %2443 = vdwg.mxu0
      %2444 = vmatpush.msra.mxu0 0.0
      %2445 = vmatpush.msra.mxu0 0.0
      %2446 = vmatpush.msra.mxu0 0.0
      %2447 = vmatpush.msra.mxu0 0.0
      %2448 = vmatpush.msra.mxu0 0.0
      %2449 = vmatpush.msra.mxu0 0.0
      %2450 = vmatpush.msra.mxu0 0.0
      %2451 = vmatpush.msra.mxu0 0.0
      %2452 = vmatpush.msra.mxu0 0.0
      %2453 = vmatpush.msra.mxu0 0.0
      %2454 = vmatpush.msra.mxu0 0.0
      %2455 = vmatpush.msra.mxu0 0.0
      %2456 = vmatpush.msra.mxu0 0.0
      %2457 = vmatpush.msra.mxu0 0.0
      %2458 = vmatpush.msra.mxu0 0.0
      %v2459 = vand.u32 %v2319, 4294901760
      %2460 = vmatpush.msra.mxu0 %v2459
      %v2461 = vand.u32 %v1713, 4294901760
      %2462 = vmatmul.f32.gmra.mxu0 %v2461
      %v2463 = vpop.f32.mrf.mxu0
      %v2464 = vadd.f32 %v2442, %v2463
      %2465 = vdwg.mxu0
      %s2466 = scalar_lea.vmem %s5, 8
      %v2467 = vld [vmem:[%s2466] sm:$0x7]
      %v2469 = vsel %vm2012, %v2467, 0
      %v2472 = vsel %vm2016, %v2464, 0
      %2474 = vmatpush.msra.mxu0 0.0
      %2475 = vmatpush.msra.mxu0 0.0
      %2476 = vmatpush.msra.mxu0 0.0
      %2477 = vmatpush.msra.mxu0 0.0
      %2478 = vmatpush.msra.mxu0 0.0
      %2479 = vmatpush.msra.mxu0 0.0
      %2480 = vmatpush.msra.mxu0 0.0
      %2481 = vmatpush.msra.mxu0 0.0
      %2482 = vmatpush.msra.mxu0 0.0
      %2483 = vmatpush.msra.mxu0 0.0
      %2484 = vmatpush.msra.mxu0 0.0
      %2485 = vmatpush.msra.mxu0 0.0
      %2486 = vmatpush.msra.mxu0 0.0
      %2487 = vmatpush.msra.mxu0 0.0
      %2488 = vmatpush.msra.mxu0 0.0
      %v2489 = vand.u32 %v2472, 4294901760
      %2490 = vmatpush.msra.mxu0 %v2489
      %v2491 = vand.u32 %v2469, 4294901760
      %v2492 = vsub.f32 %v2469, %v2491
      %v2493 = vand.u32 %v2492, 4294901760
      %v2494 = vsub.f32 %v2492, %v2493
      %v2495 = vand.u32 %v2494, 4294901760
      %2496 = vmatmul.f32.gmra.mxu0 %v2495
      %v2497 = vpop.f32.mrf.mxu0
      %v2498 = vadd.f32 0.0, %v2497
      %2499 = vdwg.mxu0
      %2500 = vmatpush.msra.mxu0 0.0
      %2501 = vmatpush.msra.mxu0 0.0
      %2502 = vmatpush.msra.mxu0 0.0
      %2503 = vmatpush.msra.mxu0 0.0
      %2504 = vmatpush.msra.mxu0 0.0
      %2505 = vmatpush.msra.mxu0 0.0
      %2506 = vmatpush.msra.mxu0 0.0
      %2507 = vmatpush.msra.mxu0 0.0
      %2508 = vmatpush.msra.mxu0 0.0
      %2509 = vmatpush.msra.mxu0 0.0
      %2510 = vmatpush.msra.mxu0 0.0
      %2511 = vmatpush.msra.mxu0 0.0
      %2512 = vmatpush.msra.mxu0 0.0
      %2513 = vmatpush.msra.mxu0 0.0
      %2514 = vmatpush.msra.mxu0 0.0
      %v2515 = vand.u32 %v2472, 4294901760
      %v2516 = vsub.f32 %v2472, %v2515
      %v2517 = vand.u32 %v2516, 4294901760
      %v2518 = vsub.f32 %v2516, %v2517
      %v2519 = vand.u32 %v2518, 4294901760
      %2520 = vmatpush.msra.mxu0 %v2519
      %v2521 = vand.u32 %v2469, 4294901760
      %2522 = vmatmul.f32.gmra.mxu0 %v2521
      %v2523 = vpop.f32.mrf.mxu0
      %v2524 = vadd.f32 %v2498, %v2523
      %2525 = vdwg.mxu0
      %2526 = vmatpush.msra.mxu0 0.0
      %2527 = vmatpush.msra.mxu0 0.0
      %2528 = vmatpush.msra.mxu0 0.0
      %2529 = vmatpush.msra.mxu0 0.0
      %2530 = vmatpush.msra.mxu0 0.0
      %2531 = vmatpush.msra.mxu0 0.0
      %2532 = vmatpush.msra.mxu0 0.0
      %2533 = vmatpush.msra.mxu0 0.0
      %2534 = vmatpush.msra.mxu0 0.0
      %2535 = vmatpush.msra.mxu0 0.0
      %2536 = vmatpush.msra.mxu0 0.0
      %2537 = vmatpush.msra.mxu0 0.0
      %2538 = vmatpush.msra.mxu0 0.0
      %2539 = vmatpush.msra.mxu0 0.0
      %2540 = vmatpush.msra.mxu0 0.0
      %v2541 = vand.u32 %v2472, 4294901760
      %v2542 = vsub.f32 %v2472, %v2541
      %2543 = vmatpush.msra.mxu0 %v2542
      %v2544 = vand.u32 %v2469, 4294901760
      %v2545 = vsub.f32 %v2469, %v2544
      %2546 = vmatmul.f32.gmra.mxu0 %v2545
      %v2547 = vpop.f32.mrf.mxu0
      %v2548 = vadd.f32 %v2524, %v2547
      %2549 = vdwg.mxu0
      %2550 = vmatpush.msra.mxu0 0.0
      %2551 = vmatpush.msra.mxu0 0.0
      %2552 = vmatpush.msra.mxu0 0.0
      %2553 = vmatpush.msra.mxu0 0.0
      %2554 = vmatpush.msra.mxu0 0.0
      %2555 = vmatpush.msra.mxu0 0.0
      %2556 = vmatpush.msra.mxu0 0.0
      %2557 = vmatpush.msra.mxu0 0.0
      %2558 = vmatpush.msra.mxu0 0.0
      %2559 = vmatpush.msra.mxu0 0.0
      %2560 = vmatpush.msra.mxu0 0.0
      %2561 = vmatpush.msra.mxu0 0.0
      %2562 = vmatpush.msra.mxu0 0.0
      %2563 = vmatpush.msra.mxu0 0.0
      %2564 = vmatpush.msra.mxu0 0.0
      %v2565 = vand.u32 %v2472, 4294901760
      %2566 = vmatpush.msra.mxu0 %v2565
      %v2567 = vand.u32 %v2469, 4294901760
      %v2568 = vsub.f32 %v2469, %v2567
      %v2569 = vand.u32 %v2568, 4294901760
      %2570 = vmatmul.f32.gmra.mxu0 %v2569
      %v2571 = vpop.f32.mrf.mxu0
      %v2572 = vadd.f32 %v2548, %v2571
      %2573 = vdwg.mxu0
      %2574 = vmatpush.msra.mxu0 0.0
      %2575 = vmatpush.msra.mxu0 0.0
      %2576 = vmatpush.msra.mxu0 0.0
      %2577 = vmatpush.msra.mxu0 0.0
      %2578 = vmatpush.msra.mxu0 0.0
      %2579 = vmatpush.msra.mxu0 0.0
      %2580 = vmatpush.msra.mxu0 0.0
      %2581 = vmatpush.msra.mxu0 0.0
      %2582 = vmatpush.msra.mxu0 0.0
      %2583 = vmatpush.msra.mxu0 0.0
      %2584 = vmatpush.msra.mxu0 0.0
      %2585 = vmatpush.msra.mxu0 0.0
      %2586 = vmatpush.msra.mxu0 0.0
      %2587 = vmatpush.msra.mxu0 0.0
      %2588 = vmatpush.msra.mxu0 0.0
      %v2589 = vand.u32 %v2472, 4294901760
      %v2590 = vsub.f32 %v2472, %v2589
      %v2591 = vand.u32 %v2590, 4294901760
      %2592 = vmatpush.msra.mxu0 %v2591
      %v2593 = vand.u32 %v2469, 4294901760
      %2594 = vmatmul.f32.gmra.mxu0 %v2593
      %v2595 = vpop.f32.mrf.mxu0
      %v2596 = vadd.f32 %v2572, %v2595
      %2597 = vdwg.mxu0
      %2598 = vmatpush.msra.mxu0 0.0
      %2599 = vmatpush.msra.mxu0 0.0
      %2600 = vmatpush.msra.mxu0 0.0
      %2601 = vmatpush.msra.mxu0 0.0
      %2602 = vmatpush.msra.mxu0 0.0
      %2603 = vmatpush.msra.mxu0 0.0
      %2604 = vmatpush.msra.mxu0 0.0
      %2605 = vmatpush.msra.mxu0 0.0
      %2606 = vmatpush.msra.mxu0 0.0
      %2607 = vmatpush.msra.mxu0 0.0
      %2608 = vmatpush.msra.mxu0 0.0
      %2609 = vmatpush.msra.mxu0 0.0
      %2610 = vmatpush.msra.mxu0 0.0
      %2611 = vmatpush.msra.mxu0 0.0
      %2612 = vmatpush.msra.mxu0 0.0
      %v2613 = vand.u32 %v2472, 4294901760
      %2614 = vmatpush.msra.mxu0 %v2613
      %v2615 = vand.u32 %v2469, 4294901760
      %2616 = vmatmul.f32.gmra.mxu0 %v2615
      %v2617 = vpop.f32.mrf.mxu0
      %v2618 = vadd.f32 %v2596, %v2617
      %2619 = vdwg.mxu0
      %v2620 = vadd.f32 %v2316, %v2618
      %v2621 = vld [vmem:[%s7] sm:$0x1]
      %v2623 = vperm.slane %v2621, 0
      %v2625 = vadd.f32 %v2620, %v2623
      %v2626 = vmax.f32 %v2625, 0.0
      %vm2627 = vcmask 124928
      %v2628 = vsel %vm2627, %v2626, -inf
      %v2629 = vrot.slane %v2628, 4
      %v2630 = vmax.f32 %v2628, %v2629
      %v2631 = vrot.slane %v2630, 2
      %v2632 = vmax.f32 %v2630, %v2631
      %v2633 = vrot.slane %v2632, 1
      %v2634 = vmax.f32 %v2632, %v2633
      %v2635 = vld [vmem:[%s8] sm:$0xff]
      %v2636 = vld [vmem:[%s8 + $0x8] sm:$0xff]
      %v2637 = vld [vmem:[%s9] sm:$0x1]
      %v2639 = vsel %vm1032, %v2634, 0
      %2641 = vmatpush.msra.mxu0 0.0
      %2642 = vmatpush.msra.mxu0 0.0
      %2643 = vmatpush.msra.mxu0 0.0
      %2644 = vmatpush.msra.mxu0 0.0
      %2645 = vmatpush.msra.mxu0 0.0
      %2646 = vmatpush.msra.mxu0 0.0
      %2647 = vmatpush.msra.mxu0 0.0
      %2648 = vmatpush.msra.mxu0 0.0
      %2649 = vmatpush.msra.mxu0 0.0
      %2650 = vmatpush.msra.mxu0 0.0
      %2651 = vmatpush.msra.mxu0 0.0
      %2652 = vmatpush.msra.mxu0 0.0
      %2653 = vmatpush.msra.mxu0 0.0
      %2654 = vmatpush.msra.mxu0 0.0
      %v2655 = vand.u32 %v2636, 4294901760
      %2656 = vmatpush.msra.mxu0 %v2655
      %v2657 = vand.u32 %v2635, 4294901760
      %2658 = vmatpush.msra.mxu0 %v2657
      %v2659 = vand.u32 %v2639, 4294901760
      %v2660 = vsub.f32 %v2639, %v2659
      %v2661 = vand.u32 %v2660, 4294901760
      %v2662 = vsub.f32 %v2660, %v2661
      %v2663 = vand.u32 %v2662, 4294901760
      %2664 = vmatmul.f32.gmra.mxu0 %v2663
      %v2665 = vpop.f32.mrf.mxu0
      %v2666 = vadd.f32 %v2637, %v2665
      %2667 = vdwg.mxu0
      %2668 = vmatpush.msra.mxu0 0.0
      %2669 = vmatpush.msra.mxu0 0.0
      %2670 = vmatpush.msra.mxu0 0.0
      %2671 = vmatpush.msra.mxu0 0.0
      %2672 = vmatpush.msra.mxu0 0.0
      %2673 = vmatpush.msra.mxu0 0.0
      %2674 = vmatpush.msra.mxu0 0.0
      %2675 = vmatpush.msra.mxu0 0.0
      %2676 = vmatpush.msra.mxu0 0.0
      %2677 = vmatpush.msra.mxu0 0.0
      %2678 = vmatpush.msra.mxu0 0.0
      %2679 = vmatpush.msra.mxu0 0.0
      %2680 = vmatpush.msra.mxu0 0.0
      %2681 = vmatpush.msra.mxu0 0.0
      %v2682 = vand.u32 %v2636, 4294901760
      %v2683 = vsub.f32 %v2636, %v2682
      %v2684 = vand.u32 %v2683, 4294901760
      %v2685 = vsub.f32 %v2683, %v2684
      %v2686 = vand.u32 %v2685, 4294901760
      %2687 = vmatpush.msra.mxu0 %v2686
      %v2688 = vand.u32 %v2635, 4294901760
      %v2689 = vsub.f32 %v2635, %v2688
      %v2690 = vand.u32 %v2689, 4294901760
      %v2691 = vsub.f32 %v2689, %v2690
      %v2692 = vand.u32 %v2691, 4294901760
      %2693 = vmatpush.msra.mxu0 %v2692
      %v2694 = vand.u32 %v2639, 4294901760
      %2695 = vmatmul.f32.gmra.mxu0 %v2694
      %v2696 = vpop.f32.mrf.mxu0
      %v2697 = vadd.f32 %v2666, %v2696
      %2698 = vdwg.mxu0
      %2699 = vmatpush.msra.mxu0 0.0
      %2700 = vmatpush.msra.mxu0 0.0
      %2701 = vmatpush.msra.mxu0 0.0
      %2702 = vmatpush.msra.mxu0 0.0
      %2703 = vmatpush.msra.mxu0 0.0
      %2704 = vmatpush.msra.mxu0 0.0
      %2705 = vmatpush.msra.mxu0 0.0
      %2706 = vmatpush.msra.mxu0 0.0
      %2707 = vmatpush.msra.mxu0 0.0
      %2708 = vmatpush.msra.mxu0 0.0
      %2709 = vmatpush.msra.mxu0 0.0
      %2710 = vmatpush.msra.mxu0 0.0
      %2711 = vmatpush.msra.mxu0 0.0
      %2712 = vmatpush.msra.mxu0 0.0
      %v2713 = vand.u32 %v2636, 4294901760
      %v2714 = vsub.f32 %v2636, %v2713
      %2715 = vmatpush.msra.mxu0 %v2714
      %v2716 = vand.u32 %v2635, 4294901760
      %v2717 = vsub.f32 %v2635, %v2716
      %2718 = vmatpush.msra.mxu0 %v2717
      %v2719 = vand.u32 %v2639, 4294901760
      %v2720 = vsub.f32 %v2639, %v2719
      %2721 = vmatmul.f32.gmra.mxu0 %v2720
      %v2722 = vpop.f32.mrf.mxu0
      %v2723 = vadd.f32 %v2697, %v2722
      %2724 = vdwg.mxu0
      %2725 = vmatpush.msra.mxu0 0.0
      %2726 = vmatpush.msra.mxu0 0.0
      %2727 = vmatpush.msra.mxu0 0.0
      %2728 = vmatpush.msra.mxu0 0.0
      %2729 = vmatpush.msra.mxu0 0.0
      %2730 = vmatpush.msra.mxu0 0.0
      %2731 = vmatpush.msra.mxu0 0.0
      %2732 = vmatpush.msra.mxu0 0.0
      %2733 = vmatpush.msra.mxu0 0.0
      %2734 = vmatpush.msra.mxu0 0.0
      %2735 = vmatpush.msra.mxu0 0.0
      %2736 = vmatpush.msra.mxu0 0.0
      %2737 = vmatpush.msra.mxu0 0.0
      %2738 = vmatpush.msra.mxu0 0.0
      %v2739 = vand.u32 %v2636, 4294901760
      %2740 = vmatpush.msra.mxu0 %v2739
      %v2741 = vand.u32 %v2635, 4294901760
      %2742 = vmatpush.msra.mxu0 %v2741
      %v2743 = vand.u32 %v2639, 4294901760
      %v2744 = vsub.f32 %v2639, %v2743
      %v2745 = vand.u32 %v2744, 4294901760
      %2746 = vmatmul.f32.gmra.mxu0 %v2745
      %v2747 = vpop.f32.mrf.mxu0
      %v2748 = vadd.f32 %v2723, %v2747
      %2749 = vdwg.mxu0
      %2750 = vmatpush.msra.mxu0 0.0
      %2751 = vmatpush.msra.mxu0 0.0
      %2752 = vmatpush.msra.mxu0 0.0
      %2753 = vmatpush.msra.mxu0 0.0
      %2754 = vmatpush.msra.mxu0 0.0
      %2755 = vmatpush.msra.mxu0 0.0
      %2756 = vmatpush.msra.mxu0 0.0
      %2757 = vmatpush.msra.mxu0 0.0
      %2758 = vmatpush.msra.mxu0 0.0
      %2759 = vmatpush.msra.mxu0 0.0
      %2760 = vmatpush.msra.mxu0 0.0
      %2761 = vmatpush.msra.mxu0 0.0
      %2762 = vmatpush.msra.mxu0 0.0
      %2763 = vmatpush.msra.mxu0 0.0
      %v2764 = vand.u32 %v2636, 4294901760
      %v2765 = vsub.f32 %v2636, %v2764
      %v2766 = vand.u32 %v2765, 4294901760
      %2767 = vmatpush.msra.mxu0 %v2766
      %v2768 = vand.u32 %v2635, 4294901760
      %v2769 = vsub.f32 %v2635, %v2768
      %v2770 = vand.u32 %v2769, 4294901760
      %2771 = vmatpush.msra.mxu0 %v2770
      %v2772 = vand.u32 %v2639, 4294901760
      %2773 = vmatmul.f32.gmra.mxu0 %v2772
      %v2774 = vpop.f32.mrf.mxu0
      %v2775 = vadd.f32 %v2748, %v2774
      %2776 = vdwg.mxu0
      %2777 = vmatpush.msra.mxu0 0.0
      %2778 = vmatpush.msra.mxu0 0.0
      %2779 = vmatpush.msra.mxu0 0.0
      %2780 = vmatpush.msra.mxu0 0.0
      %2781 = vmatpush.msra.mxu0 0.0
      %2782 = vmatpush.msra.mxu0 0.0
      %2783 = vmatpush.msra.mxu0 0.0
      %2784 = vmatpush.msra.mxu0 0.0
      %2785 = vmatpush.msra.mxu0 0.0
      %2786 = vmatpush.msra.mxu0 0.0
      %2787 = vmatpush.msra.mxu0 0.0
      %2788 = vmatpush.msra.mxu0 0.0
      %2789 = vmatpush.msra.mxu0 0.0
      %2790 = vmatpush.msra.mxu0 0.0
      %v2791 = vand.u32 %v2636, 4294901760
      %2792 = vmatpush.msra.mxu0 %v2791
      %v2793 = vand.u32 %v2635, 4294901760
      %2794 = vmatpush.msra.mxu0 %v2793
      %v2795 = vand.u32 %v2639, 4294901760
      %2796 = vmatmul.f32.gmra.mxu0 %v2795
      %v2797 = vpop.f32.mrf.mxu0
      %v2798 = vadd.f32 %v2775, %v2797
      %2799 = vdwg.mxu0
      %v2800 = vld [vmem:[%s10] sm:$0x7]
      %2802 = vset.pattern.permute.xlu0 0
      %2803 = vperm.xlu0 %2802, %v2800
      %v2804 = vpop.permute.xlu0 %2803
      %v2806 = vperm.slane %v2798, 0
      %v2807 = vmul.f32 %v2804, %v2806
      %v2808 = vld [vmem:[%s11] sm:$0x7]
      %2810 = vset.pattern.permute.xlu0 0
      %2811 = vperm.xlu0 %2810, %v2808
      %v2812 = vpop.permute.xlu0 %2811
      %v2814 = vadd.f32 %v2807, %v2812
      %v2815 = vld [vmem:[%s13] sm:$0xff]
      %v2816 = vld [vmem:[%s13 + $0x8] sm:$0xff]
      %v2817 = vld [vmem:[%s13 + $0x10] sm:$0xff]
      %v2818 = vld [vmem:[%s13 + $0x18] sm:$0xff]
      %vm2819 = vcmask 261120
      %v2821 = vsel %vm2819, %v2814, 0
      %2823 = vmatpush.msra.mxu0 0.0
      %2824 = vmatpush.msra.mxu0 0.0
      %2825 = vmatpush.msra.mxu0 0.0
      %2826 = vmatpush.msra.mxu0 0.0
      %2827 = vmatpush.msra.mxu0 0.0
      %2828 = vmatpush.msra.mxu0 0.0
      %2829 = vmatpush.msra.mxu0 0.0
      %2830 = vmatpush.msra.mxu0 0.0
      %2831 = vmatpush.msra.mxu0 0.0
      %2832 = vmatpush.msra.mxu0 0.0
      %2833 = vmatpush.msra.mxu0 0.0
      %2834 = vmatpush.msra.mxu0 0.0
      %v2835 = vand.u32 %v2818, 4294901760
      %2836 = vmatpush.msra.mxu0 %v2835
      %v2837 = vand.u32 %v2817, 4294901760
      %2838 = vmatpush.msra.mxu0 %v2837
      %v2839 = vand.u32 %v2816, 4294901760
      %2840 = vmatpush.msra.mxu0 %v2839
      %v2841 = vand.u32 %v2815, 4294901760
      %2842 = vmatpush.msra.mxu0 %v2841
      %v2843 = vand.u32 %v2821, 4294901760
      %v2844 = vsub.f32 %v2821, %v2843
      %v2845 = vand.u32 %v2844, 4294901760
      %v2846 = vsub.f32 %v2844, %v2845
      %v2847 = vand.u32 %v2846, 4294901760
      %2848 = vmatmul.f32.gmra.mxu0 %v2847
      %v2849 = vpop.f32.mrf.mxu0
      %v2850 = vadd.f32 0.0, %v2849
      %2851 = vdwg.mxu0
      %2852 = vmatpush.msra.mxu0 0.0
      %2853 = vmatpush.msra.mxu0 0.0
      %2854 = vmatpush.msra.mxu0 0.0
      %2855 = vmatpush.msra.mxu0 0.0
      %2856 = vmatpush.msra.mxu0 0.0
      %2857 = vmatpush.msra.mxu0 0.0
      %2858 = vmatpush.msra.mxu0 0.0
      %2859 = vmatpush.msra.mxu0 0.0
      %2860 = vmatpush.msra.mxu0 0.0
      %2861 = vmatpush.msra.mxu0 0.0
      %2862 = vmatpush.msra.mxu0 0.0
      %2863 = vmatpush.msra.mxu0 0.0
      %v2864 = vand.u32 %v2818, 4294901760
      %v2865 = vsub.f32 %v2818, %v2864
      %v2866 = vand.u32 %v2865, 4294901760
      %v2867 = vsub.f32 %v2865, %v2866
      %v2868 = vand.u32 %v2867, 4294901760
      %2869 = vmatpush.msra.mxu0 %v2868
      %v2870 = vand.u32 %v2817, 4294901760
      %v2871 = vsub.f32 %v2817, %v2870
      %v2872 = vand.u32 %v2871, 4294901760
      %v2873 = vsub.f32 %v2871, %v2872
      %v2874 = vand.u32 %v2873, 4294901760
      %2875 = vmatpush.msra.mxu0 %v2874
      %v2876 = vand.u32 %v2816, 4294901760
      %v2877 = vsub.f32 %v2816, %v2876
      %v2878 = vand.u32 %v2877, 4294901760
      %v2879 = vsub.f32 %v2877, %v2878
      %v2880 = vand.u32 %v2879, 4294901760
      %2881 = vmatpush.msra.mxu0 %v2880
      %v2882 = vand.u32 %v2815, 4294901760
      %v2883 = vsub.f32 %v2815, %v2882
      %v2884 = vand.u32 %v2883, 4294901760
      %v2885 = vsub.f32 %v2883, %v2884
      %v2886 = vand.u32 %v2885, 4294901760
      %2887 = vmatpush.msra.mxu0 %v2886
      %v2888 = vand.u32 %v2821, 4294901760
      %2889 = vmatmul.f32.gmra.mxu0 %v2888
      %v2890 = vpop.f32.mrf.mxu0
      %v2891 = vadd.f32 %v2850, %v2890
      %2892 = vdwg.mxu0
      %2893 = vmatpush.msra.mxu0 0.0
      %2894 = vmatpush.msra.mxu0 0.0
      %2895 = vmatpush.msra.mxu0 0.0
      %2896 = vmatpush.msra.mxu0 0.0
      %2897 = vmatpush.msra.mxu0 0.0
      %2898 = vmatpush.msra.mxu0 0.0
      %2899 = vmatpush.msra.mxu0 0.0
      %2900 = vmatpush.msra.mxu0 0.0
      %2901 = vmatpush.msra.mxu0 0.0
      %2902 = vmatpush.msra.mxu0 0.0
      %2903 = vmatpush.msra.mxu0 0.0
      %2904 = vmatpush.msra.mxu0 0.0
      %v2905 = vand.u32 %v2818, 4294901760
      %v2906 = vsub.f32 %v2818, %v2905
      %2907 = vmatpush.msra.mxu0 %v2906
      %v2908 = vand.u32 %v2817, 4294901760
      %v2909 = vsub.f32 %v2817, %v2908
      %2910 = vmatpush.msra.mxu0 %v2909
      %v2911 = vand.u32 %v2816, 4294901760
      %v2912 = vsub.f32 %v2816, %v2911
      %2913 = vmatpush.msra.mxu0 %v2912
      %v2914 = vand.u32 %v2815, 4294901760
      %v2915 = vsub.f32 %v2815, %v2914
      %2916 = vmatpush.msra.mxu0 %v2915
      %v2917 = vand.u32 %v2821, 4294901760
      %v2918 = vsub.f32 %v2821, %v2917
      %2919 = vmatmul.f32.gmra.mxu0 %v2918
      %v2920 = vpop.f32.mrf.mxu0
      %v2921 = vadd.f32 %v2891, %v2920
      %2922 = vdwg.mxu0
      %2923 = vmatpush.msra.mxu0 0.0
      %2924 = vmatpush.msra.mxu0 0.0
      %2925 = vmatpush.msra.mxu0 0.0
      %2926 = vmatpush.msra.mxu0 0.0
      %2927 = vmatpush.msra.mxu0 0.0
      %2928 = vmatpush.msra.mxu0 0.0
      %2929 = vmatpush.msra.mxu0 0.0
      %2930 = vmatpush.msra.mxu0 0.0
      %2931 = vmatpush.msra.mxu0 0.0
      %2932 = vmatpush.msra.mxu0 0.0
      %2933 = vmatpush.msra.mxu0 0.0
      %2934 = vmatpush.msra.mxu0 0.0
      %v2935 = vand.u32 %v2818, 4294901760
      %2936 = vmatpush.msra.mxu0 %v2935
      %v2937 = vand.u32 %v2817, 4294901760
      %2938 = vmatpush.msra.mxu0 %v2937
      %v2939 = vand.u32 %v2816, 4294901760
      %2940 = vmatpush.msra.mxu0 %v2939
      %v2941 = vand.u32 %v2815, 4294901760
      %2942 = vmatpush.msra.mxu0 %v2941
      %v2943 = vand.u32 %v2821, 4294901760
      %v2944 = vsub.f32 %v2821, %v2943
      %v2945 = vand.u32 %v2944, 4294901760
      %2946 = vmatmul.f32.gmra.mxu0 %v2945
      %v2947 = vpop.f32.mrf.mxu0
      %v2948 = vadd.f32 %v2921, %v2947
      %2949 = vdwg.mxu0
      %2950 = vmatpush.msra.mxu0 0.0
      %2951 = vmatpush.msra.mxu0 0.0
      %2952 = vmatpush.msra.mxu0 0.0
      %2953 = vmatpush.msra.mxu0 0.0
      %2954 = vmatpush.msra.mxu0 0.0
      %2955 = vmatpush.msra.mxu0 0.0
      %2956 = vmatpush.msra.mxu0 0.0
      %2957 = vmatpush.msra.mxu0 0.0
      %2958 = vmatpush.msra.mxu0 0.0
      %2959 = vmatpush.msra.mxu0 0.0
      %2960 = vmatpush.msra.mxu0 0.0
      %2961 = vmatpush.msra.mxu0 0.0
      %v2962 = vand.u32 %v2818, 4294901760
      %v2963 = vsub.f32 %v2818, %v2962
      %v2964 = vand.u32 %v2963, 4294901760
      %2965 = vmatpush.msra.mxu0 %v2964
      %v2966 = vand.u32 %v2817, 4294901760
      %v2967 = vsub.f32 %v2817, %v2966
      %v2968 = vand.u32 %v2967, 4294901760
      %2969 = vmatpush.msra.mxu0 %v2968
      %v2970 = vand.u32 %v2816, 4294901760
      %v2971 = vsub.f32 %v2816, %v2970
      %v2972 = vand.u32 %v2971, 4294901760
      %2973 = vmatpush.msra.mxu0 %v2972
      %v2974 = vand.u32 %v2815, 4294901760
      %v2975 = vsub.f32 %v2815, %v2974
      %v2976 = vand.u32 %v2975, 4294901760
      %2977 = vmatpush.msra.mxu0 %v2976
      %v2978 = vand.u32 %v2821, 4294901760
      %2979 = vmatmul.f32.gmra.mxu0 %v2978
      %v2980 = vpop.f32.mrf.mxu0
      %v2981 = vadd.f32 %v2948, %v2980
      %2982 = vdwg.mxu0
      %2983 = vmatpush.msra.mxu0 0.0
      %2984 = vmatpush.msra.mxu0 0.0
      %2985 = vmatpush.msra.mxu0 0.0
      %2986 = vmatpush.msra.mxu0 0.0
      %2987 = vmatpush.msra.mxu0 0.0
      %2988 = vmatpush.msra.mxu0 0.0
      %2989 = vmatpush.msra.mxu0 0.0
      %2990 = vmatpush.msra.mxu0 0.0
      %2991 = vmatpush.msra.mxu0 0.0
      %2992 = vmatpush.msra.mxu0 0.0
      %2993 = vmatpush.msra.mxu0 0.0
      %2994 = vmatpush.msra.mxu0 0.0
      %v2995 = vand.u32 %v2818, 4294901760
      %2996 = vmatpush.msra.mxu0 %v2995
      %v2997 = vand.u32 %v2817, 4294901760
      %2998 = vmatpush.msra.mxu0 %v2997
      %v2999 = vand.u32 %v2816, 4294901760
      %3000 = vmatpush.msra.mxu0 %v2999
      %v3001 = vand.u32 %v2815, 4294901760
      %3002 = vmatpush.msra.mxu0 %v3001
      %v3003 = vand.u32 %v2821, 4294901760
      %3004 = vmatmul.f32.gmra.mxu0 %v3003
      %v3005 = vpop.f32.mrf.mxu0
      %v3006 = vadd.f32 %v2981, %v3005
      %3007 = vdwg.mxu0
      %v3008 = vld [vmem:[%s12] sm:$0x7f]
      %s3009 = scalar_lea.vmem %s13, 32
      %v3010 = vld [vmem:[%s3009] sm:$0xff]
      %v3011 = vld [vmem:[%s3009 + $0x8] sm:$0xff]
      %v3012 = vld [vmem:[%s3009 + $0x10] sm:$0xff]
      %v3013 = vld [vmem:[%s3009 + $0x18] sm:$0xff]
      %3014 = vmatpush.msra.mxu0 0.0
      %3015 = vmatpush.msra.mxu0 0.0
      %3016 = vmatpush.msra.mxu0 0.0
      %3017 = vmatpush.msra.mxu0 0.0
      %3018 = vmatpush.msra.mxu0 0.0
      %3019 = vmatpush.msra.mxu0 0.0
      %3020 = vmatpush.msra.mxu0 0.0
      %3021 = vmatpush.msra.mxu0 0.0
      %3022 = vmatpush.msra.mxu0 0.0
      %3023 = vmatpush.msra.mxu0 0.0
      %3024 = vmatpush.msra.mxu0 0.0
      %3025 = vmatpush.msra.mxu0 0.0
      %v3026 = vand.u32 %v3013, 4294901760
      %3027 = vmatpush.msra.mxu0 %v3026
      %v3028 = vand.u32 %v3012, 4294901760
      %3029 = vmatpush.msra.mxu0 %v3028
      %v3030 = vand.u32 %v3011, 4294901760
      %3031 = vmatpush.msra.mxu0 %v3030
      %v3032 = vand.u32 %v3010, 4294901760
      %3033 = vmatpush.msra.mxu0 %v3032
      %v3034 = vand.u32 %v2821, 4294901760
      %v3035 = vsub.f32 %v2821, %v3034
      %v3036 = vand.u32 %v3035, 4294901760
      %v3037 = vsub.f32 %v3035, %v3036
      %v3038 = vand.u32 %v3037, 4294901760
      %3039 = vmatmul.f32.gmra.mxu0 %v3038
      %v3040 = vpop.f32.mrf.mxu0
      %v3041 = vadd.f32 0.0, %v3040
      %3042 = vdwg.mxu0
      %3043 = vmatpush.msra.mxu0 0.0
      %3044 = vmatpush.msra.mxu0 0.0
      %3045 = vmatpush.msra.mxu0 0.0
      %3046 = vmatpush.msra.mxu0 0.0
      %3047 = vmatpush.msra.mxu0 0.0
      %3048 = vmatpush.msra.mxu0 0.0
      %3049 = vmatpush.msra.mxu0 0.0
      %3050 = vmatpush.msra.mxu0 0.0
      %3051 = vmatpush.msra.mxu0 0.0
      %3052 = vmatpush.msra.mxu0 0.0
      %3053 = vmatpush.msra.mxu0 0.0
      %3054 = vmatpush.msra.mxu0 0.0
      %v3055 = vand.u32 %v3013, 4294901760
      %v3056 = vsub.f32 %v3013, %v3055
      %v3057 = vand.u32 %v3056, 4294901760
      %v3058 = vsub.f32 %v3056, %v3057
      %v3059 = vand.u32 %v3058, 4294901760
      %3060 = vmatpush.msra.mxu0 %v3059
      %v3061 = vand.u32 %v3012, 4294901760
      %v3062 = vsub.f32 %v3012, %v3061
      %v3063 = vand.u32 %v3062, 4294901760
      %v3064 = vsub.f32 %v3062, %v3063
      %v3065 = vand.u32 %v3064, 4294901760
      %3066 = vmatpush.msra.mxu0 %v3065
      %v3067 = vand.u32 %v3011, 4294901760
      %v3068 = vsub.f32 %v3011, %v3067
      %v3069 = vand.u32 %v3068, 4294901760
      %v3070 = vsub.f32 %v3068, %v3069
      %v3071 = vand.u32 %v3070, 4294901760
      %3072 = vmatpush.msra.mxu0 %v3071
      %v3073 = vand.u32 %v3010, 4294901760
      %v3074 = vsub.f32 %v3010, %v3073
      %v3075 = vand.u32 %v3074, 4294901760
      %v3076 = vsub.f32 %v3074, %v3075
      %v3077 = vand.u32 %v3076, 4294901760
      %3078 = vmatpush.msra.mxu0 %v3077
      %v3079 = vand.u32 %v2821, 4294901760
      %3080 = vmatmul.f32.gmra.mxu0 %v3079
      %v3081 = vpop.f32.mrf.mxu0
      %v3082 = vadd.f32 %v3041, %v3081
      %3083 = vdwg.mxu0
      %3084 = vmatpush.msra.mxu0 0.0
      %3085 = vmatpush.msra.mxu0 0.0
      %3086 = vmatpush.msra.mxu0 0.0
      %3087 = vmatpush.msra.mxu0 0.0
      %3088 = vmatpush.msra.mxu0 0.0
      %3089 = vmatpush.msra.mxu0 0.0
      %3090 = vmatpush.msra.mxu0 0.0
      %3091 = vmatpush.msra.mxu0 0.0
      %3092 = vmatpush.msra.mxu0 0.0
      %3093 = vmatpush.msra.mxu0 0.0
      %3094 = vmatpush.msra.mxu0 0.0
      %3095 = vmatpush.msra.mxu0 0.0
      %v3096 = vand.u32 %v3013, 4294901760
      %v3097 = vsub.f32 %v3013, %v3096
      %3098 = vmatpush.msra.mxu0 %v3097
      %v3099 = vand.u32 %v3012, 4294901760
      %v3100 = vsub.f32 %v3012, %v3099
      %3101 = vmatpush.msra.mxu0 %v3100
      %v3102 = vand.u32 %v3011, 4294901760
      %v3103 = vsub.f32 %v3011, %v3102
      %3104 = vmatpush.msra.mxu0 %v3103
      %v3105 = vand.u32 %v3010, 4294901760
      %v3106 = vsub.f32 %v3010, %v3105
      %3107 = vmatpush.msra.mxu0 %v3106
      %v3108 = vand.u32 %v2821, 4294901760
      %v3109 = vsub.f32 %v2821, %v3108
      %3110 = vmatmul.f32.gmra.mxu0 %v3109
      %v3111 = vpop.f32.mrf.mxu0
      %v3112 = vadd.f32 %v3082, %v3111
      %3113 = vdwg.mxu0
      %3114 = vmatpush.msra.mxu0 0.0
      %3115 = vmatpush.msra.mxu0 0.0
      %3116 = vmatpush.msra.mxu0 0.0
      %3117 = vmatpush.msra.mxu0 0.0
      %3118 = vmatpush.msra.mxu0 0.0
      %3119 = vmatpush.msra.mxu0 0.0
      %3120 = vmatpush.msra.mxu0 0.0
      %3121 = vmatpush.msra.mxu0 0.0
      %3122 = vmatpush.msra.mxu0 0.0
      %3123 = vmatpush.msra.mxu0 0.0
      %3124 = vmatpush.msra.mxu0 0.0
      %3125 = vmatpush.msra.mxu0 0.0
      %v3126 = vand.u32 %v3013, 4294901760
      %3127 = vmatpush.msra.mxu0 %v3126
      %v3128 = vand.u32 %v3012, 4294901760
      %3129 = vmatpush.msra.mxu0 %v3128
      %v3130 = vand.u32 %v3011, 4294901760
      %3131 = vmatpush.msra.mxu0 %v3130
      %v3132 = vand.u32 %v3010, 4294901760
      %3133 = vmatpush.msra.mxu0 %v3132
      %v3134 = vand.u32 %v2821, 4294901760
      %v3135 = vsub.f32 %v2821, %v3134
      %v3136 = vand.u32 %v3135, 4294901760
      %3137 = vmatmul.f32.gmra.mxu0 %v3136
      %v3138 = vpop.f32.mrf.mxu0
      %v3139 = vadd.f32 %v3112, %v3138
      %3140 = vdwg.mxu0
      %3141 = vmatpush.msra.mxu0 0.0
      %3142 = vmatpush.msra.mxu0 0.0
      %3143 = vmatpush.msra.mxu0 0.0
      %3144 = vmatpush.msra.mxu0 0.0
      %3145 = vmatpush.msra.mxu0 0.0
      %3146 = vmatpush.msra.mxu0 0.0
      %3147 = vmatpush.msra.mxu0 0.0
      %3148 = vmatpush.msra.mxu0 0.0
      %3149 = vmatpush.msra.mxu0 0.0
      %3150 = vmatpush.msra.mxu0 0.0
      %3151 = vmatpush.msra.mxu0 0.0
      %3152 = vmatpush.msra.mxu0 0.0
      %v3153 = vand.u32 %v3013, 4294901760
      %v3154 = vsub.f32 %v3013, %v3153
      %v3155 = vand.u32 %v3154, 4294901760
      %3156 = vmatpush.msra.mxu0 %v3155
      %v3157 = vand.u32 %v3012, 4294901760
      %v3158 = vsub.f32 %v3012, %v3157
      %v3159 = vand.u32 %v3158, 4294901760
      %3160 = vmatpush.msra.mxu0 %v3159
      %v3161 = vand.u32 %v3011, 4294901760
      %v3162 = vsub.f32 %v3011, %v3161
      %v3163 = vand.u32 %v3162, 4294901760
      %3164 = vmatpush.msra.mxu0 %v3163
      %v3165 = vand.u32 %v3010, 4294901760
      %v3166 = vsub.f32 %v3010, %v3165
      %v3167 = vand.u32 %v3166, 4294901760
      %3168 = vmatpush.msra.mxu0 %v3167
      %v3169 = vand.u32 %v2821, 4294901760
      %3170 = vmatmul.f32.gmra.mxu0 %v3169
      %v3171 = vpop.f32.mrf.mxu0
      %v3172 = vadd.f32 %v3139, %v3171
      %3173 = vdwg.mxu0
      %3174 = vmatpush.msra.mxu0 0.0
      %3175 = vmatpush.msra.mxu0 0.0
      %3176 = vmatpush.msra.mxu0 0.0
      %3177 = vmatpush.msra.mxu0 0.0
      %3178 = vmatpush.msra.mxu0 0.0
      %3179 = vmatpush.msra.mxu0 0.0
      %3180 = vmatpush.msra.mxu0 0.0
      %3181 = vmatpush.msra.mxu0 0.0
      %3182 = vmatpush.msra.mxu0 0.0
      %3183 = vmatpush.msra.mxu0 0.0
      %3184 = vmatpush.msra.mxu0 0.0
      %3185 = vmatpush.msra.mxu0 0.0
      %v3186 = vand.u32 %v3013, 4294901760
      %3187 = vmatpush.msra.mxu0 %v3186
      %v3188 = vand.u32 %v3012, 4294901760
      %3189 = vmatpush.msra.mxu0 %v3188
      %v3190 = vand.u32 %v3011, 4294901760
      %3191 = vmatpush.msra.mxu0 %v3190
      %v3192 = vand.u32 %v3010, 4294901760
      %3193 = vmatpush.msra.mxu0 %v3192
      %v3194 = vand.u32 %v2821, 4294901760
      %3195 = vmatmul.f32.gmra.mxu0 %v3194
      %v3196 = vpop.f32.mrf.mxu0
      %v3197 = vadd.f32 %v3172, %v3196
      %3198 = vdwg.mxu0
      %s3199 = scalar_lea.vmem %s12, 8
      %v3200 = vld [vmem:[%s3199] sm:$0x7f]
      %vm3201 = vcmask 23552
      %v3203 = vsel %vm3201, %v3200, 0
      %vm3205 = vcmask 1042432
      %v3207 = vsel %vm3205, %v3197, 0
      %3209 = vmatpush.msra.mxu0 0.0
      %3210 = vmatpush.msra.mxu0 0.0
      %3211 = vmatpush.msra.mxu0 0.0
      %3212 = vmatpush.msra.mxu0 0.0
      %3213 = vmatpush.msra.mxu0 0.0
      %3214 = vmatpush.msra.mxu0 0.0
      %3215 = vmatpush.msra.mxu0 0.0
      %3216 = vmatpush.msra.mxu0 0.0
      %3217 = vmatpush.msra.mxu0 0.0
      %3218 = vmatpush.msra.mxu0 0.0
      %3219 = vmatpush.msra.mxu0 0.0
      %3220 = vmatpush.msra.mxu0 0.0
      %3221 = vmatpush.msra.mxu0 0.0
      %3222 = vmatpush.msra.mxu0 0.0
      %3223 = vmatpush.msra.mxu0 0.0
      %v3224 = vand.u32 %v3207, 4294901760
      %3225 = vmatpush.msra.mxu0 %v3224
      %v3226 = vand.u32 %v3203, 4294901760
      %v3227 = vsub.f32 %v3203, %v3226
      %v3228 = vand.u32 %v3227, 4294901760
      %v3229 = vsub.f32 %v3227, %v3228
      %v3230 = vand.u32 %v3229, 4294901760
      %3231 = vmatmul.f32.gmra.mxu0 %v3230
      %v3232 = vpop.f32.mrf.mxu0
      %v3233 = vadd.f32 0.0, %v3232
      %3234 = vdwg.mxu0
      %3235 = vmatpush.msra.mxu0 0.0
      %3236 = vmatpush.msra.mxu0 0.0
      %3237 = vmatpush.msra.mxu0 0.0
      %3238 = vmatpush.msra.mxu0 0.0
      %3239 = vmatpush.msra.mxu0 0.0
      %3240 = vmatpush.msra.mxu0 0.0
      %3241 = vmatpush.msra.mxu0 0.0
      %3242 = vmatpush.msra.mxu0 0.0
      %3243 = vmatpush.msra.mxu0 0.0
      %3244 = vmatpush.msra.mxu0 0.0
      %3245 = vmatpush.msra.mxu0 0.0
      %3246 = vmatpush.msra.mxu0 0.0
      %3247 = vmatpush.msra.mxu0 0.0
      %3248 = vmatpush.msra.mxu0 0.0
      %3249 = vmatpush.msra.mxu0 0.0
      %v3250 = vand.u32 %v3207, 4294901760
      %v3251 = vsub.f32 %v3207, %v3250
      %v3252 = vand.u32 %v3251, 4294901760
      %v3253 = vsub.f32 %v3251, %v3252
      %v3254 = vand.u32 %v3253, 4294901760
      %3255 = vmatpush.msra.mxu0 %v3254
      %v3256 = vand.u32 %v3203, 4294901760
      %3257 = vmatmul.f32.gmra.mxu0 %v3256
      %v3258 = vpop.f32.mrf.mxu0
      %v3259 = vadd.f32 %v3233, %v3258
      %3260 = vdwg.mxu0
      %3261 = vmatpush.msra.mxu0 0.0
      %3262 = vmatpush.msra.mxu0 0.0
      %3263 = vmatpush.msra.mxu0 0.0
      %3264 = vmatpush.msra.mxu0 0.0
      %3265 = vmatpush.msra.mxu0 0.0
      %3266 = vmatpush.msra.mxu0 0.0
      %3267 = vmatpush.msra.mxu0 0.0
      %3268 = vmatpush.msra.mxu0 0.0
      %3269 = vmatpush.msra.mxu0 0.0
      %3270 = vmatpush.msra.mxu0 0.0
      %3271 = vmatpush.msra.mxu0 0.0
      %3272 = vmatpush.msra.mxu0 0.0
      %3273 = vmatpush.msra.mxu0 0.0
      %3274 = vmatpush.msra.mxu0 0.0
      %3275 = vmatpush.msra.mxu0 0.0
      %v3276 = vand.u32 %v3207, 4294901760
      %v3277 = vsub.f32 %v3207, %v3276
      %3278 = vmatpush.msra.mxu0 %v3277
      %v3279 = vand.u32 %v3203, 4294901760
      %v3280 = vsub.f32 %v3203, %v3279
      %3281 = vmatmul.f32.gmra.mxu0 %v3280
      %v3282 = vpop.f32.mrf.mxu0
      %v3283 = vadd.f32 %v3259, %v3282
      %3284 = vdwg.mxu0
      %3285 = vmatpush.msra.mxu0 0.0
      %3286 = vmatpush.msra.mxu0 0.0
      %3287 = vmatpush.msra.mxu0 0.0
      %3288 = vmatpush.msra.mxu0 0.0
      %3289 = vmatpush.msra.mxu0 0.0
      %3290 = vmatpush.msra.mxu0 0.0
      %3291 = vmatpush.msra.mxu0 0.0
      %3292 = vmatpush.msra.mxu0 0.0
      %3293 = vmatpush.msra.mxu0 0.0
      %3294 = vmatpush.msra.mxu0 0.0
      %3295 = vmatpush.msra.mxu0 0.0
      %3296 = vmatpush.msra.mxu0 0.0
      %3297 = vmatpush.msra.mxu0 0.0
      %3298 = vmatpush.msra.mxu0 0.0
      %3299 = vmatpush.msra.mxu0 0.0
      %v3300 = vand.u32 %v3207, 4294901760
      %3301 = vmatpush.msra.mxu0 %v3300
      %v3302 = vand.u32 %v3203, 4294901760
      %v3303 = vsub.f32 %v3203, %v3302
      %v3304 = vand.u32 %v3303, 4294901760
      %3305 = vmatmul.f32.gmra.mxu0 %v3304
      %v3306 = vpop.f32.mrf.mxu0
      %v3307 = vadd.f32 %v3283, %v3306
      %3308 = vdwg.mxu0
      %3309 = vmatpush.msra.mxu0 0.0
      %3310 = vmatpush.msra.mxu0 0.0
      %3311 = vmatpush.msra.mxu0 0.0
      %3312 = vmatpush.msra.mxu0 0.0
      %3313 = vmatpush.msra.mxu0 0.0
      %3314 = vmatpush.msra.mxu0 0.0
      %3315 = vmatpush.msra.mxu0 0.0
      %3316 = vmatpush.msra.mxu0 0.0
      %3317 = vmatpush.msra.mxu0 0.0
      %3318 = vmatpush.msra.mxu0 0.0
      %3319 = vmatpush.msra.mxu0 0.0
      %3320 = vmatpush.msra.mxu0 0.0
      %3321 = vmatpush.msra.mxu0 0.0
      %3322 = vmatpush.msra.mxu0 0.0
      %3323 = vmatpush.msra.mxu0 0.0
      %v3324 = vand.u32 %v3207, 4294901760
      %v3325 = vsub.f32 %v3207, %v3324
      %v3326 = vand.u32 %v3325, 4294901760
      %3327 = vmatpush.msra.mxu0 %v3326
      %v3328 = vand.u32 %v3203, 4294901760
      %3329 = vmatmul.f32.gmra.mxu0 %v3328
      %v3330 = vpop.f32.mrf.mxu0
      %v3331 = vadd.f32 %v3307, %v3330
      %3332 = vdwg.mxu0
      %3333 = vmatpush.msra.mxu0 0.0
      %3334 = vmatpush.msra.mxu0 0.0
      %3335 = vmatpush.msra.mxu0 0.0
      %3336 = vmatpush.msra.mxu0 0.0
      %3337 = vmatpush.msra.mxu0 0.0
      %3338 = vmatpush.msra.mxu0 0.0
      %3339 = vmatpush.msra.mxu0 0.0
      %3340 = vmatpush.msra.mxu0 0.0
      %3341 = vmatpush.msra.mxu0 0.0
      %3342 = vmatpush.msra.mxu0 0.0
      %3343 = vmatpush.msra.mxu0 0.0
      %3344 = vmatpush.msra.mxu0 0.0
      %3345 = vmatpush.msra.mxu0 0.0
      %3346 = vmatpush.msra.mxu0 0.0
      %3347 = vmatpush.msra.mxu0 0.0
      %v3348 = vand.u32 %v3207, 4294901760
      %3349 = vmatpush.msra.mxu0 %v3348
      %v3350 = vand.u32 %v3203, 4294901760
      %3351 = vmatmul.f32.gmra.mxu0 %v3350
      %v3352 = vpop.f32.mrf.mxu0
      %v3353 = vadd.f32 %v3331, %v3352
      %3354 = vdwg.mxu0
      %v3356 = vsel %vm3201, %v3008, 0
      %v3359 = vsel %vm3205, %v3006, 0
      %3361 = vmatpush.msra.mxu0 0.0
      %3362 = vmatpush.msra.mxu0 0.0
      %3363 = vmatpush.msra.mxu0 0.0
      %3364 = vmatpush.msra.mxu0 0.0
      %3365 = vmatpush.msra.mxu0 0.0
      %3366 = vmatpush.msra.mxu0 0.0
      %3367 = vmatpush.msra.mxu0 0.0
      %3368 = vmatpush.msra.mxu0 0.0
      %3369 = vmatpush.msra.mxu0 0.0
      %3370 = vmatpush.msra.mxu0 0.0
      %3371 = vmatpush.msra.mxu0 0.0
      %3372 = vmatpush.msra.mxu0 0.0
      %3373 = vmatpush.msra.mxu0 0.0
      %3374 = vmatpush.msra.mxu0 0.0
      %3375 = vmatpush.msra.mxu0 0.0
      %v3376 = vand.u32 %v3359, 4294901760
      %3377 = vmatpush.msra.mxu0 %v3376
      %v3378 = vand.u32 %v3356, 4294901760
      %v3379 = vsub.f32 %v3356, %v3378
      %v3380 = vand.u32 %v3379, 4294901760
      %v3381 = vsub.f32 %v3379, %v3380
      %v3382 = vand.u32 %v3381, 4294901760
      %3383 = vmatmul.f32.gmra.mxu0 %v3382
      %v3384 = vpop.f32.mrf.mxu0
      %v3385 = vadd.f32 %v3353, %v3384
      %3386 = vdwg.mxu0
      %3387 = vmatpush.msra.mxu0 0.0
      %3388 = vmatpush.msra.mxu0 0.0
      %3389 = vmatpush.msra.mxu0 0.0
      %3390 = vmatpush.msra.mxu0 0.0
      %3391 = vmatpush.msra.mxu0 0.0
      %3392 = vmatpush.msra.mxu0 0.0
      %3393 = vmatpush.msra.mxu0 0.0
      %3394 = vmatpush.msra.mxu0 0.0
      %3395 = vmatpush.msra.mxu0 0.0
      %3396 = vmatpush.msra.mxu0 0.0
      %3397 = vmatpush.msra.mxu0 0.0
      %3398 = vmatpush.msra.mxu0 0.0
      %3399 = vmatpush.msra.mxu0 0.0
      %3400 = vmatpush.msra.mxu0 0.0
      %3401 = vmatpush.msra.mxu0 0.0
      %v3402 = vand.u32 %v3359, 4294901760
      %v3403 = vsub.f32 %v3359, %v3402
      %v3404 = vand.u32 %v3403, 4294901760
      %v3405 = vsub.f32 %v3403, %v3404
      %v3406 = vand.u32 %v3405, 4294901760
      %3407 = vmatpush.msra.mxu0 %v3406
      %v3408 = vand.u32 %v3356, 4294901760
      %3409 = vmatmul.f32.gmra.mxu0 %v3408
      %v3410 = vpop.f32.mrf.mxu0
      %v3411 = vadd.f32 %v3385, %v3410
      %3412 = vdwg.mxu0
      %3413 = vmatpush.msra.mxu0 0.0
      %3414 = vmatpush.msra.mxu0 0.0
      %3415 = vmatpush.msra.mxu0 0.0
      %3416 = vmatpush.msra.mxu0 0.0
      %3417 = vmatpush.msra.mxu0 0.0
      %3418 = vmatpush.msra.mxu0 0.0
      %3419 = vmatpush.msra.mxu0 0.0
      %3420 = vmatpush.msra.mxu0 0.0
      %3421 = vmatpush.msra.mxu0 0.0
      %3422 = vmatpush.msra.mxu0 0.0
      %3423 = vmatpush.msra.mxu0 0.0
      %3424 = vmatpush.msra.mxu0 0.0
      %3425 = vmatpush.msra.mxu0 0.0
      %3426 = vmatpush.msra.mxu0 0.0
      %3427 = vmatpush.msra.mxu0 0.0
      %v3428 = vand.u32 %v3359, 4294901760
      %v3429 = vsub.f32 %v3359, %v3428
      %3430 = vmatpush.msra.mxu0 %v3429
      %v3431 = vand.u32 %v3356, 4294901760
      %v3432 = vsub.f32 %v3356, %v3431
      %3433 = vmatmul.f32.gmra.mxu0 %v3432
      %v3434 = vpop.f32.mrf.mxu0
      %v3435 = vadd.f32 %v3411, %v3434
      %3436 = vdwg.mxu0
      %3437 = vmatpush.msra.mxu0 0.0
      %3438 = vmatpush.msra.mxu0 0.0
      %3439 = vmatpush.msra.mxu0 0.0
      %3440 = vmatpush.msra.mxu0 0.0
      %3441 = vmatpush.msra.mxu0 0.0
      %3442 = vmatpush.msra.mxu0 0.0
      %3443 = vmatpush.msra.mxu0 0.0
      %3444 = vmatpush.msra.mxu0 0.0
      %3445 = vmatpush.msra.mxu0 0.0
      %3446 = vmatpush.msra.mxu0 0.0
      %3447 = vmatpush.msra.mxu0 0.0
      %3448 = vmatpush.msra.mxu0 0.0
      %3449 = vmatpush.msra.mxu0 0.0
      %3450 = vmatpush.msra.mxu0 0.0
      %3451 = vmatpush.msra.mxu0 0.0
      %v3452 = vand.u32 %v3359, 4294901760
      %3453 = vmatpush.msra.mxu0 %v3452
      %v3454 = vand.u32 %v3356, 4294901760
      %v3455 = vsub.f32 %v3356, %v3454
      %v3456 = vand.u32 %v3455, 4294901760
      %3457 = vmatmul.f32.gmra.mxu0 %v3456
      %v3458 = vpop.f32.mrf.mxu0
      %v3459 = vadd.f32 %v3435, %v3458
      %3460 = vdwg.mxu0
      %3461 = vmatpush.msra.mxu0 0.0
      %3462 = vmatpush.msra.mxu0 0.0
      %3463 = vmatpush.msra.mxu0 0.0
      %3464 = vmatpush.msra.mxu0 0.0
      %3465 = vmatpush.msra.mxu0 0.0
      %3466 = vmatpush.msra.mxu0 0.0
      %3467 = vmatpush.msra.mxu0 0.0
      %3468 = vmatpush.msra.mxu0 0.0
      %3469 = vmatpush.msra.mxu0 0.0
      %3470 = vmatpush.msra.mxu0 0.0
      %3471 = vmatpush.msra.mxu0 0.0
      %3472 = vmatpush.msra.mxu0 0.0
      %3473 = vmatpush.msra.mxu0 0.0
      %3474 = vmatpush.msra.mxu0 0.0
      %3475 = vmatpush.msra.mxu0 0.0
      %v3476 = vand.u32 %v3359, 4294901760
      %v3477 = vsub.f32 %v3359, %v3476
      %v3478 = vand.u32 %v3477, 4294901760
      %3479 = vmatpush.msra.mxu0 %v3478
      %v3480 = vand.u32 %v3356, 4294901760
      %3481 = vmatmul.f32.gmra.mxu0 %v3480
      %v3482 = vpop.f32.mrf.mxu0
      %v3483 = vadd.f32 %v3459, %v3482
      %3484 = vdwg.mxu0
      %3485 = vmatpush.msra.mxu0 0.0
      %3486 = vmatpush.msra.mxu0 0.0
      %3487 = vmatpush.msra.mxu0 0.0
      %3488 = vmatpush.msra.mxu0 0.0
      %3489 = vmatpush.msra.mxu0 0.0
      %3490 = vmatpush.msra.mxu0 0.0
      %3491 = vmatpush.msra.mxu0 0.0
      %3492 = vmatpush.msra.mxu0 0.0
      %3493 = vmatpush.msra.mxu0 0.0
      %3494 = vmatpush.msra.mxu0 0.0
      %3495 = vmatpush.msra.mxu0 0.0
      %3496 = vmatpush.msra.mxu0 0.0
      %3497 = vmatpush.msra.mxu0 0.0
      %3498 = vmatpush.msra.mxu0 0.0
      %3499 = vmatpush.msra.mxu0 0.0
      %v3500 = vand.u32 %v3359, 4294901760
      %3501 = vmatpush.msra.mxu0 %v3500
      %v3502 = vand.u32 %v3356, 4294901760
      %3503 = vmatmul.f32.gmra.mxu0 %v3502
      %v3504 = vpop.f32.mrf.mxu0
      %v3505 = vadd.f32 %v3483, %v3504
      %3506 = vdwg.mxu0
      %s3507 = scalar_lea.vmem %s13, 64
      %v3508 = vld [vmem:[%s3507] sm:$0xff]
      %v3509 = vld [vmem:[%s3507 + $0x8] sm:$0xff]
      %v3510 = vld [vmem:[%s3507 + $0x10] sm:$0xff]
      %v3511 = vld [vmem:[%s3507 + $0x18] sm:$0xff]
      %3512 = vmatpush.msra.mxu0 0.0
      %3513 = vmatpush.msra.mxu0 0.0
      %3514 = vmatpush.msra.mxu0 0.0
      %3515 = vmatpush.msra.mxu0 0.0
      %3516 = vmatpush.msra.mxu0 0.0
      %3517 = vmatpush.msra.mxu0 0.0
      %3518 = vmatpush.msra.mxu0 0.0
      %3519 = vmatpush.msra.mxu0 0.0
      %3520 = vmatpush.msra.mxu0 0.0
      %3521 = vmatpush.msra.mxu0 0.0
      %3522 = vmatpush.msra.mxu0 0.0
      %3523 = vmatpush.msra.mxu0 0.0
      %v3524 = vand.u32 %v3511, 4294901760
      %3525 = vmatpush.msra.mxu0 %v3524
      %v3526 = vand.u32 %v3510, 4294901760
      %3527 = vmatpush.msra.mxu0 %v3526
      %v3528 = vand.u32 %v3509, 4294901760
      %3529 = vmatpush.msra.mxu0 %v3528
      %v3530 = vand.u32 %v3508, 4294901760
      %3531 = vmatpush.msra.mxu0 %v3530
      %v3532 = vand.u32 %v2821, 4294901760
      %v3533 = vsub.f32 %v2821, %v3532
      %v3534 = vand.u32 %v3533, 4294901760
      %v3535 = vsub.f32 %v3533, %v3534
      %v3536 = vand.u32 %v3535, 4294901760
      %3537 = vmatmul.f32.gmra.mxu0 %v3536
      %v3538 = vpop.f32.mrf.mxu0
      %v3539 = vadd.f32 0.0, %v3538
      %3540 = vdwg.mxu0
      %3541 = vmatpush.msra.mxu0 0.0
      %3542 = vmatpush.msra.mxu0 0.0
      %3543 = vmatpush.msra.mxu0 0.0
      %3544 = vmatpush.msra.mxu0 0.0
      %3545 = vmatpush.msra.mxu0 0.0
      %3546 = vmatpush.msra.mxu0 0.0
      %3547 = vmatpush.msra.mxu0 0.0
      %3548 = vmatpush.msra.mxu0 0.0
      %3549 = vmatpush.msra.mxu0 0.0
      %3550 = vmatpush.msra.mxu0 0.0
      %3551 = vmatpush.msra.mxu0 0.0
      %3552 = vmatpush.msra.mxu0 0.0
      %v3553 = vand.u32 %v3511, 4294901760
      %v3554 = vsub.f32 %v3511, %v3553
      %v3555 = vand.u32 %v3554, 4294901760
      %v3556 = vsub.f32 %v3554, %v3555
      %v3557 = vand.u32 %v3556, 4294901760
      %3558 = vmatpush.msra.mxu0 %v3557
      %v3559 = vand.u32 %v3510, 4294901760
      %v3560 = vsub.f32 %v3510, %v3559
      %v3561 = vand.u32 %v3560, 4294901760
      %v3562 = vsub.f32 %v3560, %v3561
      %v3563 = vand.u32 %v3562, 4294901760
      %3564 = vmatpush.msra.mxu0 %v3563
      %v3565 = vand.u32 %v3509, 4294901760
      %v3566 = vsub.f32 %v3509, %v3565
      %v3567 = vand.u32 %v3566, 4294901760
      %v3568 = vsub.f32 %v3566, %v3567
      %v3569 = vand.u32 %v3568, 4294901760
      %3570 = vmatpush.msra.mxu0 %v3569
      %v3571 = vand.u32 %v3508, 4294901760
      %v3572 = vsub.f32 %v3508, %v3571
      %v3573 = vand.u32 %v3572, 4294901760
      %v3574 = vsub.f32 %v3572, %v3573
      %v3575 = vand.u32 %v3574, 4294901760
      %3576 = vmatpush.msra.mxu0 %v3575
      %v3577 = vand.u32 %v2821, 4294901760
      %3578 = vmatmul.f32.gmra.mxu0 %v3577
      %v3579 = vpop.f32.mrf.mxu0
      %v3580 = vadd.f32 %v3539, %v3579
      %3581 = vdwg.mxu0
      %3582 = vmatpush.msra.mxu0 0.0
      %3583 = vmatpush.msra.mxu0 0.0
      %3584 = vmatpush.msra.mxu0 0.0
      %3585 = vmatpush.msra.mxu0 0.0
      %3586 = vmatpush.msra.mxu0 0.0
      %3587 = vmatpush.msra.mxu0 0.0
      %3588 = vmatpush.msra.mxu0 0.0
      %3589 = vmatpush.msra.mxu0 0.0
      %3590 = vmatpush.msra.mxu0 0.0
      %3591 = vmatpush.msra.mxu0 0.0
      %3592 = vmatpush.msra.mxu0 0.0
      %3593 = vmatpush.msra.mxu0 0.0
      %v3594 = vand.u32 %v3511, 4294901760
      %v3595 = vsub.f32 %v3511, %v3594
      %3596 = vmatpush.msra.mxu0 %v3595
      %v3597 = vand.u32 %v3510, 4294901760
      %v3598 = vsub.f32 %v3510, %v3597
      %3599 = vmatpush.msra.mxu0 %v3598
      %v3600 = vand.u32 %v3509, 4294901760
      %v3601 = vsub.f32 %v3509, %v3600
      %3602 = vmatpush.msra.mxu0 %v3601
      %v3603 = vand.u32 %v3508, 4294901760
      %v3604 = vsub.f32 %v3508, %v3603
      %3605 = vmatpush.msra.mxu0 %v3604
      %v3606 = vand.u32 %v2821, 4294901760
      %v3607 = vsub.f32 %v2821, %v3606
      %3608 = vmatmul.f32.gmra.mxu0 %v3607
      %v3609 = vpop.f32.mrf.mxu0
      %v3610 = vadd.f32 %v3580, %v3609
      %3611 = vdwg.mxu0
      %3612 = vmatpush.msra.mxu0 0.0
      %3613 = vmatpush.msra.mxu0 0.0
      %3614 = vmatpush.msra.mxu0 0.0
      %3615 = vmatpush.msra.mxu0 0.0
      %3616 = vmatpush.msra.mxu0 0.0
      %3617 = vmatpush.msra.mxu0 0.0
      %3618 = vmatpush.msra.mxu0 0.0
      %3619 = vmatpush.msra.mxu0 0.0
      %3620 = vmatpush.msra.mxu0 0.0
      %3621 = vmatpush.msra.mxu0 0.0
      %3622 = vmatpush.msra.mxu0 0.0
      %3623 = vmatpush.msra.mxu0 0.0
      %v3624 = vand.u32 %v3511, 4294901760
      %3625 = vmatpush.msra.mxu0 %v3624
      %v3626 = vand.u32 %v3510, 4294901760
      %3627 = vmatpush.msra.mxu0 %v3626
      %v3628 = vand.u32 %v3509, 4294901760
      %3629 = vmatpush.msra.mxu0 %v3628
      %v3630 = vand.u32 %v3508, 4294901760
      %3631 = vmatpush.msra.mxu0 %v3630
      %v3632 = vand.u32 %v2821, 4294901760
      %v3633 = vsub.f32 %v2821, %v3632
      %v3634 = vand.u32 %v3633, 4294901760
      %3635 = vmatmul.f32.gmra.mxu0 %v3634
      %v3636 = vpop.f32.mrf.mxu0
      %v3637 = vadd.f32 %v3610, %v3636
      %3638 = vdwg.mxu0
      %3639 = vmatpush.msra.mxu0 0.0
      %3640 = vmatpush.msra.mxu0 0.0
      %3641 = vmatpush.msra.mxu0 0.0
      %3642 = vmatpush.msra.mxu0 0.0
      %3643 = vmatpush.msra.mxu0 0.0
      %3644 = vmatpush.msra.mxu0 0.0
      %3645 = vmatpush.msra.mxu0 0.0
      %3646 = vmatpush.msra.mxu0 0.0
      %3647 = vmatpush.msra.mxu0 0.0
      %3648 = vmatpush.msra.mxu0 0.0
      %3649 = vmatpush.msra.mxu0 0.0
      %3650 = vmatpush.msra.mxu0 0.0
      %v3651 = vand.u32 %v3511, 4294901760
      %v3652 = vsub.f32 %v3511, %v3651
      %v3653 = vand.u32 %v3652, 4294901760
      %3654 = vmatpush.msra.mxu0 %v3653
      %v3655 = vand.u32 %v3510, 4294901760
      %v3656 = vsub.f32 %v3510, %v3655
      %v3657 = vand.u32 %v3656, 4294901760
      %3658 = vmatpush.msra.mxu0 %v3657
      %v3659 = vand.u32 %v3509, 4294901760
      %v3660 = vsub.f32 %v3509, %v3659
      %v3661 = vand.u32 %v3660, 4294901760
      %3662 = vmatpush.msra.mxu0 %v3661
      %v3663 = vand.u32 %v3508, 4294901760
      %v3664 = vsub.f32 %v3508, %v3663
      %v3665 = vand.u32 %v3664, 4294901760
      %3666 = vmatpush.msra.mxu0 %v3665
      %v3667 = vand.u32 %v2821, 4294901760
      %3668 = vmatmul.f32.gmra.mxu0 %v3667
      %v3669 = vpop.f32.mrf.mxu0
      %v3670 = vadd.f32 %v3637, %v3669
      %3671 = vdwg.mxu0
      %3672 = vmatpush.msra.mxu0 0.0
      %3673 = vmatpush.msra.mxu0 0.0
      %3674 = vmatpush.msra.mxu0 0.0
      %3675 = vmatpush.msra.mxu0 0.0
      %3676 = vmatpush.msra.mxu0 0.0
      %3677 = vmatpush.msra.mxu0 0.0
      %3678 = vmatpush.msra.mxu0 0.0
      %3679 = vmatpush.msra.mxu0 0.0
      %3680 = vmatpush.msra.mxu0 0.0
      %3681 = vmatpush.msra.mxu0 0.0
      %3682 = vmatpush.msra.mxu0 0.0
      %3683 = vmatpush.msra.mxu0 0.0
      %v3684 = vand.u32 %v3511, 4294901760
      %3685 = vmatpush.msra.mxu0 %v3684
      %v3686 = vand.u32 %v3510, 4294901760
      %3687 = vmatpush.msra.mxu0 %v3686
      %v3688 = vand.u32 %v3509, 4294901760
      %3689 = vmatpush.msra.mxu0 %v3688
      %v3690 = vand.u32 %v3508, 4294901760
      %3691 = vmatpush.msra.mxu0 %v3690
      %v3692 = vand.u32 %v2821, 4294901760
      %3693 = vmatmul.f32.gmra.mxu0 %v3692
      %v3694 = vpop.f32.mrf.mxu0
      %v3695 = vadd.f32 %v3670, %v3694
      %3696 = vdwg.mxu0
      %s3697 = scalar_lea.vmem %s12, 16
      %v3698 = vld [vmem:[%s3697] sm:$0x7f]
      %v3700 = vsel %vm3201, %v3698, 0
      %v3703 = vsel %vm3205, %v3695, 0
      %3705 = vmatpush.msra.mxu0 0.0
      %3706 = vmatpush.msra.mxu0 0.0
      %3707 = vmatpush.msra.mxu0 0.0
      %3708 = vmatpush.msra.mxu0 0.0
      %3709 = vmatpush.msra.mxu0 0.0
      %3710 = vmatpush.msra.mxu0 0.0
      %3711 = vmatpush.msra.mxu0 0.0
      %3712 = vmatpush.msra.mxu0 0.0
      %3713 = vmatpush.msra.mxu0 0.0
      %3714 = vmatpush.msra.mxu0 0.0
      %3715 = vmatpush.msra.mxu0 0.0
      %3716 = vmatpush.msra.mxu0 0.0
      %3717 = vmatpush.msra.mxu0 0.0
      %3718 = vmatpush.msra.mxu0 0.0
      %3719 = vmatpush.msra.mxu0 0.0
      %v3720 = vand.u32 %v3703, 4294901760
      %3721 = vmatpush.msra.mxu0 %v3720
      %v3722 = vand.u32 %v3700, 4294901760
      %v3723 = vsub.f32 %v3700, %v3722
      %v3724 = vand.u32 %v3723, 4294901760
      %v3725 = vsub.f32 %v3723, %v3724
      %v3726 = vand.u32 %v3725, 4294901760
      %3727 = vmatmul.f32.gmra.mxu0 %v3726
      %v3728 = vpop.f32.mrf.mxu0
      %v3729 = vadd.f32 0.0, %v3728
      %3730 = vdwg.mxu0
      %3731 = vmatpush.msra.mxu0 0.0
      %3732 = vmatpush.msra.mxu0 0.0
      %3733 = vmatpush.msra.mxu0 0.0
      %3734 = vmatpush.msra.mxu0 0.0
      %3735 = vmatpush.msra.mxu0 0.0
      %3736 = vmatpush.msra.mxu0 0.0
      %3737 = vmatpush.msra.mxu0 0.0
      %3738 = vmatpush.msra.mxu0 0.0
      %3739 = vmatpush.msra.mxu0 0.0
      %3740 = vmatpush.msra.mxu0 0.0
      %3741 = vmatpush.msra.mxu0 0.0
      %3742 = vmatpush.msra.mxu0 0.0
      %3743 = vmatpush.msra.mxu0 0.0
      %3744 = vmatpush.msra.mxu0 0.0
      %3745 = vmatpush.msra.mxu0 0.0
      %v3746 = vand.u32 %v3703, 4294901760
      %v3747 = vsub.f32 %v3703, %v3746
      %v3748 = vand.u32 %v3747, 4294901760
      %v3749 = vsub.f32 %v3747, %v3748
      %v3750 = vand.u32 %v3749, 4294901760
      %3751 = vmatpush.msra.mxu0 %v3750
      %v3752 = vand.u32 %v3700, 4294901760
      %3753 = vmatmul.f32.gmra.mxu0 %v3752
      %v3754 = vpop.f32.mrf.mxu0
      %v3755 = vadd.f32 %v3729, %v3754
      %3756 = vdwg.mxu0
      %3757 = vmatpush.msra.mxu0 0.0
      %3758 = vmatpush.msra.mxu0 0.0
      %3759 = vmatpush.msra.mxu0 0.0
      %3760 = vmatpush.msra.mxu0 0.0
      %3761 = vmatpush.msra.mxu0 0.0
      %3762 = vmatpush.msra.mxu0 0.0
      %3763 = vmatpush.msra.mxu0 0.0
      %3764 = vmatpush.msra.mxu0 0.0
      %3765 = vmatpush.msra.mxu0 0.0
      %3766 = vmatpush.msra.mxu0 0.0
      %3767 = vmatpush.msra.mxu0 0.0
      %3768 = vmatpush.msra.mxu0 0.0
      %3769 = vmatpush.msra.mxu0 0.0
      %3770 = vmatpush.msra.mxu0 0.0
      %3771 = vmatpush.msra.mxu0 0.0
      %v3772 = vand.u32 %v3703, 4294901760
      %v3773 = vsub.f32 %v3703, %v3772
      %3774 = vmatpush.msra.mxu0 %v3773
      %v3775 = vand.u32 %v3700, 4294901760
      %v3776 = vsub.f32 %v3700, %v3775
      %3777 = vmatmul.f32.gmra.mxu0 %v3776
      %v3778 = vpop.f32.mrf.mxu0
      %v3779 = vadd.f32 %v3755, %v3778
      %3780 = vdwg.mxu0
      %3781 = vmatpush.msra.mxu0 0.0
      %3782 = vmatpush.msra.mxu0 0.0
      %3783 = vmatpush.msra.mxu0 0.0
      %3784 = vmatpush.msra.mxu0 0.0
      %3785 = vmatpush.msra.mxu0 0.0
      %3786 = vmatpush.msra.mxu0 0.0
      %3787 = vmatpush.msra.mxu0 0.0
      %3788 = vmatpush.msra.mxu0 0.0
      %3789 = vmatpush.msra.mxu0 0.0
      %3790 = vmatpush.msra.mxu0 0.0
      %3791 = vmatpush.msra.mxu0 0.0
      %3792 = vmatpush.msra.mxu0 0.0
      %3793 = vmatpush.msra.mxu0 0.0
      %3794 = vmatpush.msra.mxu0 0.0
      %3795 = vmatpush.msra.mxu0 0.0
      %v3796 = vand.u32 %v3703, 4294901760
      %3797 = vmatpush.msra.mxu0 %v3796
      %v3798 = vand.u32 %v3700, 4294901760
      %v3799 = vsub.f32 %v3700, %v3798
      %v3800 = vand.u32 %v3799, 4294901760
      %3801 = vmatmul.f32.gmra.mxu0 %v3800
      %v3802 = vpop.f32.mrf.mxu0
      %v3803 = vadd.f32 %v3779, %v3802
      %3804 = vdwg.mxu0
      %3805 = vmatpush.msra.mxu0 0.0
      %3806 = vmatpush.msra.mxu0 0.0
      %3807 = vmatpush.msra.mxu0 0.0
      %3808 = vmatpush.msra.mxu0 0.0
      %3809 = vmatpush.msra.mxu0 0.0
      %3810 = vmatpush.msra.mxu0 0.0
      %3811 = vmatpush.msra.mxu0 0.0
      %3812 = vmatpush.msra.mxu0 0.0
      %3813 = vmatpush.msra.mxu0 0.0
      %3814 = vmatpush.msra.mxu0 0.0
      %3815 = vmatpush.msra.mxu0 0.0
      %3816 = vmatpush.msra.mxu0 0.0
      %3817 = vmatpush.msra.mxu0 0.0
      %3818 = vmatpush.msra.mxu0 0.0
      %3819 = vmatpush.msra.mxu0 0.0
      %v3820 = vand.u32 %v3703, 4294901760
      %v3821 = vsub.f32 %v3703, %v3820
      %v3822 = vand.u32 %v3821, 4294901760
      %3823 = vmatpush.msra.mxu0 %v3822
      %v3824 = vand.u32 %v3700, 4294901760
      %3825 = vmatmul.f32.gmra.mxu0 %v3824
      %v3826 = vpop.f32.mrf.mxu0
      %v3827 = vadd.f32 %v3803, %v3826
      %3828 = vdwg.mxu0
      %3829 = vmatpush.msra.mxu0 0.0
      %3830 = vmatpush.msra.mxu0 0.0
      %3831 = vmatpush.msra.mxu0 0.0
      %3832 = vmatpush.msra.mxu0 0.0
      %3833 = vmatpush.msra.mxu0 0.0
      %3834 = vmatpush.msra.mxu0 0.0
      %3835 = vmatpush.msra.mxu0 0.0
      %3836 = vmatpush.msra.mxu0 0.0
      %3837 = vmatpush.msra.mxu0 0.0
      %3838 = vmatpush.msra.mxu0 0.0
      %3839 = vmatpush.msra.mxu0 0.0
      %3840 = vmatpush.msra.mxu0 0.0
      %3841 = vmatpush.msra.mxu0 0.0
      %3842 = vmatpush.msra.mxu0 0.0
      %3843 = vmatpush.msra.mxu0 0.0
      %v3844 = vand.u32 %v3703, 4294901760
      %3845 = vmatpush.msra.mxu0 %v3844
      %v3846 = vand.u32 %v3700, 4294901760
      %3847 = vmatmul.f32.gmra.mxu0 %v3846
      %v3848 = vpop.f32.mrf.mxu0
      %v3849 = vadd.f32 %v3827, %v3848
      %3850 = vdwg.mxu0
      %v3851 = vadd.f32 %v3505, %v3849
      %v3852 = vld [vmem:[%s14] sm:$0x1]
      %v3854 = vperm.slane %v3852, 0
      %v3856 = vadd.f32 %v3851, %v3854
      %v3857 = vmax.f32 %v3856, 0.0
      %v3858 = vld [vmem:[%s16] sm:$0xff]
      %v3859 = vld [vmem:[%s16 + $0x8] sm:$0xff]
      %v3861 = vsel %vm1032, %v3857, 0
      %3863 = vmatpush.msra.mxu0 0.0
      %3864 = vmatpush.msra.mxu0 0.0
      %3865 = vmatpush.msra.mxu0 0.0
      %3866 = vmatpush.msra.mxu0 0.0
      %3867 = vmatpush.msra.mxu0 0.0
      %3868 = vmatpush.msra.mxu0 0.0
      %3869 = vmatpush.msra.mxu0 0.0
      %3870 = vmatpush.msra.mxu0 0.0
      %3871 = vmatpush.msra.mxu0 0.0
      %3872 = vmatpush.msra.mxu0 0.0
      %3873 = vmatpush.msra.mxu0 0.0
      %3874 = vmatpush.msra.mxu0 0.0
      %3875 = vmatpush.msra.mxu0 0.0
      %3876 = vmatpush.msra.mxu0 0.0
      %v3877 = vand.u32 %v3859, 4294901760
      %3878 = vmatpush.msra.mxu0 %v3877
      %v3879 = vand.u32 %v3858, 4294901760
      %3880 = vmatpush.msra.mxu0 %v3879
      %v3881 = vand.u32 %v3861, 4294901760
      %v3882 = vsub.f32 %v3861, %v3881
      %v3883 = vand.u32 %v3882, 4294901760
      %v3884 = vsub.f32 %v3882, %v3883
      %v3885 = vand.u32 %v3884, 4294901760
      %3886 = vmatmul.f32.gmra.mxu0 %v3885
      %v3887 = vpop.f32.mrf.mxu0
      %v3888 = vadd.f32 0.0, %v3887
      %3889 = vdwg.mxu0
      %3890 = vmatpush.msra.mxu0 0.0
      %3891 = vmatpush.msra.mxu0 0.0
      %3892 = vmatpush.msra.mxu0 0.0
      %3893 = vmatpush.msra.mxu0 0.0
      %3894 = vmatpush.msra.mxu0 0.0
      %3895 = vmatpush.msra.mxu0 0.0
      %3896 = vmatpush.msra.mxu0 0.0
      %3897 = vmatpush.msra.mxu0 0.0
      %3898 = vmatpush.msra.mxu0 0.0
      %3899 = vmatpush.msra.mxu0 0.0
      %3900 = vmatpush.msra.mxu0 0.0
      %3901 = vmatpush.msra.mxu0 0.0
      %3902 = vmatpush.msra.mxu0 0.0
      %3903 = vmatpush.msra.mxu0 0.0
      %v3904 = vand.u32 %v3859, 4294901760
      %v3905 = vsub.f32 %v3859, %v3904
      %v3906 = vand.u32 %v3905, 4294901760
      %v3907 = vsub.f32 %v3905, %v3906
      %v3908 = vand.u32 %v3907, 4294901760
      %3909 = vmatpush.msra.mxu0 %v3908
      %v3910 = vand.u32 %v3858, 4294901760
      %v3911 = vsub.f32 %v3858, %v3910
      %v3912 = vand.u32 %v3911, 4294901760
      %v3913 = vsub.f32 %v3911, %v3912
      %v3914 = vand.u32 %v3913, 4294901760
      %3915 = vmatpush.msra.mxu0 %v3914
      %v3916 = vand.u32 %v3861, 4294901760
      %3917 = vmatmul.f32.gmra.mxu0 %v3916
      %v3918 = vpop.f32.mrf.mxu0
      %v3919 = vadd.f32 %v3888, %v3918
      %3920 = vdwg.mxu0
      %3921 = vmatpush.msra.mxu0 0.0
      %3922 = vmatpush.msra.mxu0 0.0
      %3923 = vmatpush.msra.mxu0 0.0
      %3924 = vmatpush.msra.mxu0 0.0
      %3925 = vmatpush.msra.mxu0 0.0
      %3926 = vmatpush.msra.mxu0 0.0
      %3927 = vmatpush.msra.mxu0 0.0
      %3928 = vmatpush.msra.mxu0 0.0
      %3929 = vmatpush.msra.mxu0 0.0
      %3930 = vmatpush.msra.mxu0 0.0
      %3931 = vmatpush.msra.mxu0 0.0
      %3932 = vmatpush.msra.mxu0 0.0
      %3933 = vmatpush.msra.mxu0 0.0
      %3934 = vmatpush.msra.mxu0 0.0
      %v3935 = vand.u32 %v3859, 4294901760
      %v3936 = vsub.f32 %v3859, %v3935
      %3937 = vmatpush.msra.mxu0 %v3936
      %v3938 = vand.u32 %v3858, 4294901760
      %v3939 = vsub.f32 %v3858, %v3938
      %3940 = vmatpush.msra.mxu0 %v3939
      %v3941 = vand.u32 %v3861, 4294901760
      %v3942 = vsub.f32 %v3861, %v3941
      %3943 = vmatmul.f32.gmra.mxu0 %v3942
      %v3944 = vpop.f32.mrf.mxu0
      %v3945 = vadd.f32 %v3919, %v3944
      %3946 = vdwg.mxu0
      %3947 = vmatpush.msra.mxu0 0.0
      %3948 = vmatpush.msra.mxu0 0.0
      %3949 = vmatpush.msra.mxu0 0.0
      %3950 = vmatpush.msra.mxu0 0.0
      %3951 = vmatpush.msra.mxu0 0.0
      %3952 = vmatpush.msra.mxu0 0.0
      %3953 = vmatpush.msra.mxu0 0.0
      %3954 = vmatpush.msra.mxu0 0.0
      %3955 = vmatpush.msra.mxu0 0.0
      %3956 = vmatpush.msra.mxu0 0.0
      %3957 = vmatpush.msra.mxu0 0.0
      %3958 = vmatpush.msra.mxu0 0.0
      %3959 = vmatpush.msra.mxu0 0.0
      %3960 = vmatpush.msra.mxu0 0.0
      %v3961 = vand.u32 %v3859, 4294901760
      %3962 = vmatpush.msra.mxu0 %v3961
      %v3963 = vand.u32 %v3858, 4294901760
      %3964 = vmatpush.msra.mxu0 %v3963
      %v3965 = vand.u32 %v3861, 4294901760
      %v3966 = vsub.f32 %v3861, %v3965
      %v3967 = vand.u32 %v3966, 4294901760
      %3968 = vmatmul.f32.gmra.mxu0 %v3967
      %v3969 = vpop.f32.mrf.mxu0
      %v3970 = vadd.f32 %v3945, %v3969
      %3971 = vdwg.mxu0
      %3972 = vmatpush.msra.mxu0 0.0
      %3973 = vmatpush.msra.mxu0 0.0
      %3974 = vmatpush.msra.mxu0 0.0
      %3975 = vmatpush.msra.mxu0 0.0
      %3976 = vmatpush.msra.mxu0 0.0
      %3977 = vmatpush.msra.mxu0 0.0
      %3978 = vmatpush.msra.mxu0 0.0
      %3979 = vmatpush.msra.mxu0 0.0
      %3980 = vmatpush.msra.mxu0 0.0
      %3981 = vmatpush.msra.mxu0 0.0
      %3982 = vmatpush.msra.mxu0 0.0
      %3983 = vmatpush.msra.mxu0 0.0
      %3984 = vmatpush.msra.mxu0 0.0
      %3985 = vmatpush.msra.mxu0 0.0
      %v3986 = vand.u32 %v3859, 4294901760
      %v3987 = vsub.f32 %v3859, %v3986
      %v3988 = vand.u32 %v3987, 4294901760
      %3989 = vmatpush.msra.mxu0 %v3988
      %v3990 = vand.u32 %v3858, 4294901760
      %v3991 = vsub.f32 %v3858, %v3990
      %v3992 = vand.u32 %v3991, 4294901760
      %3993 = vmatpush.msra.mxu0 %v3992
      %v3994 = vand.u32 %v3861, 4294901760
      %3995 = vmatmul.f32.gmra.mxu0 %v3994
      %v3996 = vpop.f32.mrf.mxu0
      %v3997 = vadd.f32 %v3970, %v3996
      %3998 = vdwg.mxu0
      %3999 = vmatpush.msra.mxu0 0.0
      %4000 = vmatpush.msra.mxu0 0.0
      %4001 = vmatpush.msra.mxu0 0.0
      %4002 = vmatpush.msra.mxu0 0.0
      %4003 = vmatpush.msra.mxu0 0.0
      %4004 = vmatpush.msra.mxu0 0.0
      %4005 = vmatpush.msra.mxu0 0.0
      %4006 = vmatpush.msra.mxu0 0.0
      %4007 = vmatpush.msra.mxu0 0.0
      %4008 = vmatpush.msra.mxu0 0.0
      %4009 = vmatpush.msra.mxu0 0.0
      %4010 = vmatpush.msra.mxu0 0.0
      %4011 = vmatpush.msra.mxu0 0.0
      %4012 = vmatpush.msra.mxu0 0.0
      %v4013 = vand.u32 %v3859, 4294901760
      %4014 = vmatpush.msra.mxu0 %v4013
      %v4015 = vand.u32 %v3858, 4294901760
      %4016 = vmatpush.msra.mxu0 %v4015
      %v4017 = vand.u32 %v3861, 4294901760
      %4018 = vmatmul.f32.gmra.mxu0 %v4017
      %v4019 = vpop.f32.mrf.mxu0
      %v4020 = vadd.f32 %v3997, %v4019
      %4021 = vdwg.mxu0
      %v4022 = vld [vmem:[%s15] sm:$0xff]
      %v4023 = vld [vmem:[%s15 + $0x8] sm:$0xff]
      %s4024 = scalar_lea.vmem %s16, 16
      %v4025 = vld [vmem:[%s4024] sm:$0xff]
      %v4026 = vld [vmem:[%s4024 + $0x8] sm:$0xff]
      %4027 = vmatpush.msra.mxu0 0.0
      %4028 = vmatpush.msra.mxu0 0.0
      %4029 = vmatpush.msra.mxu0 0.0
      %4030 = vmatpush.msra.mxu0 0.0
      %4031 = vmatpush.msra.mxu0 0.0
      %4032 = vmatpush.msra.mxu0 0.0
      %4033 = vmatpush.msra.mxu0 0.0
      %4034 = vmatpush.msra.mxu0 0.0
      %4035 = vmatpush.msra.mxu0 0.0
      %4036 = vmatpush.msra.mxu0 0.0
      %4037 = vmatpush.msra.mxu0 0.0
      %4038 = vmatpush.msra.mxu0 0.0
      %4039 = vmatpush.msra.mxu0 0.0
      %4040 = vmatpush.msra.mxu0 0.0
      %v4041 = vand.u32 %v4026, 4294901760
      %4042 = vmatpush.msra.mxu0 %v4041
      %v4043 = vand.u32 %v4025, 4294901760
      %4044 = vmatpush.msra.mxu0 %v4043
      %v4045 = vand.u32 %v3861, 4294901760
      %v4046 = vsub.f32 %v3861, %v4045
      %v4047 = vand.u32 %v4046, 4294901760
      %v4048 = vsub.f32 %v4046, %v4047
      %v4049 = vand.u32 %v4048, 4294901760
      %4050 = vmatmul.f32.gmra.mxu0 %v4049
      %v4051 = vpop.f32.mrf.mxu0
      %v4052 = vadd.f32 0.0, %v4051
      %4053 = vdwg.mxu0
      %4054 = vmatpush.msra.mxu0 0.0
      %4055 = vmatpush.msra.mxu0 0.0
      %4056 = vmatpush.msra.mxu0 0.0
      %4057 = vmatpush.msra.mxu0 0.0
      %4058 = vmatpush.msra.mxu0 0.0
      %4059 = vmatpush.msra.mxu0 0.0
      %4060 = vmatpush.msra.mxu0 0.0
      %4061 = vmatpush.msra.mxu0 0.0
      %4062 = vmatpush.msra.mxu0 0.0
      %4063 = vmatpush.msra.mxu0 0.0
      %4064 = vmatpush.msra.mxu0 0.0
      %4065 = vmatpush.msra.mxu0 0.0
      %4066 = vmatpush.msra.mxu0 0.0
      %4067 = vmatpush.msra.mxu0 0.0
      %v4068 = vand.u32 %v4026, 4294901760
      %v4069 = vsub.f32 %v4026, %v4068
      %v4070 = vand.u32 %v4069, 4294901760
      %v4071 = vsub.f32 %v4069, %v4070
      %v4072 = vand.u32 %v4071, 4294901760
      %4073 = vmatpush.msra.mxu0 %v4072
      %v4074 = vand.u32 %v4025, 4294901760
      %v4075 = vsub.f32 %v4025, %v4074
      %v4076 = vand.u32 %v4075, 4294901760
      %v4077 = vsub.f32 %v4075, %v4076
      %v4078 = vand.u32 %v4077, 4294901760
      %4079 = vmatpush.msra.mxu0 %v4078
      %v4080 = vand.u32 %v3861, 4294901760
      %4081 = vmatmul.f32.gmra.mxu0 %v4080
      %v4082 = vpop.f32.mrf.mxu0
      %v4083 = vadd.f32 %v4052, %v4082
      %4084 = vdwg.mxu0
      %4085 = vmatpush.msra.mxu0 0.0
      %4086 = vmatpush.msra.mxu0 0.0
      %4087 = vmatpush.msra.mxu0 0.0
      %4088 = vmatpush.msra.mxu0 0.0
      %4089 = vmatpush.msra.mxu0 0.0
      %4090 = vmatpush.msra.mxu0 0.0
      %4091 = vmatpush.msra.mxu0 0.0
      %4092 = vmatpush.msra.mxu0 0.0
      %4093 = vmatpush.msra.mxu0 0.0
      %4094 = vmatpush.msra.mxu0 0.0
      %4095 = vmatpush.msra.mxu0 0.0
      %4096 = vmatpush.msra.mxu0 0.0
      %4097 = vmatpush.msra.mxu0 0.0
      %4098 = vmatpush.msra.mxu0 0.0
      %v4099 = vand.u32 %v4026, 4294901760
      %v4100 = vsub.f32 %v4026, %v4099
      %4101 = vmatpush.msra.mxu0 %v4100
      %v4102 = vand.u32 %v4025, 4294901760
      %v4103 = vsub.f32 %v4025, %v4102
      %4104 = vmatpush.msra.mxu0 %v4103
      %v4105 = vand.u32 %v3861, 4294901760
      %v4106 = vsub.f32 %v3861, %v4105
      %4107 = vmatmul.f32.gmra.mxu0 %v4106
      %v4108 = vpop.f32.mrf.mxu0
      %v4109 = vadd.f32 %v4083, %v4108
      %4110 = vdwg.mxu0
      %4111 = vmatpush.msra.mxu0 0.0
      %4112 = vmatpush.msra.mxu0 0.0
      %4113 = vmatpush.msra.mxu0 0.0
      %4114 = vmatpush.msra.mxu0 0.0
      %4115 = vmatpush.msra.mxu0 0.0
      %4116 = vmatpush.msra.mxu0 0.0
      %4117 = vmatpush.msra.mxu0 0.0
      %4118 = vmatpush.msra.mxu0 0.0
      %4119 = vmatpush.msra.mxu0 0.0
      %4120 = vmatpush.msra.mxu0 0.0
      %4121 = vmatpush.msra.mxu0 0.0
      %4122 = vmatpush.msra.mxu0 0.0
      %4123 = vmatpush.msra.mxu0 0.0
      %4124 = vmatpush.msra.mxu0 0.0
      %v4125 = vand.u32 %v4026, 4294901760
      %4126 = vmatpush.msra.mxu0 %v4125
      %v4127 = vand.u32 %v4025, 4294901760
      %4128 = vmatpush.msra.mxu0 %v4127
      %v4129 = vand.u32 %v3861, 4294901760
      %v4130 = vsub.f32 %v3861, %v4129
      %v4131 = vand.u32 %v4130, 4294901760
      %4132 = vmatmul.f32.gmra.mxu0 %v4131
      %v4133 = vpop.f32.mrf.mxu0
      %v4134 = vadd.f32 %v4109, %v4133
      %4135 = vdwg.mxu0
      %4136 = vmatpush.msra.mxu0 0.0
      %4137 = vmatpush.msra.mxu0 0.0
      %4138 = vmatpush.msra.mxu0 0.0
      %4139 = vmatpush.msra.mxu0 0.0
      %4140 = vmatpush.msra.mxu0 0.0
      %4141 = vmatpush.msra.mxu0 0.0
      %4142 = vmatpush.msra.mxu0 0.0
      %4143 = vmatpush.msra.mxu0 0.0
      %4144 = vmatpush.msra.mxu0 0.0
      %4145 = vmatpush.msra.mxu0 0.0
      %4146 = vmatpush.msra.mxu0 0.0
      %4147 = vmatpush.msra.mxu0 0.0
      %4148 = vmatpush.msra.mxu0 0.0
      %4149 = vmatpush.msra.mxu0 0.0
      %v4150 = vand.u32 %v4026, 4294901760
      %v4151 = vsub.f32 %v4026, %v4150
      %v4152 = vand.u32 %v4151, 4294901760
      %4153 = vmatpush.msra.mxu0 %v4152
      %v4154 = vand.u32 %v4025, 4294901760
      %v4155 = vsub.f32 %v4025, %v4154
      %v4156 = vand.u32 %v4155, 4294901760
      %4157 = vmatpush.msra.mxu0 %v4156
      %v4158 = vand.u32 %v3861, 4294901760
      %4159 = vmatmul.f32.gmra.mxu0 %v4158
      %v4160 = vpop.f32.mrf.mxu0
      %v4161 = vadd.f32 %v4134, %v4160
      %4162 = vdwg.mxu0
      %4163 = vmatpush.msra.mxu0 0.0
      %4164 = vmatpush.msra.mxu0 0.0
      %4165 = vmatpush.msra.mxu0 0.0
      %4166 = vmatpush.msra.mxu0 0.0
      %4167 = vmatpush.msra.mxu0 0.0
      %4168 = vmatpush.msra.mxu0 0.0
      %4169 = vmatpush.msra.mxu0 0.0
      %4170 = vmatpush.msra.mxu0 0.0
      %4171 = vmatpush.msra.mxu0 0.0
      %4172 = vmatpush.msra.mxu0 0.0
      %4173 = vmatpush.msra.mxu0 0.0
      %4174 = vmatpush.msra.mxu0 0.0
      %4175 = vmatpush.msra.mxu0 0.0
      %4176 = vmatpush.msra.mxu0 0.0
      %v4177 = vand.u32 %v4026, 4294901760
      %4178 = vmatpush.msra.mxu0 %v4177
      %v4179 = vand.u32 %v4025, 4294901760
      %4180 = vmatpush.msra.mxu0 %v4179
      %v4181 = vand.u32 %v3861, 4294901760
      %4182 = vmatmul.f32.gmra.mxu0 %v4181
      %v4183 = vpop.f32.mrf.mxu0
      %v4184 = vadd.f32 %v4161, %v4183
      %4185 = vdwg.mxu0
      %s4186 = scalar_lea.vmem %s15, 16
      %v4187 = vld [vmem:[%s4186] sm:$0xff]
      %v4188 = vld [vmem:[%s4186 + $0x8] sm:$0xff]
      %v4190 = vsel %vm2012, %v4187, 0
      %v4193 = vsel %vm2012, %v4188, 0
      %v4196 = vsel %vm2016, %v4184, 0
      %4198 = vmatpush.msra.mxu0 0.0
      %4199 = vmatpush.msra.mxu0 0.0
      %4200 = vmatpush.msra.mxu0 0.0
      %4201 = vmatpush.msra.mxu0 0.0
      %4202 = vmatpush.msra.mxu0 0.0
      %4203 = vmatpush.msra.mxu0 0.0
      %4204 = vmatpush.msra.mxu0 0.0
      %4205 = vmatpush.msra.mxu0 0.0
      %4206 = vmatpush.msra.mxu0 0.0
      %4207 = vmatpush.msra.mxu0 0.0
      %4208 = vmatpush.msra.mxu0 0.0
      %4209 = vmatpush.msra.mxu0 0.0
      %4210 = vmatpush.msra.mxu0 0.0
      %4211 = vmatpush.msra.mxu0 0.0
      %4212 = vmatpush.msra.mxu0 0.0
      %v4213 = vand.u32 %v4196, 4294901760
      %4214 = vmatpush.msra.mxu0 %v4213
      %v4215 = vand.u32 %v4190, 4294901760
      %v4216 = vsub.f32 %v4190, %v4215
      %v4217 = vand.u32 %v4216, 4294901760
      %v4218 = vsub.f32 %v4216, %v4217
      %v4219 = vand.u32 %v4218, 4294901760
      %4220 = vmatmul.f32.gmra.mxu0 %v4219
      %v4221 = vpop.f32.mrf.mxu0
      %v4222 = vadd.f32 0.0, %v4221
      %v4223 = vand.u32 %v4193, 4294901760
      %v4224 = vsub.f32 %v4193, %v4223
      %v4225 = vand.u32 %v4224, 4294901760
      %v4226 = vsub.f32 %v4224, %v4225
      %v4227 = vand.u32 %v4226, 4294901760
      %4228 = vmatmul.f32.gmra.mxu0 %v4227
      %v4229 = vpop.f32.mrf.mxu0
      %v4230 = vadd.f32 0.0, %v4229
      %4231 = vdwg.mxu0
      %4232 = vmatpush.msra.mxu0 0.0
      %4233 = vmatpush.msra.mxu0 0.0
      %4234 = vmatpush.msra.mxu0 0.0
      %4235 = vmatpush.msra.mxu0 0.0
      %4236 = vmatpush.msra.mxu0 0.0
      %4237 = vmatpush.msra.mxu0 0.0
      %4238 = vmatpush.msra.mxu0 0.0
      %4239 = vmatpush.msra.mxu0 0.0
      %4240 = vmatpush.msra.mxu0 0.0
      %4241 = vmatpush.msra.mxu0 0.0
      %4242 = vmatpush.msra.mxu0 0.0
      %4243 = vmatpush.msra.mxu0 0.0
      %4244 = vmatpush.msra.mxu0 0.0
      %4245 = vmatpush.msra.mxu0 0.0
      %4246 = vmatpush.msra.mxu0 0.0
      %v4247 = vand.u32 %v4196, 4294901760
      %v4248 = vsub.f32 %v4196, %v4247
      %v4249 = vand.u32 %v4248, 4294901760
      %v4250 = vsub.f32 %v4248, %v4249
      %v4251 = vand.u32 %v4250, 4294901760
      %4252 = vmatpush.msra.mxu0 %v4251
      %v4253 = vand.u32 %v4190, 4294901760
      %4254 = vmatmul.f32.gmra.mxu0 %v4253
      %v4255 = vpop.f32.mrf.mxu0
      %v4256 = vadd.f32 %v4222, %v4255
      %v4257 = vand.u32 %v4193, 4294901760
      %4258 = vmatmul.f32.gmra.mxu0 %v4257
      %v4259 = vpop.f32.mrf.mxu0
      %v4260 = vadd.f32 %v4230, %v4259
      %4261 = vdwg.mxu0
      %4262 = vmatpush.msra.mxu0 0.0
      %4263 = vmatpush.msra.mxu0 0.0
      %4264 = vmatpush.msra.mxu0 0.0
      %4265 = vmatpush.msra.mxu0 0.0
      %4266 = vmatpush.msra.mxu0 0.0
      %4267 = vmatpush.msra.mxu0 0.0
      %4268 = vmatpush.msra.mxu0 0.0
      %4269 = vmatpush.msra.mxu0 0.0
      %4270 = vmatpush.msra.mxu0 0.0
      %4271 = vmatpush.msra.mxu0 0.0
      %4272 = vmatpush.msra.mxu0 0.0
      %4273 = vmatpush.msra.mxu0 0.0
      %4274 = vmatpush.msra.mxu0 0.0
      %4275 = vmatpush.msra.mxu0 0.0
      %4276 = vmatpush.msra.mxu0 0.0
      %v4277 = vand.u32 %v4196, 4294901760
      %v4278 = vsub.f32 %v4196, %v4277
      %4279 = vmatpush.msra.mxu0 %v4278
      %v4280 = vand.u32 %v4190, 4294901760
      %v4281 = vsub.f32 %v4190, %v4280
      %4282 = vmatmul.f32.gmra.mxu0 %v4281
      %v4283 = vpop.f32.mrf.mxu0
      %v4284 = vadd.f32 %v4256, %v4283
      %v4285 = vand.u32 %v4193, 4294901760
      %v4286 = vsub.f32 %v4193, %v4285
      %4287 = vmatmul.f32.gmra.mxu0 %v4286
      %v4288 = vpop.f32.mrf.mxu0
      %v4289 = vadd.f32 %v4260, %v4288
      %4290 = vdwg.mxu0
      %4291 = vmatpush.msra.mxu0 0.0
      %4292 = vmatpush.msra.mxu0 0.0
      %4293 = vmatpush.msra.mxu0 0.0
      %4294 = vmatpush.msra.mxu0 0.0
      %4295 = vmatpush.msra.mxu0 0.0
      %4296 = vmatpush.msra.mxu0 0.0
      %4297 = vmatpush.msra.mxu0 0.0
      %4298 = vmatpush.msra.mxu0 0.0
      %4299 = vmatpush.msra.mxu0 0.0
      %4300 = vmatpush.msra.mxu0 0.0
      %4301 = vmatpush.msra.mxu0 0.0
      %4302 = vmatpush.msra.mxu0 0.0
      %4303 = vmatpush.msra.mxu0 0.0
      %4304 = vmatpush.msra.mxu0 0.0
      %4305 = vmatpush.msra.mxu0 0.0
      %v4306 = vand.u32 %v4196, 4294901760
      %4307 = vmatpush.msra.mxu0 %v4306
      %v4308 = vand.u32 %v4190, 4294901760
      %v4309 = vsub.f32 %v4190, %v4308
      %v4310 = vand.u32 %v4309, 4294901760
      %4311 = vmatmul.f32.gmra.mxu0 %v4310
      %v4312 = vpop.f32.mrf.mxu0
      %v4313 = vadd.f32 %v4284, %v4312
      %v4314 = vand.u32 %v4193, 4294901760
      %v4315 = vsub.f32 %v4193, %v4314
      %v4316 = vand.u32 %v4315, 4294901760
      %4317 = vmatmul.f32.gmra.mxu0 %v4316
      %v4318 = vpop.f32.mrf.mxu0
      %v4319 = vadd.f32 %v4289, %v4318
      %4320 = vdwg.mxu0
      %4321 = vmatpush.msra.mxu0 0.0
      %4322 = vmatpush.msra.mxu0 0.0
      %4323 = vmatpush.msra.mxu0 0.0
      %4324 = vmatpush.msra.mxu0 0.0
      %4325 = vmatpush.msra.mxu0 0.0
      %4326 = vmatpush.msra.mxu0 0.0
      %4327 = vmatpush.msra.mxu0 0.0
      %4328 = vmatpush.msra.mxu0 0.0
      %4329 = vmatpush.msra.mxu0 0.0
      %4330 = vmatpush.msra.mxu0 0.0
      %4331 = vmatpush.msra.mxu0 0.0
      %4332 = vmatpush.msra.mxu0 0.0
      %4333 = vmatpush.msra.mxu0 0.0
      %4334 = vmatpush.msra.mxu0 0.0
      %4335 = vmatpush.msra.mxu0 0.0
      %v4336 = vand.u32 %v4196, 4294901760
      %v4337 = vsub.f32 %v4196, %v4336
      %v4338 = vand.u32 %v4337, 4294901760
      %4339 = vmatpush.msra.mxu0 %v4338
      %v4340 = vand.u32 %v4190, 4294901760
      %4341 = vmatmul.f32.gmra.mxu0 %v4340
      %v4342 = vpop.f32.mrf.mxu0
      %v4343 = vadd.f32 %v4313, %v4342
      %v4344 = vand.u32 %v4193, 4294901760
      %4345 = vmatmul.f32.gmra.mxu0 %v4344
      %v4346 = vpop.f32.mrf.mxu0
      %v4347 = vadd.f32 %v4319, %v4346
      %4348 = vdwg.mxu0
      %4349 = vmatpush.msra.mxu0 0.0
      %4350 = vmatpush.msra.mxu0 0.0
      %4351 = vmatpush.msra.mxu0 0.0
      %4352 = vmatpush.msra.mxu0 0.0
      %4353 = vmatpush.msra.mxu0 0.0
      %4354 = vmatpush.msra.mxu0 0.0
      %4355 = vmatpush.msra.mxu0 0.0
      %4356 = vmatpush.msra.mxu0 0.0
      %4357 = vmatpush.msra.mxu0 0.0
      %4358 = vmatpush.msra.mxu0 0.0
      %4359 = vmatpush.msra.mxu0 0.0
      %4360 = vmatpush.msra.mxu0 0.0
      %4361 = vmatpush.msra.mxu0 0.0
      %4362 = vmatpush.msra.mxu0 0.0
      %4363 = vmatpush.msra.mxu0 0.0
      %v4364 = vand.u32 %v4196, 4294901760
      %4365 = vmatpush.msra.mxu0 %v4364
      %v4366 = vand.u32 %v4190, 4294901760
      %4367 = vmatmul.f32.gmra.mxu0 %v4366
      %v4368 = vpop.f32.mrf.mxu0
      %v4369 = vadd.f32 %v4343, %v4368
      %v4370 = vand.u32 %v4193, 4294901760
      %4371 = vmatmul.f32.gmra.mxu0 %v4370
      %v4372 = vpop.f32.mrf.mxu0
      %v4373 = vadd.f32 %v4347, %v4372
      %4374 = vdwg.mxu0
      %v4376 = vsel %vm2012, %v4022, 0
      %v4379 = vsel %vm2012, %v4023, 0
      %v4382 = vsel %vm2016, %v4020, 0
      %4384 = vmatpush.msra.mxu0 0.0
      %4385 = vmatpush.msra.mxu0 0.0
      %4386 = vmatpush.msra.mxu0 0.0
      %4387 = vmatpush.msra.mxu0 0.0
      %4388 = vmatpush.msra.mxu0 0.0
      %4389 = vmatpush.msra.mxu0 0.0
      %4390 = vmatpush.msra.mxu0 0.0
      %4391 = vmatpush.msra.mxu0 0.0
      %4392 = vmatpush.msra.mxu0 0.0
      %4393 = vmatpush.msra.mxu0 0.0
      %4394 = vmatpush.msra.mxu0 0.0
      %4395 = vmatpush.msra.mxu0 0.0
      %4396 = vmatpush.msra.mxu0 0.0
      %4397 = vmatpush.msra.mxu0 0.0
      %4398 = vmatpush.msra.mxu0 0.0
      %v4399 = vand.u32 %v4382, 4294901760
      %4400 = vmatpush.msra.mxu0 %v4399
      %v4401 = vand.u32 %v4376, 4294901760
      %v4402 = vsub.f32 %v4376, %v4401
      %v4403 = vand.u32 %v4402, 4294901760
      %v4404 = vsub.f32 %v4402, %v4403
      %v4405 = vand.u32 %v4404, 4294901760
      %4406 = vmatmul.f32.gmra.mxu0 %v4405
      %v4407 = vpop.f32.mrf.mxu0
      %v4408 = vadd.f32 %v4369, %v4407
      %v4409 = vand.u32 %v4379, 4294901760
      %v4410 = vsub.f32 %v4379, %v4409
      %v4411 = vand.u32 %v4410, 4294901760
      %v4412 = vsub.f32 %v4410, %v4411
      %v4413 = vand.u32 %v4412, 4294901760
      %4414 = vmatmul.f32.gmra.mxu0 %v4413
      %v4415 = vpop.f32.mrf.mxu0
      %v4416 = vadd.f32 %v4373, %v4415
      %4417 = vdwg.mxu0
      %4418 = vmatpush.msra.mxu0 0.0
      %4419 = vmatpush.msra.mxu0 0.0
      %4420 = vmatpush.msra.mxu0 0.0
      %4421 = vmatpush.msra.mxu0 0.0
      %4422 = vmatpush.msra.mxu0 0.0
      %4423 = vmatpush.msra.mxu0 0.0
      %4424 = vmatpush.msra.mxu0 0.0
      %4425 = vmatpush.msra.mxu0 0.0
      %4426 = vmatpush.msra.mxu0 0.0
      %4427 = vmatpush.msra.mxu0 0.0
      %4428 = vmatpush.msra.mxu0 0.0
      %4429 = vmatpush.msra.mxu0 0.0
      %4430 = vmatpush.msra.mxu0 0.0
      %4431 = vmatpush.msra.mxu0 0.0
      %4432 = vmatpush.msra.mxu0 0.0
      %v4433 = vand.u32 %v4382, 4294901760
      %v4434 = vsub.f32 %v4382, %v4433
      %v4435 = vand.u32 %v4434, 4294901760
      %v4436 = vsub.f32 %v4434, %v4435
      %v4437 = vand.u32 %v4436, 4294901760
      %4438 = vmatpush.msra.mxu0 %v4437
      %v4439 = vand.u32 %v4376, 4294901760
      %4440 = vmatmul.f32.gmra.mxu0 %v4439
      %v4441 = vpop.f32.mrf.mxu0
      %v4442 = vadd.f32 %v4408, %v4441
      %v4443 = vand.u32 %v4379, 4294901760
      %4444 = vmatmul.f32.gmra.mxu0 %v4443
      %v4445 = vpop.f32.mrf.mxu0
      %v4446 = vadd.f32 %v4416, %v4445
      %4447 = vdwg.mxu0
      %4448 = vmatpush.msra.mxu0 0.0
      %4449 = vmatpush.msra.mxu0 0.0
      %4450 = vmatpush.msra.mxu0 0.0
      %4451 = vmatpush.msra.mxu0 0.0
      %4452 = vmatpush.msra.mxu0 0.0
      %4453 = vmatpush.msra.mxu0 0.0
      %4454 = vmatpush.msra.mxu0 0.0
      %4455 = vmatpush.msra.mxu0 0.0
      %4456 = vmatpush.msra.mxu0 0.0
      %4457 = vmatpush.msra.mxu0 0.0
      %4458 = vmatpush.msra.mxu0 0.0
      %4459 = vmatpush.msra.mxu0 0.0
      %4460 = vmatpush.msra.mxu0 0.0
      %4461 = vmatpush.msra.mxu0 0.0
      %4462 = vmatpush.msra.mxu0 0.0
      %v4463 = vand.u32 %v4382, 4294901760
      %v4464 = vsub.f32 %v4382, %v4463
      %4465 = vmatpush.msra.mxu0 %v4464
      %v4466 = vand.u32 %v4376, 4294901760
      %v4467 = vsub.f32 %v4376, %v4466
      %4468 = vmatmul.f32.gmra.mxu0 %v4467
      %v4469 = vpop.f32.mrf.mxu0
      %v4470 = vadd.f32 %v4442, %v4469
      %v4471 = vand.u32 %v4379, 4294901760
      %v4472 = vsub.f32 %v4379, %v4471
      %4473 = vmatmul.f32.gmra.mxu0 %v4472
      %v4474 = vpop.f32.mrf.mxu0
      %v4475 = vadd.f32 %v4446, %v4474
      %4476 = vdwg.mxu0
      %4477 = vmatpush.msra.mxu0 0.0
      %4478 = vmatpush.msra.mxu0 0.0
      %4479 = vmatpush.msra.mxu0 0.0
      %4480 = vmatpush.msra.mxu0 0.0
      %4481 = vmatpush.msra.mxu0 0.0
      %4482 = vmatpush.msra.mxu0 0.0
      %4483 = vmatpush.msra.mxu0 0.0
      %4484 = vmatpush.msra.mxu0 0.0
      %4485 = vmatpush.msra.mxu0 0.0
      %4486 = vmatpush.msra.mxu0 0.0
      %4487 = vmatpush.msra.mxu0 0.0
      %4488 = vmatpush.msra.mxu0 0.0
      %4489 = vmatpush.msra.mxu0 0.0
      %4490 = vmatpush.msra.mxu0 0.0
      %4491 = vmatpush.msra.mxu0 0.0
      %v4492 = vand.u32 %v4382, 4294901760
      %4493 = vmatpush.msra.mxu0 %v4492
      %v4494 = vand.u32 %v4376, 4294901760
      %v4495 = vsub.f32 %v4376, %v4494
      %v4496 = vand.u32 %v4495, 4294901760
      %4497 = vmatmul.f32.gmra.mxu0 %v4496
      %v4498 = vpop.f32.mrf.mxu0
      %v4499 = vadd.f32 %v4470, %v4498
      %v4500 = vand.u32 %v4379, 4294901760
      %v4501 = vsub.f32 %v4379, %v4500
      %v4502 = vand.u32 %v4501, 4294901760
      %4503 = vmatmul.f32.gmra.mxu0 %v4502
      %v4504 = vpop.f32.mrf.mxu0
      %v4505 = vadd.f32 %v4475, %v4504
      %4506 = vdwg.mxu0
      %4507 = vmatpush.msra.mxu0 0.0
      %4508 = vmatpush.msra.mxu0 0.0
      %4509 = vmatpush.msra.mxu0 0.0
      %4510 = vmatpush.msra.mxu0 0.0
      %4511 = vmatpush.msra.mxu0 0.0
      %4512 = vmatpush.msra.mxu0 0.0
      %4513 = vmatpush.msra.mxu0 0.0
      %4514 = vmatpush.msra.mxu0 0.0
      %4515 = vmatpush.msra.mxu0 0.0
      %4516 = vmatpush.msra.mxu0 0.0
      %4517 = vmatpush.msra.mxu0 0.0
      %4518 = vmatpush.msra.mxu0 0.0
      %4519 = vmatpush.msra.mxu0 0.0
      %4520 = vmatpush.msra.mxu0 0.0
      %4521 = vmatpush.msra.mxu0 0.0
      %v4522 = vand.u32 %v4382, 4294901760
      %v4523 = vsub.f32 %v4382, %v4522
      %v4524 = vand.u32 %v4523, 4294901760
      %4525 = vmatpush.msra.mxu0 %v4524
      %v4526 = vand.u32 %v4376, 4294901760
      %4527 = vmatmul.f32.gmra.mxu0 %v4526
      %v4528 = vpop.f32.mrf.mxu0
      %v4529 = vadd.f32 %v4499, %v4528
      %v4530 = vand.u32 %v4379, 4294901760
      %4531 = vmatmul.f32.gmra.mxu0 %v4530
      %v4532 = vpop.f32.mrf.mxu0
      %v4533 = vadd.f32 %v4505, %v4532
      %4534 = vdwg.mxu0
      %4535 = vmatpush.msra.mxu0 0.0
      %4536 = vmatpush.msra.mxu0 0.0
      %4537 = vmatpush.msra.mxu0 0.0
      %4538 = vmatpush.msra.mxu0 0.0
      %4539 = vmatpush.msra.mxu0 0.0
      %4540 = vmatpush.msra.mxu0 0.0
      %4541 = vmatpush.msra.mxu0 0.0
      %4542 = vmatpush.msra.mxu0 0.0
      %4543 = vmatpush.msra.mxu0 0.0
      %4544 = vmatpush.msra.mxu0 0.0
      %4545 = vmatpush.msra.mxu0 0.0
      %4546 = vmatpush.msra.mxu0 0.0
      %4547 = vmatpush.msra.mxu0 0.0
      %4548 = vmatpush.msra.mxu0 0.0
      %4549 = vmatpush.msra.mxu0 0.0
      %v4550 = vand.u32 %v4382, 4294901760
      %4551 = vmatpush.msra.mxu0 %v4550
      %v4552 = vand.u32 %v4376, 4294901760
      %4553 = vmatmul.f32.gmra.mxu0 %v4552
      %v4554 = vpop.f32.mrf.mxu0
      %v4555 = vadd.f32 %v4529, %v4554
      %v4556 = vand.u32 %v4379, 4294901760
      %4557 = vmatmul.f32.gmra.mxu0 %v4556
      %v4558 = vpop.f32.mrf.mxu0
      %v4559 = vadd.f32 %v4533, %v4558
      %4560 = vdwg.mxu0
      %s4561 = scalar_lea.vmem %s16, 32
      %v4562 = vld [vmem:[%s4561] sm:$0xff]
      %v4563 = vld [vmem:[%s4561 + $0x8] sm:$0xff]
      %4564 = vmatpush.msra.mxu0 0.0
      %4565 = vmatpush.msra.mxu0 0.0
      %4566 = vmatpush.msra.mxu0 0.0
      %4567 = vmatpush.msra.mxu0 0.0
      %4568 = vmatpush.msra.mxu0 0.0
      %4569 = vmatpush.msra.mxu0 0.0
      %4570 = vmatpush.msra.mxu0 0.0
      %4571 = vmatpush.msra.mxu0 0.0
      %4572 = vmatpush.msra.mxu0 0.0
      %4573 = vmatpush.msra.mxu0 0.0
      %4574 = vmatpush.msra.mxu0 0.0
      %4575 = vmatpush.msra.mxu0 0.0
      %4576 = vmatpush.msra.mxu0 0.0
      %4577 = vmatpush.msra.mxu0 0.0
      %v4578 = vand.u32 %v4563, 4294901760
      %4579 = vmatpush.msra.mxu0 %v4578
      %v4580 = vand.u32 %v4562, 4294901760
      %4581 = vmatpush.msra.mxu0 %v4580
      %v4582 = vand.u32 %v3861, 4294901760
      %v4583 = vsub.f32 %v3861, %v4582
      %v4584 = vand.u32 %v4583, 4294901760
      %v4585 = vsub.f32 %v4583, %v4584
      %v4586 = vand.u32 %v4585, 4294901760
      %4587 = vmatmul.f32.gmra.mxu0 %v4586
      %v4588 = vpop.f32.mrf.mxu0
      %v4589 = vadd.f32 0.0, %v4588
      %4590 = vdwg.mxu0
      %4591 = vmatpush.msra.mxu0 0.0
      %4592 = vmatpush.msra.mxu0 0.0
      %4593 = vmatpush.msra.mxu0 0.0
      %4594 = vmatpush.msra.mxu0 0.0
      %4595 = vmatpush.msra.mxu0 0.0
      %4596 = vmatpush.msra.mxu0 0.0
      %4597 = vmatpush.msra.mxu0 0.0
      %4598 = vmatpush.msra.mxu0 0.0
      %4599 = vmatpush.msra.mxu0 0.0
      %4600 = vmatpush.msra.mxu0 0.0
      %4601 = vmatpush.msra.mxu0 0.0
      %4602 = vmatpush.msra.mxu0 0.0
      %4603 = vmatpush.msra.mxu0 0.0
      %4604 = vmatpush.msra.mxu0 0.0
      %v4605 = vand.u32 %v4563, 4294901760
      %v4606 = vsub.f32 %v4563, %v4605
      %v4607 = vand.u32 %v4606, 4294901760
      %v4608 = vsub.f32 %v4606, %v4607
      %v4609 = vand.u32 %v4608, 4294901760
      %4610 = vmatpush.msra.mxu0 %v4609
      %v4611 = vand.u32 %v4562, 4294901760
      %v4612 = vsub.f32 %v4562, %v4611
      %v4613 = vand.u32 %v4612, 4294901760
      %v4614 = vsub.f32 %v4612, %v4613
      %v4615 = vand.u32 %v4614, 4294901760
      %4616 = vmatpush.msra.mxu0 %v4615
      %v4617 = vand.u32 %v3861, 4294901760
      %4618 = vmatmul.f32.gmra.mxu0 %v4617
      %v4619 = vpop.f32.mrf.mxu0
      %v4620 = vadd.f32 %v4589, %v4619
      %4621 = vdwg.mxu0
      %4622 = vmatpush.msra.mxu0 0.0
      %4623 = vmatpush.msra.mxu0 0.0
      %4624 = vmatpush.msra.mxu0 0.0
      %4625 = vmatpush.msra.mxu0 0.0
      %4626 = vmatpush.msra.mxu0 0.0
      %4627 = vmatpush.msra.mxu0 0.0
      %4628 = vmatpush.msra.mxu0 0.0
      %4629 = vmatpush.msra.mxu0 0.0
      %4630 = vmatpush.msra.mxu0 0.0
      %4631 = vmatpush.msra.mxu0 0.0
      %4632 = vmatpush.msra.mxu0 0.0
      %4633 = vmatpush.msra.mxu0 0.0
      %4634 = vmatpush.msra.mxu0 0.0
      %4635 = vmatpush.msra.mxu0 0.0
      %v4636 = vand.u32 %v4563, 4294901760
      %v4637 = vsub.f32 %v4563, %v4636
      %4638 = vmatpush.msra.mxu0 %v4637
      %v4639 = vand.u32 %v4562, 4294901760
      %v4640 = vsub.f32 %v4562, %v4639
      %4641 = vmatpush.msra.mxu0 %v4640
      %v4642 = vand.u32 %v3861, 4294901760
      %v4643 = vsub.f32 %v3861, %v4642
      %4644 = vmatmul.f32.gmra.mxu0 %v4643
      %v4645 = vpop.f32.mrf.mxu0
      %v4646 = vadd.f32 %v4620, %v4645
      %4647 = vdwg.mxu0
      %4648 = vmatpush.msra.mxu0 0.0
      %4649 = vmatpush.msra.mxu0 0.0
      %4650 = vmatpush.msra.mxu0 0.0
      %4651 = vmatpush.msra.mxu0 0.0
      %4652 = vmatpush.msra.mxu0 0.0
      %4653 = vmatpush.msra.mxu0 0.0
      %4654 = vmatpush.msra.mxu0 0.0
      %4655 = vmatpush.msra.mxu0 0.0
      %4656 = vmatpush.msra.mxu0 0.0
      %4657 = vmatpush.msra.mxu0 0.0
      %4658 = vmatpush.msra.mxu0 0.0
      %4659 = vmatpush.msra.mxu0 0.0
      %4660 = vmatpush.msra.mxu0 0.0
      %4661 = vmatpush.msra.mxu0 0.0
      %v4662 = vand.u32 %v4563, 4294901760
      %4663 = vmatpush.msra.mxu0 %v4662
      %v4664 = vand.u32 %v4562, 4294901760
      %4665 = vmatpush.msra.mxu0 %v4664
      %v4666 = vand.u32 %v3861, 4294901760
      %v4667 = vsub.f32 %v3861, %v4666
      %v4668 = vand.u32 %v4667, 4294901760
      %4669 = vmatmul.f32.gmra.mxu0 %v4668
      %v4670 = vpop.f32.mrf.mxu0
      %v4671 = vadd.f32 %v4646, %v4670
      %4672 = vdwg.mxu0
      %4673 = vmatpush.msra.mxu0 0.0
      %4674 = vmatpush.msra.mxu0 0.0
      %4675 = vmatpush.msra.mxu0 0.0
      %4676 = vmatpush.msra.mxu0 0.0
      %4677 = vmatpush.msra.mxu0 0.0
      %4678 = vmatpush.msra.mxu0 0.0
      %4679 = vmatpush.msra.mxu0 0.0
      %4680 = vmatpush.msra.mxu0 0.0
      %4681 = vmatpush.msra.mxu0 0.0
      %4682 = vmatpush.msra.mxu0 0.0
      %4683 = vmatpush.msra.mxu0 0.0
      %4684 = vmatpush.msra.mxu0 0.0
      %4685 = vmatpush.msra.mxu0 0.0
      %4686 = vmatpush.msra.mxu0 0.0
      %v4687 = vand.u32 %v4563, 4294901760
      %v4688 = vsub.f32 %v4563, %v4687
      %v4689 = vand.u32 %v4688, 4294901760
      %4690 = vmatpush.msra.mxu0 %v4689
      %v4691 = vand.u32 %v4562, 4294901760
      %v4692 = vsub.f32 %v4562, %v4691
      %v4693 = vand.u32 %v4692, 4294901760
      %4694 = vmatpush.msra.mxu0 %v4693
      %v4695 = vand.u32 %v3861, 4294901760
      %4696 = vmatmul.f32.gmra.mxu0 %v4695
      %v4697 = vpop.f32.mrf.mxu0
      %v4698 = vadd.f32 %v4671, %v4697
      %4699 = vdwg.mxu0
      %4700 = vmatpush.msra.mxu0 0.0
      %4701 = vmatpush.msra.mxu0 0.0
      %4702 = vmatpush.msra.mxu0 0.0
      %4703 = vmatpush.msra.mxu0 0.0
      %4704 = vmatpush.msra.mxu0 0.0
      %4705 = vmatpush.msra.mxu0 0.0
      %4706 = vmatpush.msra.mxu0 0.0
      %4707 = vmatpush.msra.mxu0 0.0
      %4708 = vmatpush.msra.mxu0 0.0
      %4709 = vmatpush.msra.mxu0 0.0
      %4710 = vmatpush.msra.mxu0 0.0
      %4711 = vmatpush.msra.mxu0 0.0
      %4712 = vmatpush.msra.mxu0 0.0
      %4713 = vmatpush.msra.mxu0 0.0
      %v4714 = vand.u32 %v4563, 4294901760
      %4715 = vmatpush.msra.mxu0 %v4714
      %v4716 = vand.u32 %v4562, 4294901760
      %4717 = vmatpush.msra.mxu0 %v4716
      %v4718 = vand.u32 %v3861, 4294901760
      %4719 = vmatmul.f32.gmra.mxu0 %v4718
      %v4720 = vpop.f32.mrf.mxu0
      %v4721 = vadd.f32 %v4698, %v4720
      %4722 = vdwg.mxu0
      %s4723 = scalar_lea.vmem %s15, 32
      %v4724 = vld [vmem:[%s4723] sm:$0xff]
      %v4725 = vld [vmem:[%s4723 + $0x8] sm:$0xff]
      %v4727 = vsel %vm2012, %v4724, 0
      %v4730 = vsel %vm2012, %v4725, 0
      %v4733 = vsel %vm2016, %v4721, 0
      %4735 = vmatpush.msra.mxu0 0.0
      %4736 = vmatpush.msra.mxu0 0.0
      %4737 = vmatpush.msra.mxu0 0.0
      %4738 = vmatpush.msra.mxu0 0.0
      %4739 = vmatpush.msra.mxu0 0.0
      %4740 = vmatpush.msra.mxu0 0.0
      %4741 = vmatpush.msra.mxu0 0.0
      %4742 = vmatpush.msra.mxu0 0.0
      %4743 = vmatpush.msra.mxu0 0.0
      %4744 = vmatpush.msra.mxu0 0.0
      %4745 = vmatpush.msra.mxu0 0.0
      %4746 = vmatpush.msra.mxu0 0.0
      %4747 = vmatpush.msra.mxu0 0.0
      %4748 = vmatpush.msra.mxu0 0.0
      %4749 = vmatpush.msra.mxu0 0.0
      %v4750 = vand.u32 %v4733, 4294901760
      %4751 = vmatpush.msra.mxu0 %v4750
      %v4752 = vand.u32 %v4727, 4294901760
      %v4753 = vsub.f32 %v4727, %v4752
      %v4754 = vand.u32 %v4753, 4294901760
      %v4755 = vsub.f32 %v4753, %v4754
      %v4756 = vand.u32 %v4755, 4294901760
      %4757 = vmatmul.f32.gmra.mxu0 %v4756
      %v4758 = vpop.f32.mrf.mxu0
      %v4759 = vadd.f32 0.0, %v4758
      %v4760 = vand.u32 %v4730, 4294901760
      %v4761 = vsub.f32 %v4730, %v4760
      %v4762 = vand.u32 %v4761, 4294901760
      %v4763 = vsub.f32 %v4761, %v4762
      %v4764 = vand.u32 %v4763, 4294901760
      %4765 = vmatmul.f32.gmra.mxu0 %v4764
      %v4766 = vpop.f32.mrf.mxu0
      %v4767 = vadd.f32 0.0, %v4766
      %4768 = vdwg.mxu0
      %4769 = vmatpush.msra.mxu0 0.0
      %4770 = vmatpush.msra.mxu0 0.0
      %4771 = vmatpush.msra.mxu0 0.0
      %4772 = vmatpush.msra.mxu0 0.0
      %4773 = vmatpush.msra.mxu0 0.0
      %4774 = vmatpush.msra.mxu0 0.0
      %4775 = vmatpush.msra.mxu0 0.0
      %4776 = vmatpush.msra.mxu0 0.0
      %4777 = vmatpush.msra.mxu0 0.0
      %4778 = vmatpush.msra.mxu0 0.0
      %4779 = vmatpush.msra.mxu0 0.0
      %4780 = vmatpush.msra.mxu0 0.0
      %4781 = vmatpush.msra.mxu0 0.0
      %4782 = vmatpush.msra.mxu0 0.0
      %4783 = vmatpush.msra.mxu0 0.0
      %v4784 = vand.u32 %v4733, 4294901760
      %v4785 = vsub.f32 %v4733, %v4784
      %v4786 = vand.u32 %v4785, 4294901760
      %v4787 = vsub.f32 %v4785, %v4786
      %v4788 = vand.u32 %v4787, 4294901760
      %4789 = vmatpush.msra.mxu0 %v4788
      %v4790 = vand.u32 %v4727, 4294901760
      %4791 = vmatmul.f32.gmra.mxu0 %v4790
      %v4792 = vpop.f32.mrf.mxu0
      %v4793 = vadd.f32 %v4759, %v4792
      %v4794 = vand.u32 %v4730, 4294901760
      %4795 = vmatmul.f32.gmra.mxu0 %v4794
      %v4796 = vpop.f32.mrf.mxu0
      %v4797 = vadd.f32 %v4767, %v4796
      %4798 = vdwg.mxu0
      %4799 = vmatpush.msra.mxu0 0.0
      %4800 = vmatpush.msra.mxu0 0.0
      %4801 = vmatpush.msra.mxu0 0.0
      %4802 = vmatpush.msra.mxu0 0.0
      %4803 = vmatpush.msra.mxu0 0.0
      %4804 = vmatpush.msra.mxu0 0.0
      %4805 = vmatpush.msra.mxu0 0.0
      %4806 = vmatpush.msra.mxu0 0.0
      %4807 = vmatpush.msra.mxu0 0.0
      %4808 = vmatpush.msra.mxu0 0.0
      %4809 = vmatpush.msra.mxu0 0.0
      %4810 = vmatpush.msra.mxu0 0.0
      %4811 = vmatpush.msra.mxu0 0.0
      %4812 = vmatpush.msra.mxu0 0.0
      %4813 = vmatpush.msra.mxu0 0.0
      %v4814 = vand.u32 %v4733, 4294901760
      %v4815 = vsub.f32 %v4733, %v4814
      %4816 = vmatpush.msra.mxu0 %v4815
      %v4817 = vand.u32 %v4727, 4294901760
      %v4818 = vsub.f32 %v4727, %v4817
      %4819 = vmatmul.f32.gmra.mxu0 %v4818
      %v4820 = vpop.f32.mrf.mxu0
      %v4821 = vadd.f32 %v4793, %v4820
      %v4822 = vand.u32 %v4730, 4294901760
      %v4823 = vsub.f32 %v4730, %v4822
      %4824 = vmatmul.f32.gmra.mxu0 %v4823
      %v4825 = vpop.f32.mrf.mxu0
      %v4826 = vadd.f32 %v4797, %v4825
      %4827 = vdwg.mxu0
      %4828 = vmatpush.msra.mxu0 0.0
      %4829 = vmatpush.msra.mxu0 0.0
      %4830 = vmatpush.msra.mxu0 0.0
      %4831 = vmatpush.msra.mxu0 0.0
      %4832 = vmatpush.msra.mxu0 0.0
      %4833 = vmatpush.msra.mxu0 0.0
      %4834 = vmatpush.msra.mxu0 0.0
      %4835 = vmatpush.msra.mxu0 0.0
      %4836 = vmatpush.msra.mxu0 0.0
      %4837 = vmatpush.msra.mxu0 0.0
      %4838 = vmatpush.msra.mxu0 0.0
      %4839 = vmatpush.msra.mxu0 0.0
      %4840 = vmatpush.msra.mxu0 0.0
      %4841 = vmatpush.msra.mxu0 0.0
      %4842 = vmatpush.msra.mxu0 0.0
      %v4843 = vand.u32 %v4733, 4294901760
      %4844 = vmatpush.msra.mxu0 %v4843
      %v4845 = vand.u32 %v4727, 4294901760
      %v4846 = vsub.f32 %v4727, %v4845
      %v4847 = vand.u32 %v4846, 4294901760
      %4848 = vmatmul.f32.gmra.mxu0 %v4847
      %v4849 = vpop.f32.mrf.mxu0
      %v4850 = vadd.f32 %v4821, %v4849
      %v4851 = vand.u32 %v4730, 4294901760
      %v4852 = vsub.f32 %v4730, %v4851
      %v4853 = vand.u32 %v4852, 4294901760
      %4854 = vmatmul.f32.gmra.mxu0 %v4853
      %v4855 = vpop.f32.mrf.mxu0
      %v4856 = vadd.f32 %v4826, %v4855
      %4857 = vdwg.mxu0
      %4858 = vmatpush.msra.mxu0 0.0
      %4859 = vmatpush.msra.mxu0 0.0
      %4860 = vmatpush.msra.mxu0 0.0
      %4861 = vmatpush.msra.mxu0 0.0
      %4862 = vmatpush.msra.mxu0 0.0
      %4863 = vmatpush.msra.mxu0 0.0
      %4864 = vmatpush.msra.mxu0 0.0
      %4865 = vmatpush.msra.mxu0 0.0
      %4866 = vmatpush.msra.mxu0 0.0
      %4867 = vmatpush.msra.mxu0 0.0
      %4868 = vmatpush.msra.mxu0 0.0
      %4869 = vmatpush.msra.mxu0 0.0
      %4870 = vmatpush.msra.mxu0 0.0
      %4871 = vmatpush.msra.mxu0 0.0
      %4872 = vmatpush.msra.mxu0 0.0
      %v4873 = vand.u32 %v4733, 4294901760
      %v4874 = vsub.f32 %v4733, %v4873
      %v4875 = vand.u32 %v4874, 4294901760
      %4876 = vmatpush.msra.mxu0 %v4875
      %v4877 = vand.u32 %v4727, 4294901760
      %4878 = vmatmul.f32.gmra.mxu0 %v4877
      %v4879 = vpop.f32.mrf.mxu0
      %v4880 = vadd.f32 %v4850, %v4879
      %v4881 = vand.u32 %v4730, 4294901760
      %4882 = vmatmul.f32.gmra.mxu0 %v4881
      %v4883 = vpop.f32.mrf.mxu0
      %v4884 = vadd.f32 %v4856, %v4883
      %4885 = vdwg.mxu0
      %4886 = vmatpush.msra.mxu0 0.0
      %4887 = vmatpush.msra.mxu0 0.0
      %4888 = vmatpush.msra.mxu0 0.0
      %4889 = vmatpush.msra.mxu0 0.0
      %4890 = vmatpush.msra.mxu0 0.0
      %4891 = vmatpush.msra.mxu0 0.0
      %4892 = vmatpush.msra.mxu0 0.0
      %4893 = vmatpush.msra.mxu0 0.0
      %4894 = vmatpush.msra.mxu0 0.0
      %4895 = vmatpush.msra.mxu0 0.0
      %4896 = vmatpush.msra.mxu0 0.0
      %4897 = vmatpush.msra.mxu0 0.0
      %4898 = vmatpush.msra.mxu0 0.0
      %4899 = vmatpush.msra.mxu0 0.0
      %4900 = vmatpush.msra.mxu0 0.0
      %v4901 = vand.u32 %v4733, 4294901760
      %4902 = vmatpush.msra.mxu0 %v4901
      %v4903 = vand.u32 %v4727, 4294901760
      %4904 = vmatmul.f32.gmra.mxu0 %v4903
      %v4905 = vpop.f32.mrf.mxu0
      %v4906 = vadd.f32 %v4880, %v4905
      %v4907 = vand.u32 %v4730, 4294901760
      %4908 = vmatmul.f32.gmra.mxu0 %v4907
      %v4909 = vpop.f32.mrf.mxu0
      %v4910 = vadd.f32 %v4884, %v4909
      %4911 = vdwg.mxu0
      %v4912 = vadd.f32 %v4555, %v4906
      %v4913 = vadd.f32 %v4559, %v4910
      %v4914 = vld [vmem:[%s17] sm:$0x1]
      %v4916 = vperm.slane %v4914, 0
      %v4918 = vadd.f32 %v4912, %v4916
      %v4919 = vadd.f32 %v4913, %v4916
      %v4920 = vmax.f32 %v4918, 0.0
      %v4921 = vmax.f32 %v4919, 0.0
      %v4922 = vld [vmem:[%s18] sm:$0xff]
      %v4923 = vld [vmem:[%s19] sm:$0x1]
      %v4925 = vperm.slane %v4923, 0
      %v4928 = vsel %vm1711, %v4920, 0
      %v4931 = vsel %vm1711, %v4921, 0
      %4933 = vmatpush.msra.mxu0 0.0
      %4934 = vmatpush.msra.mxu0 0.0
      %4935 = vmatpush.msra.mxu0 0.0
      %4936 = vmatpush.msra.mxu0 0.0
      %4937 = vmatpush.msra.mxu0 0.0
      %4938 = vmatpush.msra.mxu0 0.0
      %4939 = vmatpush.msra.mxu0 0.0
      %4940 = vmatpush.msra.mxu0 0.0
      %4941 = vmatpush.msra.mxu0 0.0
      %4942 = vmatpush.msra.mxu0 0.0
      %4943 = vmatpush.msra.mxu0 0.0
      %4944 = vmatpush.msra.mxu0 0.0
      %4945 = vmatpush.msra.mxu0 0.0
      %4946 = vmatpush.msra.mxu0 0.0
      %4947 = vmatpush.msra.mxu0 0.0
      %v4948 = vand.u32 %v4922, 4294901760
      %4949 = vmatpush.msra.mxu0 %v4948
      %v4950 = vand.u32 %v4928, 4294901760
      %v4951 = vsub.f32 %v4928, %v4950
      %v4952 = vand.u32 %v4951, 4294901760
      %v4953 = vsub.f32 %v4951, %v4952
      %v4954 = vand.u32 %v4953, 4294901760
      %4955 = vmatmul.f32.gmra.mxu0 %v4954
      %v4956 = vpop.f32.mrf.mxu0
      %v4957 = vadd.f32 %v4925, %v4956
      %v4958 = vand.u32 %v4931, 4294901760
      %v4959 = vsub.f32 %v4931, %v4958
      %v4960 = vand.u32 %v4959, 4294901760
      %v4961 = vsub.f32 %v4959, %v4960
      %v4962 = vand.u32 %v4961, 4294901760
      %4963 = vmatmul.f32.gmra.mxu0 %v4962
      %v4964 = vpop.f32.mrf.mxu0
      %v4965 = vadd.f32 %v4925, %v4964
      %4966 = vdwg.mxu0
      %4967 = vmatpush.msra.mxu0 0.0
      %4968 = vmatpush.msra.mxu0 0.0
      %4969 = vmatpush.msra.mxu0 0.0
      %4970 = vmatpush.msra.mxu0 0.0
      %4971 = vmatpush.msra.mxu0 0.0
      %4972 = vmatpush.msra.mxu0 0.0
      %4973 = vmatpush.msra.mxu0 0.0
      %4974 = vmatpush.msra.mxu0 0.0
      %4975 = vmatpush.msra.mxu0 0.0
      %4976 = vmatpush.msra.mxu0 0.0
      %4977 = vmatpush.msra.mxu0 0.0
      %4978 = vmatpush.msra.mxu0 0.0
      %4979 = vmatpush.msra.mxu0 0.0
      %4980 = vmatpush.msra.mxu0 0.0
      %4981 = vmatpush.msra.mxu0 0.0
      %v4982 = vand.u32 %v4922, 4294901760
      %v4983 = vsub.f32 %v4922, %v4982
      %v4984 = vand.u32 %v4983, 4294901760
      %v4985 = vsub.f32 %v4983, %v4984
      %v4986 = vand.u32 %v4985, 4294901760
      %4987 = vmatpush.msra.mxu0 %v4986
      %v4988 = vand.u32 %v4928, 4294901760
      %4989 = vmatmul.f32.gmra.mxu0 %v4988
      %v4990 = vpop.f32.mrf.mxu0
      %v4991 = vadd.f32 %v4957, %v4990
      %v4992 = vand.u32 %v4931, 4294901760
      %4993 = vmatmul.f32.gmra.mxu0 %v4992
      %v4994 = vpop.f32.mrf.mxu0
      %v4995 = vadd.f32 %v4965, %v4994
      %4996 = vdwg.mxu0
      %4997 = vmatpush.msra.mxu0 0.0
      %4998 = vmatpush.msra.mxu0 0.0
      %4999 = vmatpush.msra.mxu0 0.0
      %5000 = vmatpush.msra.mxu0 0.0
      %5001 = vmatpush.msra.mxu0 0.0
      %5002 = vmatpush.msra.mxu0 0.0
      %5003 = vmatpush.msra.mxu0 0.0
      %5004 = vmatpush.msra.mxu0 0.0
      %5005 = vmatpush.msra.mxu0 0.0
      %5006 = vmatpush.msra.mxu0 0.0
      %5007 = vmatpush.msra.mxu0 0.0
      %5008 = vmatpush.msra.mxu0 0.0
      %5009 = vmatpush.msra.mxu0 0.0
      %5010 = vmatpush.msra.mxu0 0.0
      %5011 = vmatpush.msra.mxu0 0.0
      %v5012 = vand.u32 %v4922, 4294901760
      %v5013 = vsub.f32 %v4922, %v5012
      %5014 = vmatpush.msra.mxu0 %v5013
      %v5015 = vand.u32 %v4928, 4294901760
      %v5016 = vsub.f32 %v4928, %v5015
      %5017 = vmatmul.f32.gmra.mxu0 %v5016
      %v5018 = vpop.f32.mrf.mxu0
      %v5019 = vadd.f32 %v4991, %v5018
      %v5020 = vand.u32 %v4931, 4294901760
      %v5021 = vsub.f32 %v4931, %v5020
      %5022 = vmatmul.f32.gmra.mxu0 %v5021
      %v5023 = vpop.f32.mrf.mxu0
      %v5024 = vadd.f32 %v4995, %v5023
      %5025 = vdwg.mxu0
      %5026 = vmatpush.msra.mxu0 0.0
      %5027 = vmatpush.msra.mxu0 0.0
      %5028 = vmatpush.msra.mxu0 0.0
      %5029 = vmatpush.msra.mxu0 0.0
      %5030 = vmatpush.msra.mxu0 0.0
      %5031 = vmatpush.msra.mxu0 0.0
      %5032 = vmatpush.msra.mxu0 0.0
      %5033 = vmatpush.msra.mxu0 0.0
      %5034 = vmatpush.msra.mxu0 0.0
      %5035 = vmatpush.msra.mxu0 0.0
      %5036 = vmatpush.msra.mxu0 0.0
      %5037 = vmatpush.msra.mxu0 0.0
      %5038 = vmatpush.msra.mxu0 0.0
      %5039 = vmatpush.msra.mxu0 0.0
      %5040 = vmatpush.msra.mxu0 0.0
      %v5041 = vand.u32 %v4922, 4294901760
      %5042 = vmatpush.msra.mxu0 %v5041
      %v5043 = vand.u32 %v4928, 4294901760
      %v5044 = vsub.f32 %v4928, %v5043
      %v5045 = vand.u32 %v5044, 4294901760
      %5046 = vmatmul.f32.gmra.mxu0 %v5045
      %v5047 = vpop.f32.mrf.mxu0
      %v5048 = vadd.f32 %v5019, %v5047
      %v5049 = vand.u32 %v4931, 4294901760
      %v5050 = vsub.f32 %v4931, %v5049
      %v5051 = vand.u32 %v5050, 4294901760
      %5052 = vmatmul.f32.gmra.mxu0 %v5051
      %v5053 = vpop.f32.mrf.mxu0
      %v5054 = vadd.f32 %v5024, %v5053
      %5055 = vdwg.mxu0
      %5056 = vmatpush.msra.mxu0 0.0
      %5057 = vmatpush.msra.mxu0 0.0
      %5058 = vmatpush.msra.mxu0 0.0
      %5059 = vmatpush.msra.mxu0 0.0
      %5060 = vmatpush.msra.mxu0 0.0
      %5061 = vmatpush.msra.mxu0 0.0
      %5062 = vmatpush.msra.mxu0 0.0
      %5063 = vmatpush.msra.mxu0 0.0
      %5064 = vmatpush.msra.mxu0 0.0
      %5065 = vmatpush.msra.mxu0 0.0
      %5066 = vmatpush.msra.mxu0 0.0
      %5067 = vmatpush.msra.mxu0 0.0
      %5068 = vmatpush.msra.mxu0 0.0
      %5069 = vmatpush.msra.mxu0 0.0
      %5070 = vmatpush.msra.mxu0 0.0
      %v5071 = vand.u32 %v4922, 4294901760
      %v5072 = vsub.f32 %v4922, %v5071
      %v5073 = vand.u32 %v5072, 4294901760
      %5074 = vmatpush.msra.mxu0 %v5073
      %v5075 = vand.u32 %v4928, 4294901760
      %5076 = vmatmul.f32.gmra.mxu0 %v5075
      %v5077 = vpop.f32.mrf.mxu0
      %v5078 = vadd.f32 %v5048, %v5077
      %v5079 = vand.u32 %v4931, 4294901760
      %5080 = vmatmul.f32.gmra.mxu0 %v5079
      %v5081 = vpop.f32.mrf.mxu0
      %v5082 = vadd.f32 %v5054, %v5081
      %5083 = vdwg.mxu0
      %5084 = vmatpush.msra.mxu0 0.0
      %5085 = vmatpush.msra.mxu0 0.0
      %5086 = vmatpush.msra.mxu0 0.0
      %5087 = vmatpush.msra.mxu0 0.0
      %5088 = vmatpush.msra.mxu0 0.0
      %5089 = vmatpush.msra.mxu0 0.0
      %5090 = vmatpush.msra.mxu0 0.0
      %5091 = vmatpush.msra.mxu0 0.0
      %5092 = vmatpush.msra.mxu0 0.0
      %5093 = vmatpush.msra.mxu0 0.0
      %5094 = vmatpush.msra.mxu0 0.0
      %5095 = vmatpush.msra.mxu0 0.0
      %5096 = vmatpush.msra.mxu0 0.0
      %5097 = vmatpush.msra.mxu0 0.0
      %5098 = vmatpush.msra.mxu0 0.0
      %v5099 = vand.u32 %v4922, 4294901760
      %5100 = vmatpush.msra.mxu0 %v5099
      %v5101 = vand.u32 %v4928, 4294901760
      %5102 = vmatmul.f32.gmra.mxu0 %v5101
      %v5103 = vpop.f32.mrf.mxu0
      %v5104 = vadd.f32 %v5078, %v5103
      %v5105 = vand.u32 %v4931, 4294901760
      %5106 = vmatmul.f32.gmra.mxu0 %v5105
      %v5107 = vpop.f32.mrf.mxu0
      %v5108 = vadd.f32 %v5082, %v5107
      %5109 = vdwg.mxu0
      %5110 = vst.msk [vmem:[%s649] sm:$0xff] %vm659, %v5104
      %5111 = vst.msk [vmem:[%s649 + $0x8] sm:$0xff] %vm659, %v5108
      %p5112 = scmp.lt.s32.totalorder %s31, 1
      %s5113 = scalar_select %p5112, %s31, 1
      %s5114 = smul.addr %s5113, 2
      %s5115 = smul.addr %s5114, 8
      %s5116 = scalar_lea.vmem %s20, %s5115
      // Predicated region
      $region101: #{_lambda_.1} parent=99 // pred_check
        %p5117 = pneg %p479
      $region102: #{_lambda_.1} parent=99 // pred_check_branch
        %5119 = sbr.rel (%p5117) target = $region104
      $region103: #{_lambda_.1} parent=99 // pred_region
        _
      $region104: #{_lambda_.1} parent=99 // pred_fallthru
        _
    $region100: #{_lambda_.1} parent=5 // pred_fallthru
      _
    %p5120 = scmp.le.s32.totalorder 2, %s26
    // Predicated region
    $region105: #{_lambda_.1} parent=5 // pred_check
      %p5121 = pneg %p5120
    $region106: #{_lambda_.1} parent=5 // pred_check_branch
      %5123 = sbr.rel (%p5121) target = $region108
    $region107: #{_lambda_.1} parent=5 // pred_region
      %s5124 = ssub.s32 %s26, 2
      // Predicated region
      $region109: #{_lambda_.1} parent=107 // pred_check
        %p5125 = pneg %p485
      $region110: #{_lambda_.1} parent=107 // pred_check_branch
        %5127 = sbr.rel (%p5125) target = $region112
      $region111: #{_lambda_.1} parent=107 // pred_region
        %p5128 = scmp.lt.s32.totalorder %s32, 1
        %s5129 = scalar_select %p5128, %s32, 1
        %s5130 = smul.addr %s5129, 2
        %s5131 = smul.addr %s5130, 8
        %s5132 = scalar_lea.vmem %s20, %s5131
      $region112: #{_lambda_.1} parent=107 // pred_fallthru
        _
    $region108: #{_lambda_.1} parent=5 // pred_fallthru
      _
  $region6: #{_lambda_.1} parent=0 // loop_footer
    %s30 = sadd.s32 1, %s26
  $region7: #{_lambda_.1} parent=0 // loop_footer_branch
    %25 = sbr.rel target = $region3
  $region8: #{_lambda_.1} parent=0 // loop_exit
    _

</llo_original>
